<compile_context>
chip_gen: v6e
topology: v6e:2x2x1
jax: 0.10.0
libtpu: 0.0.40
codegen_flags: <defaults>
</compile_context>

<pallas_src>
import functools

import jax
import jax.numpy as jnp
from jax import lax
from jax.experimental import pallas as pl
from jax.experimental.pallas import tpu as pltpu

EPS = 1e-5
MATMUL_DTYPE = jnp.bfloat16   # MXU operand dtype (accumulation stays f32)
ACT_DTYPE = jnp.bfloat16      # storage dtype of inter-conv activations


# ---------------------------------------------------------------------------
# Kernels
# ---------------------------------------------------------------------------
def _sum_hw(x):
    """Sum a (H, W, C) tile over H and W -> (1, 1, C) (single-axis reduces)."""
    return jnp.sum(jnp.sum(x, axis=0, keepdims=True), axis=1, keepdims=True)


def _input_stats_kernel(x_ref, sum_ref, sq_ref):
    """Per-image channel sum / sum-of-squares of the raw block input.  Only used
    for the very first bn1; every later BN gets its stats from a conv epilogue."""
    x = x_ref[0].astype(jnp.float32)                 # (H, W, C)
    sum_ref[...] = _sum_hw(x)
    sq_ref[...] = _sum_hw(x * x)


def _conv3x3_body(x_ref, w_ref, scale_ref, shift_ref, res_ref, sw_ref,
                  o_ref, sum_ref, sq_ref):
    """One image of: relu(bn(x)) -> 3x3 conv (stride 1, pad 1)
    [+ identity residual | + residual @ 1x1 shortcut], with the NEXT BatchNorm's
    statistics fused into the epilogue.  im2col happens in VMEM."""
    _, hp, wp, cin = x_ref.shape
    ho, wo = hp - 2, wp - 2
    cout = o_ref.shape[3]

    # --- prologue: BN affine + ReLU applied ONCE to the small pre-tap tile ---
    x = x_ref[0].astype(jnp.float32)                                   # (Hp,Wp,Cin)
    a = jnp.maximum(x * scale_ref[...] + shift_ref[...], 0.0)
    # Conv zero-padding applies to the *post*-activation signal, so re-zero the
    # 1-pixel border (the wrapper padded the raw, un-normalized input).
    ri = lax.broadcasted_iota(jnp.int32, (hp, wp, cin), 0)
    ci = lax.broadcasted_iota(jnp.int32, (hp, wp, cin), 1)
    inside = (ri >= 1) & (ri < hp - 1) & (ci >= 1) & (ci < wp - 1)
    a = jnp.where(inside, a, 0.0).astype(MATMUL_DTYPE)

    # --- in-VMEM im2col: 9 contiguous taps folded into the MXU K axis --------
    taps = [a[i:i + ho, j:j + wo, :] for i in range(3) for j in range(3)]
    patches = jnp.concatenate(taps, axis=-1).reshape(ho * wo, 9 * cin)  # (M, K)
    acc = jnp.dot(patches, w_ref[...], preferred_element_type=jnp.float32)

    # --- fused residual: identity add or 1x1-shortcut matmul -----------------
    if res_ref is not None:
        res = res_ref[0].reshape(ho * wo, res_ref.shape[3])
        if sw_ref is not None:
            acc = acc + jnp.dot(res.astype(MATMUL_DTYPE), sw_ref[...],
                                preferred_element_type=jnp.float32)
        else:
            acc = acc + res.astype(jnp.float32)

    # --- epilogue: store + fused stats for the next BatchNorm ----------------
    o_ref[0] = acc.reshape(ho, wo, cout).astype(o_ref.dtype)
    sum_ref[...] = jnp.sum(acc, axis=0, keepdims=True).reshape(1, 1, cout)
    sq_ref[...] = jnp.sum(acc * acc, axis=0, keepdims=True).reshape(1, 1, cout)


def _conv3x3_kernel(x_ref, w_ref, scale_ref, shift_ref, o_ref, sum_ref, sq_ref):
    _conv3x3_body(x_ref, w_ref, scale_ref, shift_ref, None, None,
                  o_ref, sum_ref, sq_ref)


def _conv3x3_res_kernel(x_ref, w_ref, scale_ref, shift_ref, res_ref,
                        o_ref, sum_ref, sq_ref):
    _conv3x3_body(x_ref, w_ref, scale_ref, shift_ref, res_ref, None,
                  o_ref, sum_ref, sq_ref)


def _conv3x3_short_kernel(x_ref, w_ref, scale_ref, shift_ref, res_ref, sw_ref,
                          o_ref, sum_ref, sq_ref):
    _conv3x3_body(x_ref, w_ref, scale_ref, shift_ref, res_ref, sw_ref,
                  o_ref, sum_ref, sq_ref)


def _matmul_stats_kernel(p_ref, w_ref, o_ref, sum_ref, sq_ref):
    """Strided-conv fallback: patches built in the wrapper; one matmul per image
    with the fused BN-stats epilogue."""
    _, ho, wo, cout = o_ref.shape
    acc = jnp.dot(p_ref[0], w_ref[...], preferred_element_type=jnp.float32)
    o_ref[0] = acc.reshape(ho, wo, cout).astype(o_ref.dtype)
    sum_ref[...] = jnp.sum(acc, axis=0, keepdims=True).reshape(1, 1, cout)
    sq_ref[...] = jnp.sum(acc * acc, axis=0, keepdims=True).reshape(1, 1, cout)


# ---------------------------------------------------------------------------
# Pallas wrappers
# ---------------------------------------------------------------------------
def _stats_specs(c):
    return (pl.BlockSpec((1, 1, c), lambda i: (i, 0, 0)),
            pl.BlockSpec((1, 1, c), lambda i: (i, 0, 0)))


def input_bn_stats(x):
    """Per-image (N,1,C) sums / sums-of-squares of the raw block input."""
    n, h, w, c = x.shape
    return pl.pallas_call(
        _input_stats_kernel,
        out_shape=(jax.ShapeDtypeStruct((n, 1, c), jnp.float32),
                   jax.ShapeDtypeStruct((n, 1, c), jnp.float32)),
        grid_spec=pl.GridSpec(
            grid=(n,),
            in_specs=[pl.BlockSpec((1, h, w, c), lambda i: (i, 0, 0, 0))],
            out_specs=_stats_specs(c)),
        compiler_params=pltpu.CompilerParams(dimension_semantics=("parallel",)),
    )(x)


def bn_finalize(sums, sqs, count, gamma, beta):
    """Partial sums -> training-mode BN affine (scale, shift) as (1,1,C) f32,
    such that bn(x) == x * scale + shift."""
    s = jnp.sum(sums, axis=(0, 1))
    sq = jnp.sum(sqs, axis=(0, 1))
    mean = s / count
    var = jnp.maximum(sq / count - mean * mean, 0.0)     # biased var (PyTorch train)
    scale = gamma * lax.rsqrt(var + EPS)
    shift = beta - mean * scale
    return (scale.astype(jnp.float32).reshape(1, 1, -1),
            shift.astype(jnp.float32).reshape(1, 1, -1))


def conv3x3_s1_fused(x, w, scale, shift, *, out_dtype,
                     residual=None, shortcut_w=None):
    """Fused relu(bn(x)) -> 3x3 conv (stride 1, pad 1) -> (+res | +res@shortcut),
    emitting per-image stats of the output for the next BatchNorm.
    x: (N,H,W,Cin); w: (3,3,Cin,Cout); residual: (N,H,W,Cres)."""
    n, h, wd, cin = x.shape
    cout = w.shape[-1]
    ho, wo = h, wd
    hp, wp = h + 2, wd + 2
    k = 9 * cin

    xp = jnp.pad(x, ((0, 0), (1, 1), (1, 1), (0, 0)))          # raw pad; re-zeroed in-kernel
    wmat = w.reshape(k, cout).astype(MATMUL_DTYPE)

    in_specs = [
        pl.BlockSpec((1, hp, wp, cin), lambda i: (i, 0, 0, 0)),   # activation tile
        pl.BlockSpec((k, cout), lambda i: (0, 0)),                # weights (resident)
        pl.BlockSpec((1, 1, cin), lambda i: (0, 0, 0)),           # bn scale
        pl.BlockSpec((1, 1, cin), lambda i: (0, 0, 0)),           # bn shift
    ]
    args = [xp, wmat, scale, shift]
    flops = 2 * n * ho * wo * k * cout
    bytes_accessed = (xp.size * jnp.dtype(xp.dtype).itemsize
                      + wmat.size * 2 + 2 * cin * 4
                      + n * ho * wo * cout * jnp.dtype(out_dtype).itemsize
                      + 2 * n * cout * 4)

    if residual is not None:
        cres = residual.shape[-1]
        in_specs.append(pl.BlockSpec((1, ho, wo, cres), lambda i: (i, 0, 0, 0)))
        args.append(residual)
        bytes_accessed += residual.size * jnp.dtype(residual.dtype).itemsize
        if shortcut_w is not None:
            swmat = shortcut_w.reshape(cres, cout).astype(MATMUL_DTYPE)
            in_specs.append(pl.BlockSpec((cres, cout), lambda i: (0, 0)))
            args.append(swmat)
            flops += 2 * n * ho * wo * cres * cout
            bytes_accessed += swmat.size * 2
            kernel = _conv3x3_short_kernel
        else:
            kernel = _conv3x3_res_kernel
    else:
        kernel = _conv3x3_kernel

    return pl.pallas_call(
        kernel,
        out_shape=(jax.ShapeDtypeStruct((n, ho, wo, cout), out_dtype),
                   jax.ShapeDtypeStruct((n, 1, cout), jnp.float32),
                   jax.ShapeDtypeStruct((n, 1, cout), jnp.float32)),
        grid_spec=pl.GridSpec(
            grid=(n,),
            in_specs=in_specs,
            out_specs=(pl.BlockSpec((1, ho, wo, cout), lambda i: (i, 0, 0, 0)),) + _stats_specs(cout)),
        compiler_params=pltpu.CompilerParams(dimension_semantics=("parallel",)),
        cost_estimate=pl.CostEstimate(flops=int(flops), transcendentals=0,
                                      bytes_accessed=int(bytes_accessed)),
    )(*args)


def conv3x3_strided(a, w, stride, *, out_dtype):
    """Downsampling 3x3 conv (pad 1) on an already-activated input `a`.
    TODO(synk): wrapper-side im2col; only one such conv per NetworkBlock."""
    n, h, wd, cin = a.shape
    cout = w.shape[-1]
    ho = (h + 2 - 3) // stride + 1
    wo = (wd + 2 - 3) // stride + 1
    ap = jnp.pad(a, ((0, 0), (1, 1), (1, 1), (0, 0)))
    cols = []
    for i in range(3):
        for j in range(3):
            cols.append(ap[:, i:i + stride * (ho - 1) + 1:stride,
                           j:j + stride * (wo - 1) + 1:stride, :])
    patches = (jnp.concatenate(cols, axis=-1)
               .reshape(n, ho * wo, 9 * cin).astype(MATMUL_DTYPE))
    wmat = w.reshape(9 * cin, cout).astype(MATMUL_DTYPE)

    return pl.pallas_call(
        _matmul_stats_kernel,
        out_shape=(jax.ShapeDtypeStruct((n, ho, wo, cout), out_dtype),
                   jax.ShapeDtypeStruct((n, 1, cout), jnp.float32),
                   jax.ShapeDtypeStruct((n, 1, cout), jnp.float32)),
        grid_spec=pl.GridSpec(
            grid=(n,),
            in_specs=[pl.BlockSpec((1, ho * wo, 9 * cin), lambda i: (i, 0, 0)),
                      pl.BlockSpec((9 * cin, cout), lambda i: (0, 0))],
            out_specs=(pl.BlockSpec((1, ho, wo, cout), lambda i: (i, 0, 0, 0)),) + _stats_specs(cout)),
        compiler_params=pltpu.CompilerParams(dimension_semantics=("parallel",)),
        cost_estimate=pl.CostEstimate(
            flops=int(2 * n * ho * wo * 9 * cin * cout), transcendentals=0,
            bytes_accessed=int(patches.size * 2 + wmat.size * 2
                               + n * ho * wo * cout * jnp.dtype(out_dtype).itemsize)),
    )(patches, wmat)


# ---------------------------------------------------------------------------
# BasicBlock / NetworkBlock2 forward (glue in JAX, compute in Pallas)
# ---------------------------------------------------------------------------
def basic_block_forward(x, in_stats, p, out_dtype):
    """x: (N,H,W,Cin) NHWC.  in_stats: per-image (sum, sumsq) of x from the
    previous conv's fused epilogue (None for the block's first layer).
    Returns (out, out_stats) so the next layer's bn1 needs no extra pass."""
    n, h, wd, _ = x.shape
    stride = p["stride"]
    equal = p["equal_in_out"]

    if in_stats is None:
        s_in, sq_in = input_bn_stats(x)
    else:
        s_in, sq_in = in_stats
    scale1, shift1 = bn_finalize(s_in, sq_in, n * h * wd,
                                 p["bn1_gamma"], p["bn1_beta"])

    a1_res = None
    if stride == 1:
        y1, s_y1, sq_y1 = conv3x3_s1_fused(x, p["conv1_w"], scale1, shift1,
                                           out_dtype=ACT_DTYPE)
        if not equal:
            # TODO(synk): could be emitted as an extra output of conv1's kernel.
            a1_res = jnp.maximum(x.astype(jnp.float32) * scale1 + shift1,
                                 0.0).astype(ACT_DTYPE)
    else:
        # Strided (downsampling) conv: pre-activation + wrapper im2col fallback.
        a1 = jnp.maximum(x.astype(jnp.float32) * scale1 + shift1, 0.0)
        y1, s_y1, sq_y1 = conv3x3_strided(a1, p["conv1_w"], stride,
                                          out_dtype=ACT_DTYPE)
        if not equal:
            a1_res = a1[:, ::stride, ::stride, :].astype(ACT_DTYPE)

    ho, wo = y1.shape[1], y1.shape[2]
    scale2, shift2 = bn_finalize(s_y1, sq_y1, n * ho * wo,
                                 p["bn2_gamma"], p["bn2_beta"])
    # TODO(synk): F.dropout omitted — this instantiation uses dropRate=0.0.

    if equal:
        out, s_o, sq_o = conv3x3_s1_fused(y1, p["conv2_w"], scale2, shift2,
                                          out_dtype=out_dtype, residual=x)
    else:
        out, s_o, sq_o = conv3x3_s1_fused(y1, p["conv2_w"], scale2, shift2,
                                          out_dtype=out_dtype,
                                          residual=a1_res,
                                          shortcut_w=p["short_w"])
    return out, (s_o, sq_o)


def network_block2_forward(x_nchw, layer_params):
    x = jnp.transpose(x_nchw, (0, 2, 3, 1))           # NCHW -> NHWC (channels on lanes)
    stats = None
    for li, p in enumerate(layer_params):
        last = li == len(layer_params) - 1
        x, stats = basic_block_forward(x, stats, p,
                                       jnp.float32 if last else ACT_DTYPE)
    return jnp.transpose(x, (0, 3, 1, 2)).astype(jnp.float32)   # NHWC -> NCHW


def init_network_block2_params(key, nb_layers, in_planes, out_planes, stride):
    """Deterministic synthetic parameters matching NetworkBlock2._make_layer."""
    layers = []
    n_block1 = int(nb_layers) - 1
    for i in range(int(nb_layers)):
        layer_in = in_planes if i == 0 else out_planes
        layer_stride = stride if i == 0 else 1
        if i == n_block1:                       # last layer: block2(out, out, 1)
            layer_in, layer_stride = out_planes, 1
        equal = (layer_in == out_planes)
        key, k1, k2, k3, k4, k5 = jax.random.split(key, 6)
        p = {
            "stride": layer_stride,
            "equal_in_out": equal,
            "bn1_gamma": 1.0 + 0.1 * jax.random.normal(k4, (layer_in,), jnp.float32),
            "bn1_beta": 0.1 * jax.random.normal(k5, (layer_in,), jnp.float32),
            "conv1_w": 0.1 * jax.random.normal(k1, (3, 3, layer_in, out_planes), jnp.float32),
            "bn2_gamma": jnp.ones((out_planes,), jnp.float32),
            "bn2_beta": jnp.zeros((out_planes,), jnp.float32),
            "conv2_w": 0.1 * jax.random.normal(k2, (3, 3, out_planes, out_planes), jnp.float32),
        }
        if not equal:
            p["short_w"] = 0.1 * jax.random.normal(k3, (1, 1, layer_in, out_planes), jnp.float32)
        layers.append(p)
    return layers


if __name__ == "__main__":
    # NetworkBlock2(nb_layers=2, in_planes=4, out_planes=8, BasicBlock, BasicBlock, stride=2)
    N, C_IN, H, W = 2, 4, 16, 16
    C_OUT, NB_LAYERS, STRIDE = 8, 2, 2

    x = jax.random.normal(jax.random.PRNGKey(0), (N, C_IN, H, W), dtype=jnp.float32)
    params = init_network_block2_params(jax.random.PRNGKey(1),
                                        NB_LAYERS, C_IN, C_OUT, STRIDE)

    fwd = jax.jit(functools.partial(network_block2_forward, layer_params=params))
    y = fwd(x)
    jax.block_until_ready(y)

    assert y.shape == (N, C_OUT, H // STRIDE, W // STRIDE), y.shape
    assert bool(jnp.all(jnp.isfinite(y)))
    print("KERNEL_OK")
</pallas_src>

<mosaic_0001>
module attributes {stable_mosaic.version = 11 : i64} {
  func.func @_input_stats_kernel(%arg0: i32, %arg1: memref<1x16x16x4xf32, #tpu.memory_space<vmem>>, %arg2: memref<1x1x4xf32, #tpu.memory_space<vmem>>, %arg3: memref<1x1x4xf32, #tpu.memory_space<vmem>>) attributes {dimension_semantics = [#tpu.dimension_semantics<parallel>], iteration_bounds = array<i64: 2>, scalar_prefetch = 0 : i64, scratch_operands = 0 : i64, tpu.core_type = #tpu.core_type<tc>, window_params = [{transform_indices = @transform_0, window_bounds = array<i64: 1, 16, 16, 4>}, {transform_indices = @transform_1, window_bounds = array<i64: 1, 1, 4>}, {transform_indices = @transform_2, window_bounds = array<i64: 1, 1, 4>}]} {
    %c0 = arith.constant 0 : index
    %c0_0 = arith.constant 0 : index
    %c0_1 = arith.constant 0 : index
    %c0_2 = arith.constant 0 : index
    %0 = vector.load %arg1[%c0, %c0_0, %c0_1, %c0_2] : memref<1x16x16x4xf32, #tpu.memory_space<vmem>>, vector<1x16x16x4xf32>
    %1 = vector.shape_cast %0 : vector<1x16x16x4xf32> to vector<16x16x4xf32>
    %cst = arith.constant dense<0.000000e+00> : vector<16x4xf32>
    %2 = vector.multi_reduction <add>, %1, %cst [0] : vector<16x16x4xf32> to vector<16x4xf32>
    %3 = vector.shape_cast %2 : vector<16x4xf32> to vector<1x16x4xf32>
    %cst_3 = arith.constant dense<0.000000e+00> : vector<1x4xf32>
    %4 = vector.multi_reduction <add>, %3, %cst_3 [1] : vector<1x16x4xf32> to vector<1x4xf32>
    %5 = vector.shape_cast %4 : vector<1x4xf32> to vector<1x1x4xf32>
    %c0_4 = arith.constant 0 : index
    %c0_5 = arith.constant 0 : index
    %c0_6 = arith.constant 0 : index
    %6 = vector.load %arg2[%c0_4, %c0_5, %c0_6] : memref<1x1x4xf32, #tpu.memory_space<vmem>>, vector<1x1x4xf32>
    tpu.vector_store %arg2[%c0_4, %c0_5, %c0_6], %5 {strides = array<i32>} : memref<1x1x4xf32, #tpu.memory_space<vmem>>, vector<1x1x4xf32>,
    %7 = arith.mulf %1, %1 : vector<16x16x4xf32>
    %cst_7 = arith.constant dense<0.000000e+00> : vector<16x4xf32>
    %8 = vector.multi_reduction <add>, %7, %cst_7 [0] : vector<16x16x4xf32> to vector<16x4xf32>
    %9 = vector.shape_cast %8 : vector<16x4xf32> to vector<1x16x4xf32>
    %cst_8 = arith.constant dense<0.000000e+00> : vector<1x4xf32>
    %10 = vector.multi_reduction <add>, %9, %cst_8 [1] : vector<1x16x4xf32> to vector<1x4xf32>
    %11 = vector.shape_cast %10 : vector<1x4xf32> to vector<1x1x4xf32>
    %c0_9 = arith.constant 0 : index
    %c0_10 = arith.constant 0 : index
    %c0_11 = arith.constant 0 : index
    %12 = vector.load %arg3[%c0_9, %c0_10, %c0_11] : memref<1x1x4xf32, #tpu.memory_space<vmem>>, vector<1x1x4xf32>
    tpu.vector_store %arg3[%c0_9, %c0_10, %c0_11], %11 {strides = array<i32>} : memref<1x1x4xf32, #tpu.memory_space<vmem>>, vector<1x1x4xf32>,
    return
  }
  func.func @transform_0(%arg0: i32) -> (i32, i32, i32, i32) {
    %c0_i32 = arith.constant 0 : i32
    %c0_i32_0 = arith.constant 0 : i32
    %c0_i32_1 = arith.constant 0 : i32
    %c0_i32_2 = arith.constant 0 : i32
    return %arg0, %c0_i32, %c0_i32_0, %c0_i32_1 : i32, i32, i32, i32
  }
  func.func @transform_1(%arg0: i32) -> (i32, i32, i32) {
    %c0_i32 = arith.constant 0 : i32
    %c0_i32_0 = arith.constant 0 : i32
    %c0_i32_1 = arith.constant 0 : i32
    return %arg0, %c0_i32, %c0_i32_0 : i32, i32, i32
  }
  func.func @transform_2(%arg0: i32) -> (i32, i32, i32) {
    %c0_i32 = arith.constant 0 : i32
    %c0_i32_0 = arith.constant 0 : i32
    %c0_i32_1 = arith.constant 0 : i32
    return %arg0, %c0_i32, %c0_i32_0 : i32, i32, i32
  }
}

module attributes {stable_mosaic.version = 11 : i64} {
  func.func @_conv3x3_short_kernel(%arg0: i32, %arg1: memref<1x10x10x8xbf16, #tpu.memory_space<vmem>>, %arg2: memref<72x8xbf16, #tpu.memory_space<vmem>>, %arg3: memref<1x1x8xf32, #tpu.memory_space<vmem>>, %arg4: memref<1x1x8xf32, #tpu.memory_space<vmem>>, %arg5: memref<1x8x8x4xbf16, #tpu.memory_space<vmem>>, %arg6: memref<4x8xbf16, #tpu.memory_space<vmem>>, %arg7: memref<1x8x8x8xbf16, #tpu.memory_space<vmem>>, %arg8: memref<1x1x8xf32, #tpu.memory_space<vmem>>, %arg9: memref<1x1x8xf32, #tpu.memory_space<vmem>>) attributes {dimension_semantics = [#tpu.dimension_semantics<parallel>], iteration_bounds = array<i64: 2>, scalar_prefetch = 0 : i64, scratch_operands = 0 : i64, tpu.core_type = #tpu.core_type<tc>, window_params = [{transform_indices = @transform_0, window_bounds = array<i64: 1, 10, 10, 8>}, {pipeline_mode = #tpu.pipeline_mode<synchronous>, transform_indices = @transform_1, window_bounds = array<i64: 72, 8>}, {pipeline_mode = #tpu.pipeline_mode<synchronous>, transform_indices = @transform_2, window_bounds = array<i64: 1, 1, 8>}, {pipeline_mode = #tpu.pipeline_mode<synchronous>, transform_indices = @transform_3, window_bounds = array<i64: 1, 1, 8>}, {transform_indices = @transform_4, window_bounds = array<i64: 1, 8, 8, 4>}, {pipeline_mode = #tpu.pipeline_mode<synchronous>, transform_indices = @transform_5, window_bounds = array<i64: 4, 8>}, {transform_indices = @transform_6, window_bounds = array<i64: 1, 8, 8, 8>}, {transform_indices = @transform_7, window_bounds = array<i64: 1, 1, 8>}, {transform_indices = @transform_8, window_bounds = array<i64: 1, 1, 8>}]} {
    %c0 = arith.constant 0 : index
    %c0_0 = arith.constant 0 : index
    %c0_1 = arith.constant 0 : index
    %c0_2 = arith.constant 0 : index
    %0 = vector.load %arg1[%c0, %c0_0, %c0_1, %c0_2] : memref<1x10x10x8xbf16, #tpu.memory_space<vmem>>, vector<1x10x10x8xbf16>
    %1 = vector.shape_cast %0 : vector<1x10x10x8xbf16> to vector<10x10x8xbf16>
    %2 = arith.extf %1 : vector<10x10x8xbf16> to vector<10x10x8xf32>
    %c0_3 = arith.constant 0 : index
    %c0_4 = arith.constant 0 : index
    %c0_5 = arith.constant 0 : index
    %3 = vector.load %arg3[%c0_3, %c0_4, %c0_5] : memref<1x1x8xf32, #tpu.memory_space<vmem>>, vector<1x1x8xf32>
    %4 = vector.broadcast %3 : vector<1x1x8xf32> to vector<10x10x8xf32>
    %5 = arith.mulf %2, %4 : vector<10x10x8xf32>
    %c0_6 = arith.constant 0 : index
    %c0_7 = arith.constant 0 : index
    %c0_8 = arith.constant 0 : index
    %6 = vector.load %arg4[%c0_6, %c0_7, %c0_8] : memref<1x1x8xf32, #tpu.memory_space<vmem>>, vector<1x1x8xf32>
    %7 = vector.broadcast %6 : vector<1x1x8xf32> to vector<10x10x8xf32>
    %8 = arith.addf %5, %7 : vector<10x10x8xf32>
    %cst = arith.constant 0.000000e+00 : f32
    %9 = vector.broadcast %cst : f32 to vector<10x10x8xf32>
    %10 = arith.maximumf %8, %9 : vector<10x10x8xf32>
    %11 = tpu.iota {dimensions = array<i32: 0>} : vector<10x10x8xi32>
    %12 = tpu.iota {dimensions = array<i32: 1>} : vector<10x10x8xi32>
    %c1_i32 = arith.constant 1 : i32
    %13 = vector.broadcast %c1_i32 : i32 to vector<10x10x8xi32>
    %14 = arith.cmpi sge, %11, %13 : vector<10x10x8xi32>
    %c9_i32 = arith.constant 9 : i32
    %15 = vector.broadcast %c9_i32 : i32 to vector<10x10x8xi32>
    %16 = arith.cmpi slt, %11, %15 : vector<10x10x8xi32>
    %17 = arith.andi %14, %16 : vector<10x10x8xi1>
    %c1_i32_9 = arith.constant 1 : i32
    %18 = vector.broadcast %c1_i32_9 : i32 to vector<10x10x8xi32>
    %19 = arith.cmpi sge, %12, %18 : vector<10x10x8xi32>
    %20 = arith.andi %17, %19 : vector<10x10x8xi1>
    %c9_i32_10 = arith.constant 9 : i32
    %21 = vector.broadcast %c9_i32_10 : i32 to vector<10x10x8xi32>
    %22 = arith.cmpi slt, %12, %21 : vector<10x10x8xi32>
    %23 = arith.andi %20, %22 : vector<10x10x8xi1>
    %cst_11 = arith.constant 0.000000e+00 : f32
    %24 = vector.broadcast %cst_11 : f32 to vector<10x10x8xf32>
    %25 = arith.select %23, %10, %24 : vector<10x10x8xi1>, vector<10x10x8xf32>
    %26 = arith.truncf %25 : vector<10x10x8xf32> to vector<10x10x8xbf16>
    %27 = vector.extract_strided_slice %26 {offsets = [0, 0, 0], sizes = [8, 8, 8], strides = [1, 1, 1]} : vector<10x10x8xbf16> to vector<8x8x8xbf16>
    %28 = vector.extract_strided_slice %26 {offsets = [0, 1, 0], sizes = [8, 8, 8], strides = [1, 1, 1]} : vector<10x10x8xbf16> to vector<8x8x8xbf16>
    %29 = vector.extract_strided_slice %26 {offsets = [0, 2, 0], sizes = [8, 8, 8], strides = [1, 1, 1]} : vector<10x10x8xbf16> to vector<8x8x8xbf16>
    %30 = vector.extract_strided_slice %26 {offsets = [1, 0, 0], sizes = [8, 8, 8], strides = [1, 1, 1]} : vector<10x10x8xbf16> to vector<8x8x8xbf16>
    %31 = vector.extract_strided_slice %26 {offsets = [1, 1, 0], sizes = [8, 8, 8], strides = [1, 1, 1]} : vector<10x10x8xbf16> to vector<8x8x8xbf16>
    %32 = vector.extract_strided_slice %26 {offsets = [1, 2, 0], sizes = [8, 8, 8], strides = [1, 1, 1]} : vector<10x10x8xbf16> to vector<8x8x8xbf16>
    %33 = vector.extract_strided_slice %26 {offsets = [2, 0, 0], sizes = [8, 8, 8], strides = [1, 1, 1]} : vector<10x10x8xbf16> to vector<8x8x8xbf16>
    %34 = vector.extract_strided_slice %26 {offsets = [2, 1, 0], sizes = [8, 8, 8], strides = [1, 1, 1]} : vector<10x10x8xbf16> to vector<8x8x8xbf16>
    %35 = vector.extract_strided_slice %26 {offsets = [2, 2, 0], sizes = [8, 8, 8], strides = [1, 1, 1]} : vector<10x10x8xbf16> to vector<8x8x8xbf16>
    %36 = tpu.concatenate %27, %28, %29, %30, %31, %32, %33, %34, %35 in 2 : vector<8x8x8xbf16>, vector<8x8x8xbf16>, vector<8x8x8xbf16>, vector<8x8x8xbf16>, vector<8x8x8xbf16>, vector<8x8x8xbf16>, vector<8x8x8xbf16>, vector<8x8x8xbf16>, vector<8x8x8xbf16> -> vector<8x8x72xbf16>
    %37 = vector.shape_cast %36 : vector<8x8x72xbf16> to vector<64x72xbf16>
    %c0_12 = arith.constant 0 : index
    %c0_13 = arith.constant 0 : index
    %38 = vector.load %arg2[%c0_12, %c0_13] : memref<72x8xbf16, #tpu.memory_space<vmem>>, vector<72x8xbf16>
    %cst_14 = arith.constant dense<0.000000e+00> : vector<64x8xf32>
    %39 = tpu.matmul %37, %38, %cst_14 {dimension_numbers = #tpu.dot_dimension_numbers<[1], [0], [0], [1], [0, 0, 1, 1], [], []>} : vector<64x72xbf16>, vector<72x8xbf16>, vector<64x8xf32> -> vector<64x8xf32>
    %c0_15 = arith.constant 0 : index
    %c0_16 = arith.constant 0 : index
    %c0_17 = arith.constant 0 : index
    %c0_18 = arith.constant 0 : index
    %40 = vector.load %arg5[%c0_15, %c0_16, %c0_17, %c0_18] : memref<1x8x8x4xbf16, #tpu.memory_space<vmem>>, vector<1x8x8x4xbf16>
    %41 = vector.shape_cast %40 : vector<1x8x8x4xbf16> to vector<8x8x4xbf16>
    %42 = vector.shape_cast %41 : vector<8x8x4xbf16> to vector<64x4xbf16>
    %c0_19 = arith.constant 0 : index
    %c0_20 = arith.constant 0 : index
    %43 = vector.load %arg6[%c0_19, %c0_20] : memref<4x8xbf16, #tpu.memory_space<vmem>>, vector<4x8xbf16>
    %cst_21 = arith.constant dense<0.000000e+00> : vector<64x8xf32>
    %44 = tpu.matmul %42, %43, %cst_21 {dimension_numbers = #tpu.dot_dimension_numbers<[1], [0], [0], [1], [0, 0, 1, 1], [], []>} : vector<64x4xbf16>, vector<4x8xbf16>, vector<64x8xf32> -> vector<64x8xf32>
    %45 = arith.addf %39, %44 : vector<64x8xf32>
    %46 = vector.shape_cast %45 : vector<64x8xf32> to vector<8x8x8xf32>
    %47 = arith.truncf %46 : vector<8x8x8xf32> to vector<8x8x8xbf16>
    %c0_22 = arith.constant 0 : index
    %c0_23 = arith.constant 0 : index
    %c0_24 = arith.constant 0 : index
    %c0_25 = arith.constant 0 : index
    %48 = vector.load %arg7[%c0_22, %c0_23, %c0_24, %c0_25] : memref<1x8x8x8xbf16, #tpu.memory_space<vmem>>, vector<1x8x8x8xbf16>
    %49 = vector.shape_cast %48 : vector<1x8x8x8xbf16> to vector<8x8x8xbf16>
    %50 = vector.shape_cast %47 : vector<8x8x8xbf16> to vector<1x8x8x8xbf16>
    tpu.vector_store %arg7[%c0_22, %c0_23, %c0_24, %c0_25], %50 {strides = array<i32>} : memref<1x8x8x8xbf16, #tpu.memory_space<vmem>>, vector<1x8x8x8xbf16>,
    %cst_26 = arith.constant dense<0.000000e+00> : vector<8xf32>
    %51 = vector.multi_reduction <add>, %45, %cst_26 [0] : vector<64x8xf32> to vector<8xf32>
    %52 = vector.shape_cast %51 : vector<8xf32> to vector<1x8xf32>
    %53 = vector.shape_cast %52 : vector<1x8xf32> to vector<1x1x8xf32>
    %c0_27 = arith.constant 0 : index
    %c0_28 = arith.constant 0 : index
    %c0_29 = arith.constant 0 : index
    %54 = vector.load %arg8[%c0_27, %c0_28, %c0_29] : memref<1x1x8xf32, #tpu.memory_space<vmem>>, vector<1x1x8xf32>
    tpu.vector_store %arg8[%c0_27, %c0_28, %c0_29], %53 {strides = array<i32>} : memref<1x1x8xf32, #tpu.memory_space<vmem>>, vector<1x1x8xf32>,
    %55 = arith.mulf %45, %45 : vector<64x8xf32>
    %cst_30 = arith.constant dense<0.000000e+00> : vector<8xf32>
    %56 = vector.multi_reduction <add>, %55, %cst_30 [0] : vector<64x8xf32> to vector<8xf32>
    %57 = vector.shape_cast %56 : vector<8xf32> to vector<1x8xf32>
    %58 = vector.shape_cast %57 : vector<1x8xf32> to vector<1x1x8xf32>
    %c0_31 = arith.constant 0 : index
    %c0_32 = arith.constant 0 : index
    %c0_33 = arith.constant 0 : index
    %59 = vector.load %arg9[%c0_31, %c0_32, %c0_33] : memref<1x1x8xf32, #tpu.memory_space<vmem>>, vector<1x1x8xf32>
    tpu.vector_store %arg9[%c0_31, %c0_32, %c0_33], %58 {strides = array<i32>} : memref<1x1x8xf32, #tpu.memory_space<vmem>>, vector<1x1x8xf32>,
    return
  }
  func.func @transform_0(%arg0: i32) -> (i32, i32, i32, i32) {
    %c0_i32 = arith.constant 0 : i32
    %c0_i32_0 = arith.constant 0 : i32
    %c0_i32_1 = arith.constant 0 : i32
    %c0_i32_2 = arith.constant 0 : i32
    return %arg0, %c0_i32, %c0_i32_0, %c0_i32_1 : i32, i32, i32, i32
  }
  func.func @transform_1(%arg0: i32) -> (i32, i32) {
    %c0_i32 = arith.constant 0 : i32
    %c0_i32_0 = arith.constant 0 : i32
    %c0_i32_1 = arith.constant 0 : i32
    return %c0_i32, %c0_i32_0 : i32, i32
  }
  func.func @transform_2(%arg0: i32) -> (i32, i32, i32) {
    %c0_i32 = arith.constant 0 : i32
    %c0_i32_0 = arith.constant 0 : i32
    %c0_i32_1 = arith.constant 0 : i32
    %c0_i32_2 = arith.constant 0 : i32
    return %c0_i32, %c0_i32_0, %c0_i32_1 : i32, i32, i32
  }
  func.func @transform_3(%arg0: i32) -> (i32, i32, i32) {
    %c0_i32 = arith.constant 0 : i32
    %c0_i32_0 = arith.constant 0 : i32
    %c0_i32_1 = arith.constant 0 : i32
    %c0_i32_2 = arith.constant 0 : i32
    return %c0_i32, %c0_i32_0, %c0_i32_1 : i32, i32, i32
  }
  func.func @transform_4(%arg0: i32) -> (i32, i32, i32, i32) {
    %c0_i32 = arith.constant 0 : i32
    %c0_i32_0 = arith.constant 0 : i32
    %c0_i32_1 = arith.constant 0 : i32
    %c0_i32_2 = arith.constant 0 : i32
    return %arg0, %c0_i32, %c0_i32_0, %c0_i32_1 : i32, i32, i32, i32
  }
  func.func @transform_5(%arg0: i32) -> (i32, i32) {
    %c0_i32 = arith.constant 0 : i32
    %c0_i32_0 = arith.constant 0 : i32
    %c0_i32_1 = arith.constant 0 : i32
    return %c0_i32, %c0_i32_0 : i32, i32
  }
  func.func @transform_6(%arg0: i32) -> (i32, i32, i32, i32) {
    %c0_i32 = arith.constant 0 : i32
    %c0_i32_0 = arith.constant 0 : i32
    %c0_i32_1 = arith.constant 0 : i32
    %c0_i32_2 = arith.constant 0 : i32
    return %arg0, %c0_i32, %c0_i32_0, %c0_i32_1 : i32, i32, i32, i32
  }
  func.func @transform_7(%arg0: i32) -> (i32, i32, i32) {
    %c0_i32 = arith.constant 0 : i32
    %c0_i32_0 = arith.constant 0 : i32
    %c0_i32_1 = arith.constant 0 : i32
    return %arg0, %c0_i32, %c0_i32_0 : i32, i32, i32
  }
  func.func @transform_8(%arg0: i32) -> (i32, i32, i32) {
    %c0_i32 = arith.constant 0 : i32
    %c0_i32_0 = arith.constant 0 : i32
    %c0_i32_1 = arith.constant 0 : i32
    return %arg0, %c0_i32, %c0_i32_0 : i32, i32, i32
  }
}

module attributes {stable_mosaic.version = 11 : i64} {
  func.func @_matmul_stats_kernel(%arg0: i32, %arg1: memref<1x64x36xbf16, #tpu.memory_space<vmem>>, %arg2: memref<36x8xbf16, #tpu.memory_space<vmem>>, %arg3: memref<1x8x8x8xbf16, #tpu.memory_space<vmem>>, %arg4: memref<1x1x8xf32, #tpu.memory_space<vmem>>, %arg5: memref<1x1x8xf32, #tpu.memory_space<vmem>>) attributes {dimension_semantics = [#tpu.dimension_semantics<parallel>], iteration_bounds = array<i64: 2>, scalar_prefetch = 0 : i64, scratch_operands = 0 : i64, tpu.core_type = #tpu.core_type<tc>, window_params = [{transform_indices = @transform_0, window_bounds = array<i64: 1, 64, 36>}, {pipeline_mode = #tpu.pipeline_mode<synchronous>, transform_indices = @transform_1, window_bounds = array<i64: 36, 8>}, {transform_indices = @transform_2, window_bounds = array<i64: 1, 8, 8, 8>}, {transform_indices = @transform_3, window_bounds = array<i64: 1, 1, 8>}, {transform_indices = @transform_4, window_bounds = array<i64: 1, 1, 8>}]} {
    %c0 = arith.constant 0 : index
    %c0_0 = arith.constant 0 : index
    %c0_1 = arith.constant 0 : index
    %0 = vector.load %arg1[%c0, %c0_0, %c0_1] : memref<1x64x36xbf16, #tpu.memory_space<vmem>>, vector<1x64x36xbf16>
    %1 = vector.shape_cast %0 : vector<1x64x36xbf16> to vector<64x36xbf16>
    %c0_2 = arith.constant 0 : index
    %c0_3 = arith.constant 0 : index
    %2 = vector.load %arg2[%c0_2, %c0_3] : memref<36x8xbf16, #tpu.memory_space<vmem>>, vector<36x8xbf16>
    %cst = arith.constant dense<0.000000e+00> : vector<64x8xf32>
    %3 = tpu.matmul %1, %2, %cst {dimension_numbers = #tpu.dot_dimension_numbers<[1], [0], [0], [1], [0, 0, 1, 1], [], []>} : vector<64x36xbf16>, vector<36x8xbf16>, vector<64x8xf32> -> vector<64x8xf32>
    %4 = vector.shape_cast %3 : vector<64x8xf32> to vector<8x8x8xf32>
    %5 = arith.truncf %4 : vector<8x8x8xf32> to vector<8x8x8xbf16>
    %c0_4 = arith.constant 0 : index
    %c0_5 = arith.constant 0 : index
    %c0_6 = arith.constant 0 : index
    %c0_7 = arith.constant 0 : index
    %6 = vector.load %arg3[%c0_4, %c0_5, %c0_6, %c0_7] : memref<1x8x8x8xbf16, #tpu.memory_space<vmem>>, vector<1x8x8x8xbf16>
    %7 = vector.shape_cast %6 : vector<1x8x8x8xbf16> to vector<8x8x8xbf16>
    %8 = vector.shape_cast %5 : vector<8x8x8xbf16> to vector<1x8x8x8xbf16>
    tpu.vector_store %arg3[%c0_4, %c0_5, %c0_6, %c0_7], %8 {strides = array<i32>} : memref<1x8x8x8xbf16, #tpu.memory_space<vmem>>, vector<1x8x8x8xbf16>,
    %cst_8 = arith.constant dense<0.000000e+00> : vector<8xf32>
    %9 = vector.multi_reduction <add>, %3, %cst_8 [0] : vector<64x8xf32> to vector<8xf32>
    %10 = vector.shape_cast %9 : vector<8xf32> to vector<1x8xf32>
    %11 = vector.shape_cast %10 : vector<1x8xf32> to vector<1x1x8xf32>
    %c0_9 = arith.constant 0 : index
    %c0_10 = arith.constant 0 : index
    %c0_11 = arith.constant 0 : index
    %12 = vector.load %arg4[%c0_9, %c0_10, %c0_11] : memref<1x1x8xf32, #tpu.memory_space<vmem>>, vector<1x1x8xf32>
    tpu.vector_store %arg4[%c0_9, %c0_10, %c0_11], %11 {strides = array<i32>} : memref<1x1x8xf32, #tpu.memory_space<vmem>>, vector<1x1x8xf32>,
    %13 = arith.mulf %3, %3 : vector<64x8xf32>
    %cst_12 = arith.constant dense<0.000000e+00> : vector<8xf32>
    %14 = vector.multi_reduction <add>, %13, %cst_12 [0] : vector<64x8xf32> to vector<8xf32>
    %15 = vector.shape_cast %14 : vector<8xf32> to vector<1x8xf32>
    %16 = vector.shape_cast %15 : vector<1x8xf32> to vector<1x1x8xf32>
    %c0_13 = arith.constant 0 : index
    %c0_14 = arith.constant 0 : index
    %c0_15 = arith.constant 0 : index
    %17 = vector.load %arg5[%c0_13, %c0_14, %c0_15] : memref<1x1x8xf32, #tpu.memory_space<vmem>>, vector<1x1x8xf32>
    tpu.vector_store %arg5[%c0_13, %c0_14, %c0_15], %16 {strides = array<i32>} : memref<1x1x8xf32, #tpu.memory_space<vmem>>, vector<1x1x8xf32>,
    return
  }
  func.func @transform_0(%arg0: i32) -> (i32, i32, i32) {
    %c0_i32 = arith.constant 0 : i32
    %c0_i32_0 = arith.constant 0 : i32
    %c0_i32_1 = arith.constant 0 : i32
    return %arg0, %c0_i32, %c0_i32_0 : i32, i32, i32
  }
  func.func @transform_1(%arg0: i32) -> (i32, i32) {
    %c0_i32 = arith.constant 0 : i32
    %c0_i32_0 = arith.constant 0 : i32
    %c0_i32_1 = arith.constant 0 : i32
    return %c0_i32, %c0_i32_0 : i32, i32
  }
  func.func @transform_2(%arg0: i32) -> (i32, i32, i32, i32) {
    %c0_i32 = arith.constant 0 : i32
    %c0_i32_0 = arith.constant 0 : i32
    %c0_i32_1 = arith.constant 0 : i32
    %c0_i32_2 = arith.constant 0 : i32
    return %arg0, %c0_i32, %c0_i32_0, %c0_i32_1 : i32, i32, i32, i32
  }
  func.func @transform_3(%arg0: i32) -> (i32, i32, i32) {
    %c0_i32 = arith.constant 0 : i32
    %c0_i32_0 = arith.constant 0 : i32
    %c0_i32_1 = arith.constant 0 : i32
    return %arg0, %c0_i32, %c0_i32_0 : i32, i32, i32
  }
  func.func @transform_4(%arg0: i32) -> (i32, i32, i32) {
    %c0_i32 = arith.constant 0 : i32
    %c0_i32_0 = arith.constant 0 : i32
    %c0_i32_1 = arith.constant 0 : i32
    return %arg0, %c0_i32, %c0_i32_0 : i32, i32, i32
  }
}

module attributes {stable_mosaic.version = 11 : i64} {
  func.func @_conv3x3_kernel(%arg0: i32, %arg1: memref<1x10x10x8xbf16, #tpu.memory_space<vmem>>, %arg2: memref<72x8xbf16, #tpu.memory_space<vmem>>, %arg3: memref<1x1x8xf32, #tpu.memory_space<vmem>>, %arg4: memref<1x1x8xf32, #tpu.memory_space<vmem>>, %arg5: memref<1x8x8x8xbf16, #tpu.memory_space<vmem>>, %arg6: memref<1x1x8xf32, #tpu.memory_space<vmem>>, %arg7: memref<1x1x8xf32, #tpu.memory_space<vmem>>) attributes {dimension_semantics = [#tpu.dimension_semantics<parallel>], iteration_bounds = array<i64: 2>, scalar_prefetch = 0 : i64, scratch_operands = 0 : i64, tpu.core_type = #tpu.core_type<tc>, window_params = [{transform_indices = @transform_0, window_bounds = array<i64: 1, 10, 10, 8>}, {pipeline_mode = #tpu.pipeline_mode<synchronous>, transform_indices = @transform_1, window_bounds = array<i64: 72, 8>}, {pipeline_mode = #tpu.pipeline_mode<synchronous>, transform_indices = @transform_2, window_bounds = array<i64: 1, 1, 8>}, {pipeline_mode = #tpu.pipeline_mode<synchronous>, transform_indices = @transform_3, window_bounds = array<i64: 1, 1, 8>}, {transform_indices = @transform_4, window_bounds = array<i64: 1, 8, 8, 8>}, {transform_indices = @transform_5, window_bounds = array<i64: 1, 1, 8>}, {transform_indices = @transform_6, window_bounds = array<i64: 1, 1, 8>}]} {
    %c0 = arith.constant 0 : index
    %c0_0 = arith.constant 0 : index
    %c0_1 = arith.constant 0 : index
    %c0_2 = arith.constant 0 : index
    %0 = vector.load %arg1[%c0, %c0_0, %c0_1, %c0_2] : memref<1x10x10x8xbf16, #tpu.memory_space<vmem>>, vector<1x10x10x8xbf16>
    %1 = vector.shape_cast %0 : vector<1x10x10x8xbf16> to vector<10x10x8xbf16>
    %2 = arith.extf %1 : vector<10x10x8xbf16> to vector<10x10x8xf32>
    %c0_3 = arith.constant 0 : index
    %c0_4 = arith.constant 0 : index
    %c0_5 = arith.constant 0 : index
    %3 = vector.load %arg3[%c0_3, %c0_4, %c0_5] : memref<1x1x8xf32, #tpu.memory_space<vmem>>, vector<1x1x8xf32>
    %4 = vector.broadcast %3 : vector<1x1x8xf32> to vector<10x10x8xf32>
    %5 = arith.mulf %2, %4 : vector<10x10x8xf32>
    %c0_6 = arith.constant 0 : index
    %c0_7 = arith.constant 0 : index
    %c0_8 = arith.constant 0 : index
    %6 = vector.load %arg4[%c0_6, %c0_7, %c0_8] : memref<1x1x8xf32, #tpu.memory_space<vmem>>, vector<1x1x8xf32>
    %7 = vector.broadcast %6 : vector<1x1x8xf32> to vector<10x10x8xf32>
    %8 = arith.addf %5, %7 : vector<10x10x8xf32>
    %cst = arith.constant 0.000000e+00 : f32
    %9 = vector.broadcast %cst : f32 to vector<10x10x8xf32>
    %10 = arith.maximumf %8, %9 : vector<10x10x8xf32>
    %11 = tpu.iota {dimensions = array<i32: 0>} : vector<10x10x8xi32>
    %12 = tpu.iota {dimensions = array<i32: 1>} : vector<10x10x8xi32>
    %c1_i32 = arith.constant 1 : i32
    %13 = vector.broadcast %c1_i32 : i32 to vector<10x10x8xi32>
    %14 = arith.cmpi sge, %11, %13 : vector<10x10x8xi32>
    %c9_i32 = arith.constant 9 : i32
    %15 = vector.broadcast %c9_i32 : i32 to vector<10x10x8xi32>
    %16 = arith.cmpi slt, %11, %15 : vector<10x10x8xi32>
    %17 = arith.andi %14, %16 : vector<10x10x8xi1>
    %c1_i32_9 = arith.constant 1 : i32
    %18 = vector.broadcast %c1_i32_9 : i32 to vector<10x10x8xi32>
    %19 = arith.cmpi sge, %12, %18 : vector<10x10x8xi32>
    %20 = arith.andi %17, %19 : vector<10x10x8xi1>
    %c9_i32_10 = arith.constant 9 : i32
    %21 = vector.broadcast %c9_i32_10 : i32 to vector<10x10x8xi32>
    %22 = arith.cmpi slt, %12, %21 : vector<10x10x8xi32>
    %23 = arith.andi %20, %22 : vector<10x10x8xi1>
    %cst_11 = arith.constant 0.000000e+00 : f32
    %24 = vector.broadcast %cst_11 : f32 to vector<10x10x8xf32>
    %25 = arith.select %23, %10, %24 : vector<10x10x8xi1>, vector<10x10x8xf32>
    %26 = arith.truncf %25 : vector<10x10x8xf32> to vector<10x10x8xbf16>
    %27 = vector.extract_strided_slice %26 {offsets = [0, 0, 0], sizes = [8, 8, 8], strides = [1, 1, 1]} : vector<10x10x8xbf16> to vector<8x8x8xbf16>
    %28 = vector.extract_strided_slice %26 {offsets = [0, 1, 0], sizes = [8, 8, 8], strides = [1, 1, 1]} : vector<10x10x8xbf16> to vector<8x8x8xbf16>
    %29 = vector.extract_strided_slice %26 {offsets = [0, 2, 0], sizes = [8, 8, 8], strides = [1, 1, 1]} : vector<10x10x8xbf16> to vector<8x8x8xbf16>
    %30 = vector.extract_strided_slice %26 {offsets = [1, 0, 0], sizes = [8, 8, 8], strides = [1, 1, 1]} : vector<10x10x8xbf16> to vector<8x8x8xbf16>
    %31 = vector.extract_strided_slice %26 {offsets = [1, 1, 0], sizes = [8, 8, 8], strides = [1, 1, 1]} : vector<10x10x8xbf16> to vector<8x8x8xbf16>
    %32 = vector.extract_strided_slice %26 {offsets = [1, 2, 0], sizes = [8, 8, 8], strides = [1, 1, 1]} : vector<10x10x8xbf16> to vector<8x8x8xbf16>
    %33 = vector.extract_strided_slice %26 {offsets = [2, 0, 0], sizes = [8, 8, 8], strides = [1, 1, 1]} : vector<10x10x8xbf16> to vector<8x8x8xbf16>
    %34 = vector.extract_strided_slice %26 {offsets = [2, 1, 0], sizes = [8, 8, 8], strides = [1, 1, 1]} : vector<10x10x8xbf16> to vector<8x8x8xbf16>
    %35 = vector.extract_strided_slice %26 {offsets = [2, 2, 0], sizes = [8, 8, 8], strides = [1, 1, 1]} : vector<10x10x8xbf16> to vector<8x8x8xbf16>
    %36 = tpu.concatenate %27, %28, %29, %30, %31, %32, %33, %34, %35 in 2 : vector<8x8x8xbf16>, vector<8x8x8xbf16>, vector<8x8x8xbf16>, vector<8x8x8xbf16>, vector<8x8x8xbf16>, vector<8x8x8xbf16>, vector<8x8x8xbf16>, vector<8x8x8xbf16>, vector<8x8x8xbf16> -> vector<8x8x72xbf16>
    %37 = vector.shape_cast %36 : vector<8x8x72xbf16> to vector<64x72xbf16>
    %c0_12 = arith.constant 0 : index
    %c0_13 = arith.constant 0 : index
    %38 = vector.load %arg2[%c0_12, %c0_13] : memref<72x8xbf16, #tpu.memory_space<vmem>>, vector<72x8xbf16>
    %cst_14 = arith.constant dense<0.000000e+00> : vector<64x8xf32>
    %39 = tpu.matmul %37, %38, %cst_14 {dimension_numbers = #tpu.dot_dimension_numbers<[1], [0], [0], [1], [0, 0, 1, 1], [], []>} : vector<64x72xbf16>, vector<72x8xbf16>, vector<64x8xf32> -> vector<64x8xf32>
    %40 = vector.shape_cast %39 : vector<64x8xf32> to vector<8x8x8xf32>
    %41 = arith.truncf %40 : vector<8x8x8xf32> to vector<8x8x8xbf16>
    %c0_15 = arith.constant 0 : index
    %c0_16 = arith.constant 0 : index
    %c0_17 = arith.constant 0 : index
    %c0_18 = arith.constant 0 : index
    %42 = vector.load %arg5[%c0_15, %c0_16, %c0_17, %c0_18] : memref<1x8x8x8xbf16, #tpu.memory_space<vmem>>, vector<1x8x8x8xbf16>
    %43 = vector.shape_cast %42 : vector<1x8x8x8xbf16> to vector<8x8x8xbf16>
    %44 = vector.shape_cast %41 : vector<8x8x8xbf16> to vector<1x8x8x8xbf16>
    tpu.vector_store %arg5[%c0_15, %c0_16, %c0_17, %c0_18], %44 {strides = array<i32>} : memref<1x8x8x8xbf16, #tpu.memory_space<vmem>>, vector<1x8x8x8xbf16>,
    %cst_19 = arith.constant dense<0.000000e+00> : vector<8xf32>
    %45 = vector.multi_reduction <add>, %39, %cst_19 [0] : vector<64x8xf32> to vector<8xf32>
    %46 = vector.shape_cast %45 : vector<8xf32> to vector<1x8xf32>
    %47 = vector.shape_cast %46 : vector<1x8xf32> to vector<1x1x8xf32>
    %c0_20 = arith.constant 0 : index
    %c0_21 = arith.constant 0 : index
    %c0_22 = arith.constant 0 : index
    %48 = vector.load %arg6[%c0_20, %c0_21, %c0_22] : memref<1x1x8xf32, #tpu.memory_space<vmem>>, vector<1x1x8xf32>
    tpu.vector_store %arg6[%c0_20, %c0_21, %c0_22], %47 {strides = array<i32>} : memref<1x1x8xf32, #tpu.memory_space<vmem>>, vector<1x1x8xf32>,
    %49 = arith.mulf %39, %39 : vector<64x8xf32>
    %cst_23 = arith.constant dense<0.000000e+00> : vector<8xf32>
    %50 = vector.multi_reduction <add>, %49, %cst_23 [0] : vector<64x8xf32> to vector<8xf32>
    %51 = vector.shape_cast %50 : vector<8xf32> to vector<1x8xf32>
    %52 = vector.shape_cast %51 : vector<1x8xf32> to vector<1x1x8xf32>
    %c0_24 = arith.constant 0 : index
    %c0_25 = arith.constant 0 : index
    %c0_26 = arith.constant 0 : index
    %53 = vector.load %arg7[%c0_24, %c0_25, %c0_26] : memref<1x1x8xf32, #tpu.memory_space<vmem>>, vector<1x1x8xf32>
    tpu.vector_store %arg7[%c0_24, %c0_25, %c0_26], %52 {strides = array<i32>} : memref<1x1x8xf32, #tpu.memory_space<vmem>>, vector<1x1x8xf32>,
    return
  }
  func.func @transform_0(%arg0: i32) -> (i32, i32, i32, i32) {
    %c0_i32 = arith.constant 0 : i32
    %c0_i32_0 = arith.constant 0 : i32
    %c0_i32_1 = arith.constant 0 : i32
    %c0_i32_2 = arith.constant 0 : i32
    return %arg0, %c0_i32, %c0_i32_0, %c0_i32_1 : i32, i32, i32, i32
  }
  func.func @transform_1(%arg0: i32) -> (i32, i32) {
    %c0_i32 = arith.constant 0 : i32
    %c0_i32_0 = arith.constant 0 : i32
    %c0_i32_1 = arith.constant 0 : i32
    return %c0_i32, %c0_i32_0 : i32, i32
  }
  func.func @transform_2(%arg0: i32) -> (i32, i32, i32) {
    %c0_i32 = arith.constant 0 : i32
    %c0_i32_0 = arith.constant 0 : i32
    %c0_i32_1 = arith.constant 0 : i32
    %c0_i32_2 = arith.constant 0 : i32
    return %c0_i32, %c0_i32_0, %c0_i32_1 : i32, i32, i32
  }
  func.func @transform_3(%arg0: i32) -> (i32, i32, i32) {
    %c0_i32 = arith.constant 0 : i32
    %c0_i32_0 = arith.constant 0 : i32
    %c0_i32_1 = arith.constant 0 : i32
    %c0_i32_2 = arith.constant 0 : i32
    return %c0_i32, %c0_i32_0, %c0_i32_1 : i32, i32, i32
  }
  func.func @transform_4(%arg0: i32) -> (i32, i32, i32, i32) {
    %c0_i32 = arith.constant 0 : i32
    %c0_i32_0 = arith.constant 0 : i32
    %c0_i32_1 = arith.constant 0 : i32
    %c0_i32_2 = arith.constant 0 : i32
    return %arg0, %c0_i32, %c0_i32_0, %c0_i32_1 : i32, i32, i32, i32
  }
  func.func @transform_5(%arg0: i32) -> (i32, i32, i32) {
    %c0_i32 = arith.constant 0 : i32
    %c0_i32_0 = arith.constant 0 : i32
    %c0_i32_1 = arith.constant 0 : i32
    return %arg0, %c0_i32, %c0_i32_0 : i32, i32, i32
  }
  func.func @transform_6(%arg0: i32) -> (i32, i32, i32) {
    %c0_i32 = arith.constant 0 : i32
    %c0_i32_0 = arith.constant 0 : i32
    %c0_i32_1 = arith.constant 0 : i32
    return %arg0, %c0_i32, %c0_i32_0 : i32, i32, i32
  }
}

module attributes {stable_mosaic.version = 11 : i64} {
  func.func @_conv3x3_res_kernel(%arg0: i32, %arg1: memref<1x10x10x8xbf16, #tpu.memory_space<vmem>>, %arg2: memref<72x8xbf16, #tpu.memory_space<vmem>>, %arg3: memref<1x1x8xf32, #tpu.memory_space<vmem>>, %arg4: memref<1x1x8xf32, #tpu.memory_space<vmem>>, %arg5: memref<1x8x8x8xbf16, #tpu.memory_space<vmem>>, %arg6: memref<1x8x8x8xf32, #tpu.memory_space<vmem>>, %arg7: memref<1x1x8xf32, #tpu.memory_space<vmem>>, %arg8: memref<1x1x8xf32, #tpu.memory_space<vmem>>) attributes {dimension_semantics = [#tpu.dimension_semantics<parallel>], iteration_bounds = array<i64: 2>, scalar_prefetch = 0 : i64, scratch_operands = 0 : i64, tpu.core_type = #tpu.core_type<tc>, window_params = [{transform_indices = @transform_0, window_bounds = array<i64: 1, 10, 10, 8>}, {pipeline_mode = #tpu.pipeline_mode<synchronous>, transform_indices = @transform_1, window_bounds = array<i64: 72, 8>}, {pipeline_mode = #tpu.pipeline_mode<synchronous>, transform_indices = @transform_2, window_bounds = array<i64: 1, 1, 8>}, {pipeline_mode = #tpu.pipeline_mode<synchronous>, transform_indices = @transform_3, window_bounds = array<i64: 1, 1, 8>}, {transform_indices = @transform_4, window_bounds = array<i64: 1, 8, 8, 8>}, {transform_indices = @transform_5, window_bounds = array<i64: 1, 8, 8, 8>}, {transform_indices = @transform_6, window_bounds = array<i64: 1, 1, 8>}, {transform_indices = @transform_7, window_bounds = array<i64: 1, 1, 8>}]} {
    %c0 = arith.constant 0 : index
    %c0_0 = arith.constant 0 : index
    %c0_1 = arith.constant 0 : index
    %c0_2 = arith.constant 0 : index
    %0 = vector.load %arg1[%c0, %c0_0, %c0_1, %c0_2] : memref<1x10x10x8xbf16, #tpu.memory_space<vmem>>, vector<1x10x10x8xbf16>
    %1 = vector.shape_cast %0 : vector<1x10x10x8xbf16> to vector<10x10x8xbf16>
    %2 = arith.extf %1 : vector<10x10x8xbf16> to vector<10x10x8xf32>
    %c0_3 = arith.constant 0 : index
    %c0_4 = arith.constant 0 : index
    %c0_5 = arith.constant 0 : index
    %3 = vector.load %arg3[%c0_3, %c0_4, %c0_5] : memref<1x1x8xf32, #tpu.memory_space<vmem>>, vector<1x1x8xf32>
    %4 = vector.broadcast %3 : vector<1x1x8xf32> to vector<10x10x8xf32>
    %5 = arith.mulf %2, %4 : vector<10x10x8xf32>
    %c0_6 = arith.constant 0 : index
    %c0_7 = arith.constant 0 : index
    %c0_8 = arith.constant 0 : index
    %6 = vector.load %arg4[%c0_6, %c0_7, %c0_8] : memref<1x1x8xf32, #tpu.memory_space<vmem>>, vector<1x1x8xf32>
    %7 = vector.broadcast %6 : vector<1x1x8xf32> to vector<10x10x8xf32>
    %8 = arith.addf %5, %7 : vector<10x10x8xf32>
    %cst = arith.constant 0.000000e+00 : f32
    %9 = vector.broadcast %cst : f32 to vector<10x10x8xf32>
    %10 = arith.maximumf %8, %9 : vector<10x10x8xf32>
    %11 = tpu.iota {dimensions = array<i32: 0>} : vector<10x10x8xi32>
    %12 = tpu.iota {dimensions = array<i32: 1>} : vector<10x10x8xi32>
    %c1_i32 = arith.constant 1 : i32
    %13 = vector.broadcast %c1_i32 : i32 to vector<10x10x8xi32>
    %14 = arith.cmpi sge, %11, %13 : vector<10x10x8xi32>
    %c9_i32 = arith.constant 9 : i32
    %15 = vector.broadcast %c9_i32 : i32 to vector<10x10x8xi32>
    %16 = arith.cmpi slt, %11, %15 : vector<10x10x8xi32>
    %17 = arith.andi %14, %16 : vector<10x10x8xi1>
    %c1_i32_9 = arith.constant 1 : i32
    %18 = vector.broadcast %c1_i32_9 : i32 to vector<10x10x8xi32>
    %19 = arith.cmpi sge, %12, %18 : vector<10x10x8xi32>
    %20 = arith.andi %17, %19 : vector<10x10x8xi1>
    %c9_i32_10 = arith.constant 9 : i32
    %21 = vector.broadcast %c9_i32_10 : i32 to vector<10x10x8xi32>
    %22 = arith.cmpi slt, %12, %21 : vector<10x10x8xi32>
    %23 = arith.andi %20, %22 : vector<10x10x8xi1>
    %cst_11 = arith.constant 0.000000e+00 : f32
    %24 = vector.broadcast %cst_11 : f32 to vector<10x10x8xf32>
    %25 = arith.select %23, %10, %24 : vector<10x10x8xi1>, vector<10x10x8xf32>
    %26 = arith.truncf %25 : vector<10x10x8xf32> to vector<10x10x8xbf16>
    %27 = vector.extract_strided_slice %26 {offsets = [0, 0, 0], sizes = [8, 8, 8], strides = [1, 1, 1]} : vector<10x10x8xbf16> to vector<8x8x8xbf16>
    %28 = vector.extract_strided_slice %26 {offsets = [0, 1, 0], sizes = [8, 8, 8], strides = [1, 1, 1]} : vector<10x10x8xbf16> to vector<8x8x8xbf16>
    %29 = vector.extract_strided_slice %26 {offsets = [0, 2, 0], sizes = [8, 8, 8], strides = [1, 1, 1]} : vector<10x10x8xbf16> to vector<8x8x8xbf16>
    %30 = vector.extract_strided_slice %26 {offsets = [1, 0, 0], sizes = [8, 8, 8], strides = [1, 1, 1]} : vector<10x10x8xbf16> to vector<8x8x8xbf16>
    %31 = vector.extract_strided_slice %26 {offsets = [1, 1, 0], sizes = [8, 8, 8], strides = [1, 1, 1]} : vector<10x10x8xbf16> to vector<8x8x8xbf16>
    %32 = vector.extract_strided_slice %26 {offsets = [1, 2, 0], sizes = [8, 8, 8], strides = [1, 1, 1]} : vector<10x10x8xbf16> to vector<8x8x8xbf16>
    %33 = vector.extract_strided_slice %26 {offsets = [2, 0, 0], sizes = [8, 8, 8], strides = [1, 1, 1]} : vector<10x10x8xbf16> to vector<8x8x8xbf16>
    %34 = vector.extract_strided_slice %26 {offsets = [2, 1, 0], sizes = [8, 8, 8], strides = [1, 1, 1]} : vector<10x10x8xbf16> to vector<8x8x8xbf16>
    %35 = vector.extract_strided_slice %26 {offsets = [2, 2, 0], sizes = [8, 8, 8], strides = [1, 1, 1]} : vector<10x10x8xbf16> to vector<8x8x8xbf16>
    %36 = tpu.concatenate %27, %28, %29, %30, %31, %32, %33, %34, %35 in 2 : vector<8x8x8xbf16>, vector<8x8x8xbf16>, vector<8x8x8xbf16>, vector<8x8x8xbf16>, vector<8x8x8xbf16>, vector<8x8x8xbf16>, vector<8x8x8xbf16>, vector<8x8x8xbf16>, vector<8x8x8xbf16> -> vector<8x8x72xbf16>
    %37 = vector.shape_cast %36 : vector<8x8x72xbf16> to vector<64x72xbf16>
    %c0_12 = arith.constant 0 : index
    %c0_13 = arith.constant 0 : index
    %38 = vector.load %arg2[%c0_12, %c0_13] : memref<72x8xbf16, #tpu.memory_space<vmem>>, vector<72x8xbf16>
    %cst_14 = arith.constant dense<0.000000e+00> : vector<64x8xf32>
    %39 = tpu.matmul %37, %38, %cst_14 {dimension_numbers = #tpu.dot_dimension_numbers<[1], [0], [0], [1], [0, 0, 1, 1], [], []>} : vector<64x72xbf16>, vector<72x8xbf16>, vector<64x8xf32> -> vector<64x8xf32>
    %c0_15 = arith.constant 0 : index
    %c0_16 = arith.constant 0 : index
    %c0_17 = arith.constant 0 : index
    %c0_18 = arith.constant 0 : index
    %40 = vector.load %arg5[%c0_15, %c0_16, %c0_17, %c0_18] : memref<1x8x8x8xbf16, #tpu.memory_space<vmem>>, vector<1x8x8x8xbf16>
    %41 = vector.shape_cast %40 : vector<1x8x8x8xbf16> to vector<8x8x8xbf16>
    %42 = vector.shape_cast %41 : vector<8x8x8xbf16> to vector<64x8xbf16>
    %43 = arith.extf %42 : vector<64x8xbf16> to vector<64x8xf32>
    %44 = arith.addf %39, %43 : vector<64x8xf32>
    %45 = vector.shape_cast %44 : vector<64x8xf32> to vector<8x8x8xf32>
    %c0_19 = arith.constant 0 : index
    %c0_20 = arith.constant 0 : index
    %c0_21 = arith.constant 0 : index
    %c0_22 = arith.constant 0 : index
    %46 = vector.load %arg6[%c0_19, %c0_20, %c0_21, %c0_22] : memref<1x8x8x8xf32, #tpu.memory_space<vmem>>, vector<1x8x8x8xf32>
    %47 = vector.shape_cast %46 : vector<1x8x8x8xf32> to vector<8x8x8xf32>
    %48 = vector.shape_cast %45 : vector<8x8x8xf32> to vector<1x8x8x8xf32>
    tpu.vector_store %arg6[%c0_19, %c0_20, %c0_21, %c0_22], %48 {strides = array<i32>} : memref<1x8x8x8xf32, #tpu.memory_space<vmem>>, vector<1x8x8x8xf32>,
    %cst_23 = arith.constant dense<0.000000e+00> : vector<8xf32>
    %49 = vector.multi_reduction <add>, %44, %cst_23 [0] : vector<64x8xf32> to vector<8xf32>
    %50 = vector.shape_cast %49 : vector<8xf32> to vector<1x8xf32>
    %51 = vector.shape_cast %50 : vector<1x8xf32> to vector<1x1x8xf32>
    %c0_24 = arith.constant 0 : index
    %c0_25 = arith.constant 0 : index
    %c0_26 = arith.constant 0 : index
    %52 = vector.load %arg7[%c0_24, %c0_25, %c0_26] : memref<1x1x8xf32, #tpu.memory_space<vmem>>, vector<1x1x8xf32>
    tpu.vector_store %arg7[%c0_24, %c0_25, %c0_26], %51 {strides = array<i32>} : memref<1x1x8xf32, #tpu.memory_space<vmem>>, vector<1x1x8xf32>,
    %53 = arith.mulf %44, %44 : vector<64x8xf32>
    %cst_27 = arith.constant dense<0.000000e+00> : vector<8xf32>
    %54 = vector.multi_reduction <add>, %53, %cst_27 [0] : vector<64x8xf32> to vector<8xf32>
    %55 = vector.shape_cast %54 : vector<8xf32> to vector<1x8xf32>
    %56 = vector.shape_cast %55 : vector<1x8xf32> to vector<1x1x8xf32>
    %c0_28 = arith.constant 0 : index
    %c0_29 = arith.constant 0 : index
    %c0_30 = arith.constant 0 : index
    %57 = vector.load %arg8[%c0_28, %c0_29, %c0_30] : memref<1x1x8xf32, #tpu.memory_space<vmem>>, vector<1x1x8xf32>
    tpu.vector_store %arg8[%c0_28, %c0_29, %c0_30], %56 {strides = array<i32>} : memref<1x1x8xf32, #tpu.memory_space<vmem>>, vector<1x1x8xf32>,
    return
  }
  func.func @transform_0(%arg0: i32) -> (i32, i32, i32, i32) {
    %c0_i32 = arith.constant 0 : i32
    %c0_i32_0 = arith.constant 0 : i32
    %c0_i32_1 = arith.constant 0 : i32
    %c0_i32_2 = arith.constant 0 : i32
    return %arg0, %c0_i32, %c0_i32_0, %c0_i32_1 : i32, i32, i32, i32
  }
  func.func @transform_1(%arg0: i32) -> (i32, i32) {
    %c0_i32 = arith.constant 0 : i32
    %c0_i32_0 = arith.constant 0 : i32
    %c0_i32_1 = arith.constant 0 : i32
    return %c0_i32, %c0_i32_0 : i32, i32
  }
  func.func @transform_2(%arg0: i32) -> (i32, i32, i32) {
    %c0_i32 = arith.constant 0 : i32
    %c0_i32_0 = arith.constant 0 : i32
    %c0_i32_1 = arith.constant 0 : i32
    %c0_i32_2 = arith.constant 0 : i32
    return %c0_i32, %c0_i32_0, %c0_i32_1 : i32, i32, i32
  }
  func.func @transform_3(%arg0: i32) -> (i32, i32, i32) {
    %c0_i32 = arith.constant 0 : i32
    %c0_i32_0 = arith.constant 0 : i32
    %c0_i32_1 = arith.constant 0 : i32
    %c0_i32_2 = arith.constant 0 : i32
    return %c0_i32, %c0_i32_0, %c0_i32_1 : i32, i32, i32
  }
  func.func @transform_4(%arg0: i32) -> (i32, i32, i32, i32) {
    %c0_i32 = arith.constant 0 : i32
    %c0_i32_0 = arith.constant 0 : i32
    %c0_i32_1 = arith.constant 0 : i32
    %c0_i32_2 = arith.constant 0 : i32
    return %arg0, %c0_i32, %c0_i32_0, %c0_i32_1 : i32, i32, i32, i32
  }
  func.func @transform_5(%arg0: i32) -> (i32, i32, i32, i32) {
    %c0_i32 = arith.constant 0 : i32
    %c0_i32_0 = arith.constant 0 : i32
    %c0_i32_1 = arith.constant 0 : i32
    %c0_i32_2 = arith.constant 0 : i32
    return %arg0, %c0_i32, %c0_i32_0, %c0_i32_1 : i32, i32, i32, i32
  }
  func.func @transform_6(%arg0: i32) -> (i32, i32, i32) {
    %c0_i32 = arith.constant 0 : i32
    %c0_i32_0 = arith.constant 0 : i32
    %c0_i32_1 = arith.constant 0 : i32
    return %arg0, %c0_i32, %c0_i32_0 : i32, i32, i32
  }
  func.func @transform_7(%arg0: i32) -> (i32, i32, i32) {
    %c0_i32 = arith.constant 0 : i32
    %c0_i32_0 = arith.constant 0 : i32
    %c0_i32_1 = arith.constant 0 : i32
    return %arg0, %c0_i32, %c0_i32_0 : i32, i32, i32
  }
}

</mosaic_0001>

<llo_original>
// kernel: network_block2_forward.5
$region0: #{network_block2_forward.5}
  #allocation0 [shape = 'u32[]', space=smem, size = 0x4, offset = 0x4, fixed_abs, tag = 'smem constant byte address 0x4 - core index']
  #allocation1 [shape = 'u32[144,128]{1,0:T(1,128)}', space=vmem, size = 0x12000, scoped, tag = 'internal scratch']
  %s0 = inlined_call_operand.vmem [shape: f32[2,16,16,4], index: 0, kind: input, shape index: {}]
  %s1 = inlined_call_operand.vmem [shape: f32[2,1,4], index: 1, kind: output, shape index: {0}]
  %s2 = inlined_call_operand.vmem [shape: f32[2,1,4], index: 2, kind: output, shape index: {1}]
  %3 = xla_tuple %s1, %s2
  %s4 = sld [smem:[#allocation0]]
  $region45: #{network_block2_forward.5} parent=0
    _
  %s6 = ssub.s32 1, %s4
  %s7 = scalar_select 0, %s6, %s4
  loop: start=0, step=1, limit=4
  $region2: #{network_block2_forward.5} parent=0 // loop_pre_header
    _
  $region3: #{network_block2_forward.5} parent=0 // loop_header
    %s9 = sphi 0, %s13
    %p10 = scmp.ge.s32.totalorder %s9, 4
    %s19 = sphi 0, %s21
    %s22 = sphi 0, %s19
    %s23 = sphi 0, %s22
    %s39 = sphi 0, %s23
    %s45 = sphi 0, %s47
    %s48 = sphi 0, %s45
    %s49 = sphi 0, %s48
    %s65 = sphi 0, %s49
    %s71 = sphi 0, %s73
    %s74 = sphi 0, %s71
    %s75 = sphi 0, %s74
    %s91 = sphi 0, %s75
  $region4: #{network_block2_forward.5} parent=0 // loop_header_branch
    %12 = sbr.rel (%p10) target = $region8
  $region5: #{network_block2_forward.5} parent=0 // loop_body
    %s14 = ssub.s32 %s9, 1
    %s15 = ssub.s32 %s9, 2
    %s16 = sadd.s32 %s9, 1
    %s17 = ssub.s32 %s9, %s16
    %p18 = scmp.eq.s32.totalorder %s17, 0
    %s20 = sadd.s32 %s19, 1
    %s21 = scalar_select %p18, %s19, %s20
    %p24 = pneg %p18
    %p25 = scmp.eq.s32.totalorder %s9, 1
    %p26 = por %p24, %p25
    %p27 = scmp.ne.s32.totalorder %s19, %s22
    %p28 = scmp.eq.s32.totalorder %s9, 0
    %p29 = por %p27, %p28
    %p30 = scmp.ne.s32.totalorder %s19, %s22
    %p31 = scmp.eq.s32.totalorder %s14, 1
    %p32 = por %p30, %p31
    %p33 = scmp.ne.s32.totalorder %s22, %s23
    %p34 = scmp.eq.s32.totalorder %s14, 0
    %p35 = por %p33, %p34
    %p36 = scmp.ne.s32.totalorder %s22, %s23
    %p37 = scmp.eq.s32.totalorder %s15, 1
    %p38 = por %p36, %p37
    %p40 = scmp.ne.s32.totalorder %s23, %s39
    %p41 = scmp.eq.s32.totalorder %s15, 0
    %p42 = por %p40, %p41
    %s43 = ssub.s32 %s9, %s16
    %p44 = scmp.eq.s32.totalorder %s43, 0
    %s46 = sadd.s32 %s45, 1
    %s47 = scalar_select %p44, %s45, %s46
    %p50 = pneg %p44
    %p51 = scmp.eq.s32.totalorder %s9, 1
    %p52 = por %p50, %p51
    %p53 = scmp.ne.s32.totalorder %s45, %s48
    %p54 = scmp.eq.s32.totalorder %s9, 0
    %p55 = por %p53, %p54
    %p56 = scmp.ne.s32.totalorder %s45, %s48
    %p57 = scmp.eq.s32.totalorder %s14, 1
    %p58 = por %p56, %p57
    %p59 = scmp.ne.s32.totalorder %s48, %s49
    %p60 = scmp.eq.s32.totalorder %s14, 0
    %p61 = por %p59, %p60
    %p62 = scmp.ne.s32.totalorder %s48, %s49
    %p63 = scmp.eq.s32.totalorder %s15, 1
    %p64 = por %p62, %p63
    %p66 = scmp.ne.s32.totalorder %s49, %s65
    %p67 = scmp.eq.s32.totalorder %s15, 0
    %p68 = por %p66, %p67
    %s69 = ssub.s32 %s9, %s16
    %p70 = scmp.eq.s32.totalorder %s69, 0
    %s72 = sadd.s32 %s71, 1
    %s73 = scalar_select %p70, %s71, %s72
    %p76 = pneg %p70
    %p77 = scmp.eq.s32.totalorder %s9, 1
    %p78 = por %p76, %p77
    %p79 = scmp.ne.s32.totalorder %s71, %s74
    %p80 = scmp.eq.s32.totalorder %s9, 0
    %p81 = por %p79, %p80
    %p82 = scmp.ne.s32.totalorder %s71, %s74
    %p83 = scmp.eq.s32.totalorder %s14, 1
    %p84 = por %p82, %p83
    %p85 = scmp.ne.s32.totalorder %s74, %s75
    %p86 = scmp.eq.s32.totalorder %s14, 0
    %p87 = por %p85, %p86
    %p88 = scmp.ne.s32.totalorder %s74, %s75
    %p89 = scmp.eq.s32.totalorder %s15, 1
    %p90 = por %p88, %p89
    %p92 = scmp.ne.s32.totalorder %s75, %s91
    %p93 = scmp.eq.s32.totalorder %s15, 0
    %p94 = por %p92, %p93
    %p95 = scmp.le.s32.totalorder 1, %s9
    %p96 = scmp.lt.s32.totalorder %s9, 3
    %p97 = pnand %p95, %p96
    %p98 = pneg %p97
    // Predicated region
    $region9: #{network_block2_forward.5} parent=5 // pred_check
      _
    $region10: #{network_block2_forward.5} parent=5 // pred_check_branch
      %100 = sbr.rel (%p97) target = $region12
    $region11: #{network_block2_forward.5} parent=5 // pred_region
      %s101 = ssub.s32 %s9, 1
    $region12: #{network_block2_forward.5} parent=5 // pred_fallthru
      _
    %p102 = scmp.lt.s32.totalorder %s9, 2
    // Predicated region
    $region13: #{network_block2_forward.5} parent=5 // pred_check
      %p103 = pneg %p102
    $region14: #{network_block2_forward.5} parent=5 // pred_check_branch
      %105 = sbr.rel (%p103) target = $region16
    $region15: #{network_block2_forward.5} parent=5 // pred_region
      // Predicated region
      $region17: #{network_block2_forward.5} parent=15 // pred_check
        %p106 = pneg %p29
      $region18: #{network_block2_forward.5} parent=15 // pred_check_branch
        %108 = sbr.rel (%p106) target = $region20
      $region19: #{network_block2_forward.5} parent=15 // pred_region
        %p109 = scmp.lt.s32.totalorder %s9, 1
        %s110 = scalar_select %p109, %s9, 1
        %s111 = smul.addr %s110, 32
        %s112 = smul.addr %s111, 8
        %s113 = scalar_lea.vmem %s0, %s112
      $region20: #{network_block2_forward.5} parent=15 // pred_fallthru
        _
    $region16: #{network_block2_forward.5} parent=5 // pred_fallthru
      _
    %p114 = scmp.le.s32.totalorder 1, %s9
    %p115 = scmp.lt.s32.totalorder %s9, 3
    %p116 = pnand %p114, %p115
    %p117 = pneg %p116
    // Predicated region
    $region21: #{network_block2_forward.5} parent=5 // pred_check
      _
    $region22: #{network_block2_forward.5} parent=5 // pred_check_branch
      %119 = sbr.rel (%p116) target = $region24
    $region23: #{network_block2_forward.5} parent=5 // pred_region
      %s120 = ssub.s32 %s9, 1
      %p121 = scmp.lt.s32.totalorder %s14, 1
      %s122 = scalar_select %p121, %s14, 1
      %s123 = smul.addr %s122, 32
      %s124 = smul.addr %s123, 8
      %s125 = scalar_lea.vmem %s0, %s124
      %p126 = pneg %p35
      %p127 = pneg %p32
      %p128 = pneg %p61
      %p129 = pneg %p58
      %p130 = scmp.lt.s32.totalorder %s14, 1
      %s131 = scalar_select %p130, %s14, 1
      %s132 = scalar_lea.vmem %s1, %s131
      %p133 = pneg %p87
      %p134 = pneg %p84
      %p135 = scmp.lt.s32.totalorder %s14, 1
      %s136 = scalar_select %p135, %s14, 1
      %s137 = scalar_lea.vmem %s2, %s136
      %p138 = scmp.lt.s32.totalorder %s14, 1
      %s139 = scalar_select %p138, %s14, 1
      %s140 = smul.addr %s139, 32
      %s141 = smul.addr %s140, 8
      %s142 = scalar_lea.vmem %s0, %s141
      %p143 = scmp.lt.s32.totalorder %s14, 1
      %s144 = scalar_select %p143, %s14, 1
      %s145 = scalar_lea.vmem %s1, %s144
      %p146 = scmp.lt.s32.totalorder %s14, 1
      %s147 = scalar_select %p146, %s14, 1
      %s148 = scalar_lea.vmem %s2, %s147
      %v149 = vld [vmem:[%s142] sm:$0xff]
      %v150 = vld [vmem:[%s142 + $0x8] sm:$0xff]
      %v151 = vld [vmem:[%s142 + $0x10] sm:$0xff]
      %v152 = vld [vmem:[%s142 + $0x18] sm:$0xff]
      %v153 = vld [vmem:[%s142 + $0x20] sm:$0xff]
      %v154 = vld [vmem:[%s142 + $0x28] sm:$0xff]
      %v155 = vld [vmem:[%s142 + $0x30] sm:$0xff]
      %v156 = vld [vmem:[%s142 + $0x38] sm:$0xff]
      %v157 = vld [vmem:[%s142 + $0x40] sm:$0xff]
      %v158 = vld [vmem:[%s142 + $0x48] sm:$0xff]
      %v159 = vld [vmem:[%s142 + $0x50] sm:$0xff]
      %v160 = vld [vmem:[%s142 + $0x58] sm:$0xff]
      %v161 = vld [vmem:[%s142 + $0x60] sm:$0xff]
      %v162 = vld [vmem:[%s142 + $0x68] sm:$0xff]
      %v163 = vld [vmem:[%s142 + $0x70] sm:$0xff]
      %v164 = vld [vmem:[%s142 + $0x78] sm:$0xff]
      %v165 = vld [vmem:[%s142 + $0x80] sm:$0xff]
      %v166 = vld [vmem:[%s142 + $0x88] sm:$0xff]
      %v167 = vld [vmem:[%s142 + $0x90] sm:$0xff]
      %v168 = vld [vmem:[%s142 + $0x98] sm:$0xff]
      %v169 = vld [vmem:[%s142 + $0xa0] sm:$0xff]
      %v170 = vld [vmem:[%s142 + $0xa8] sm:$0xff]
      %v171 = vld [vmem:[%s142 + $0xb0] sm:$0xff]
      %v172 = vld [vmem:[%s142 + $0xb8] sm:$0xff]
      %v173 = vld [vmem:[%s142 + $0xc0] sm:$0xff]
      %v174 = vld [vmem:[%s142 + $0xc8] sm:$0xff]
      %v175 = vld [vmem:[%s142 + $0xd0] sm:$0xff]
      %v176 = vld [vmem:[%s142 + $0xd8] sm:$0xff]
      %v177 = vld [vmem:[%s142 + $0xe0] sm:$0xff]
      %v178 = vld [vmem:[%s142 + $0xe8] sm:$0xff]
      %v179 = vld [vmem:[%s142 + $0xf0] sm:$0xff]
      %v180 = vld [vmem:[%s142 + $0xf8] sm:$0xff]
      %vm181 = vcmask 31744
      %v182 = vsel %vm181, %v149, 0.0
      %v183 = vsel %vm181, %v151, 0.0
      %v184 = vadd.f32 %v182, %v183
      %v185 = vsel %vm181, %v153, 0.0
      %v186 = vadd.f32 %v184, %v185
      %v187 = vsel %vm181, %v155, 0.0
      %v188 = vadd.f32 %v186, %v187
      %v189 = vsel %vm181, %v157, 0.0
      %v190 = vadd.f32 %v188, %v189
      %v191 = vsel %vm181, %v159, 0.0
      %v192 = vadd.f32 %v190, %v191
      %v193 = vsel %vm181, %v161, 0.0
      %v194 = vadd.f32 %v192, %v193
      %v195 = vsel %vm181, %v163, 0.0
      %v196 = vadd.f32 %v194, %v195
      %v197 = vsel %vm181, %v165, 0.0
      %v198 = vadd.f32 %v196, %v197
      %v199 = vsel %vm181, %v167, 0.0
      %v200 = vadd.f32 %v198, %v199
      %v201 = vsel %vm181, %v169, 0.0
      %v202 = vadd.f32 %v200, %v201
      %v203 = vsel %vm181, %v171, 0.0
      %v204 = vadd.f32 %v202, %v203
      %v205 = vsel %vm181, %v173, 0.0
      %v206 = vadd.f32 %v204, %v205
      %v207 = vsel %vm181, %v175, 0.0
      %v208 = vadd.f32 %v206, %v207
      %v209 = vsel %vm181, %v177, 0.0
      %v210 = vadd.f32 %v208, %v209
      %v211 = vsel %vm181, %v179, 0.0
      %v212 = vadd.f32 %v210, %v211
      %v213 = vsel %vm181, %v150, 0.0
      %v214 = vsel %vm181, %v152, 0.0
      %v215 = vadd.f32 %v213, %v214
      %v216 = vsel %vm181, %v154, 0.0
      %v217 = vadd.f32 %v215, %v216
      %v218 = vsel %vm181, %v156, 0.0
      %v219 = vadd.f32 %v217, %v218
      %v220 = vsel %vm181, %v158, 0.0
      %v221 = vadd.f32 %v219, %v220
      %v222 = vsel %vm181, %v160, 0.0
      %v223 = vadd.f32 %v221, %v222
      %v224 = vsel %vm181, %v162, 0.0
      %v225 = vadd.f32 %v223, %v224
      %v226 = vsel %vm181, %v164, 0.0
      %v227 = vadd.f32 %v225, %v226
      %v228 = vsel %vm181, %v166, 0.0
      %v229 = vadd.f32 %v227, %v228
      %v230 = vsel %vm181, %v168, 0.0
      %v231 = vadd.f32 %v229, %v230
      %v232 = vsel %vm181, %v170, 0.0
      %v233 = vadd.f32 %v231, %v232
      %v234 = vsel %vm181, %v172, 0.0
      %v235 = vadd.f32 %v233, %v234
      %v236 = vsel %vm181, %v174, 0.0
      %v237 = vadd.f32 %v235, %v236
      %v238 = vsel %vm181, %v176, 0.0
      %v239 = vadd.f32 %v237, %v238
      %v240 = vsel %vm181, %v178, 0.0
      %v241 = vadd.f32 %v239, %v240
      %v242 = vsel %vm181, %v180, 0.0
      %v243 = vadd.f32 %v241, %v242
      %v244 = vsel %vm181, %v212, 0.0
      %v245 = vsel %vm181, %v243, 0.0
      %v246 = vadd.f32 %v244, %v245
      %v247 = vrot.slane %v246, 4
      %v248 = vadd.f32 %v246, %v247
      %v249 = vrot.slane %v248, 2
      %v250 = vadd.f32 %v248, %v249
      %v251 = vrot.slane %v250, 1
      %v252 = vadd.f32 %v250, %v251
      %vm253 = vcmask 24576
      %254 = vst.msk [vmem:[%s145] sm:$0x1] %vm253, %v252
      %v255 = vmul.f32 %v149, %v149
      %v256 = vmul.f32 %v150, %v150
      %v257 = vmul.f32 %v151, %v151
      %v258 = vmul.f32 %v152, %v152
      %v259 = vmul.f32 %v153, %v153
      %v260 = vmul.f32 %v154, %v154
      %v261 = vmul.f32 %v155, %v155
      %v262 = vmul.f32 %v156, %v156
      %v263 = vmul.f32 %v157, %v157
      %v264 = vmul.f32 %v158, %v158
      %v265 = vmul.f32 %v159, %v159
      %v266 = vmul.f32 %v160, %v160
      %v267 = vmul.f32 %v161, %v161
      %v268 = vmul.f32 %v162, %v162
      %v269 = vmul.f32 %v163, %v163
      %v270 = vmul.f32 %v164, %v164
      %v271 = vmul.f32 %v165, %v165
      %v272 = vmul.f32 %v166, %v166
      %v273 = vmul.f32 %v167, %v167
      %v274 = vmul.f32 %v168, %v168
      %v275 = vmul.f32 %v169, %v169
      %v276 = vmul.f32 %v170, %v170
      %v277 = vmul.f32 %v171, %v171
      %v278 = vmul.f32 %v172, %v172
      %v279 = vmul.f32 %v173, %v173
      %v280 = vmul.f32 %v174, %v174
      %v281 = vmul.f32 %v175, %v175
      %v282 = vmul.f32 %v176, %v176
      %v283 = vmul.f32 %v177, %v177
      %v284 = vmul.f32 %v178, %v178
      %v285 = vmul.f32 %v179, %v179
      %v286 = vmul.f32 %v180, %v180
      %v287 = vsel %vm181, %v255, 0.0
      %v288 = vsel %vm181, %v257, 0.0
      %v289 = vadd.f32 %v287, %v288
      %v290 = vsel %vm181, %v259, 0.0
      %v291 = vadd.f32 %v289, %v290
      %v292 = vsel %vm181, %v261, 0.0
      %v293 = vadd.f32 %v291, %v292
      %v294 = vsel %vm181, %v263, 0.0
      %v295 = vadd.f32 %v293, %v294
      %v296 = vsel %vm181, %v265, 0.0
      %v297 = vadd.f32 %v295, %v296
      %v298 = vsel %vm181, %v267, 0.0
      %v299 = vadd.f32 %v297, %v298
      %v300 = vsel %vm181, %v269, 0.0
      %v301 = vadd.f32 %v299, %v300
      %v302 = vsel %vm181, %v271, 0.0
      %v303 = vadd.f32 %v301, %v302
      %v304 = vsel %vm181, %v273, 0.0
      %v305 = vadd.f32 %v303, %v304
      %v306 = vsel %vm181, %v275, 0.0
      %v307 = vadd.f32 %v305, %v306
      %v308 = vsel %vm181, %v277, 0.0
      %v309 = vadd.f32 %v307, %v308
      %v310 = vsel %vm181, %v279, 0.0
      %v311 = vadd.f32 %v309, %v310
      %v312 = vsel %vm181, %v281, 0.0
      %v313 = vadd.f32 %v311, %v312
      %v314 = vsel %vm181, %v283, 0.0
      %v315 = vadd.f32 %v313, %v314
      %v316 = vsel %vm181, %v285, 0.0
      %v317 = vadd.f32 %v315, %v316
      %v318 = vsel %vm181, %v256, 0.0
      %v319 = vsel %vm181, %v258, 0.0
      %v320 = vadd.f32 %v318, %v319
      %v321 = vsel %vm181, %v260, 0.0
      %v322 = vadd.f32 %v320, %v321
      %v323 = vsel %vm181, %v262, 0.0
      %v324 = vadd.f32 %v322, %v323
      %v325 = vsel %vm181, %v264, 0.0
      %v326 = vadd.f32 %v324, %v325
      %v327 = vsel %vm181, %v266, 0.0
      %v328 = vadd.f32 %v326, %v327
      %v329 = vsel %vm181, %v268, 0.0
      %v330 = vadd.f32 %v328, %v329
      %v331 = vsel %vm181, %v270, 0.0
      %v332 = vadd.f32 %v330, %v331
      %v333 = vsel %vm181, %v272, 0.0
      %v334 = vadd.f32 %v332, %v333
      %v335 = vsel %vm181, %v274, 0.0
      %v336 = vadd.f32 %v334, %v335
      %v337 = vsel %vm181, %v276, 0.0
      %v338 = vadd.f32 %v336, %v337
      %v339 = vsel %vm181, %v278, 0.0
      %v340 = vadd.f32 %v338, %v339
      %v341 = vsel %vm181, %v280, 0.0
      %v342 = vadd.f32 %v340, %v341
      %v343 = vsel %vm181, %v282, 0.0
      %v344 = vadd.f32 %v342, %v343
      %v345 = vsel %vm181, %v284, 0.0
      %v346 = vadd.f32 %v344, %v345
      %v347 = vsel %vm181, %v286, 0.0
      %v348 = vadd.f32 %v346, %v347
      %v349 = vsel %vm181, %v317, 0.0
      %v350 = vsel %vm181, %v348, 0.0
      %v351 = vadd.f32 %v349, %v350
      %v352 = vrot.slane %v351, 4
      %v353 = vadd.f32 %v351, %v352
      %v354 = vrot.slane %v353, 2
      %v355 = vadd.f32 %v353, %v354
      %v356 = vrot.slane %v355, 1
      %v357 = vadd.f32 %v355, %v356
      %358 = vst.msk [vmem:[%s148] sm:$0x1] %vm253, %v357
      %p359 = scmp.lt.s32.totalorder %s14, 1
      %s360 = scalar_select %p359, %s14, 1
      %s361 = scalar_lea.vmem %s1, %s360
      %p362 = scmp.lt.s32.totalorder %s14, 1
      %s363 = scalar_select %p362, %s14, 1
      %s364 = scalar_lea.vmem %s2, %s363
      // Predicated region
      $region25: #{network_block2_forward.5} parent=23 // pred_check
        %p365 = pneg %p58
      $region26: #{network_block2_forward.5} parent=23 // pred_check_branch
        %367 = sbr.rel (%p365) target = $region28
      $region27: #{network_block2_forward.5} parent=23 // pred_region
        _
      $region28: #{network_block2_forward.5} parent=23 // pred_fallthru
        _
      // Predicated region
      $region29: #{network_block2_forward.5} parent=23 // pred_check
        %p368 = pneg %p84
      $region30: #{network_block2_forward.5} parent=23 // pred_check_branch
        %370 = sbr.rel (%p368) target = $region32
      $region31: #{network_block2_forward.5} parent=23 // pred_region
        _
      $region32: #{network_block2_forward.5} parent=23 // pred_fallthru
        _
    $region24: #{network_block2_forward.5} parent=5 // pred_fallthru
      _
    %p371 = scmp.le.s32.totalorder 2, %s9
    // Predicated region
    $region33: #{network_block2_forward.5} parent=5 // pred_check
      %p372 = pneg %p371
    $region34: #{network_block2_forward.5} parent=5 // pred_check_branch
      %374 = sbr.rel (%p372) target = $region36
    $region35: #{network_block2_forward.5} parent=5 // pred_region
      %s375 = ssub.s32 %s9, 2
      // Predicated region
      $region37: #{network_block2_forward.5} parent=35 // pred_check
        %p376 = pneg %p64
      $region38: #{network_block2_forward.5} parent=35 // pred_check_branch
        %378 = sbr.rel (%p376) target = $region40
      $region39: #{network_block2_forward.5} parent=35 // pred_region
        %p379 = scmp.lt.s32.totalorder %s15, 1
        %s380 = scalar_select %p379, %s15, 1
        %s381 = scalar_lea.vmem %s1, %s380
      $region40: #{network_block2_forward.5} parent=35 // pred_fallthru
        _
      // Predicated region
      $region41: #{network_block2_forward.5} parent=35 // pred_check
        %p382 = pneg %p90
      $region42: #{network_block2_forward.5} parent=35 // pred_check_branch
        %384 = sbr.rel (%p382) target = $region44
      $region43: #{network_block2_forward.5} parent=35 // pred_region
        %p385 = scmp.lt.s32.totalorder %s15, 1
        %s386 = scalar_select %p385, %s15, 1
        %s387 = scalar_lea.vmem %s2, %s386
      $region44: #{network_block2_forward.5} parent=35 // pred_fallthru
        _
    $region36: #{network_block2_forward.5} parent=5 // pred_fallthru
      _
  $region6: #{network_block2_forward.5} parent=0 // loop_footer
    %s13 = sadd.s32 1, %s9
  $region7: #{network_block2_forward.5} parent=0 // loop_footer_branch
    %8 = sbr.rel target = $region3
  $region8: #{network_block2_forward.5} parent=0 // loop_exit
    _

// kernel: network_block2_forward.6
$region0: #{network_block2_forward.6}
  #allocation0 [shape = 'u32[]', space=smem, size = 0x4, offset = 0x4, fixed_abs, tag = 'smem constant byte address 0x4 - core index']
  #allocation1 [shape = 'u32[144,128]{1,0:T(1,128)}', space=vmem, size = 0x12000, scoped, tag = 'internal scratch']
  %s0 = inlined_call_operand.vmem [shape: bf16[2,64,36], index: 0, kind: input, shape index: {}]
  %s1 = inlined_call_operand.vmem [shape: bf16[36,8], index: 1, kind: input, shape index: {}]
  %s2 = inlined_call_operand.vmem [shape: bf16[2,8,8,8], index: 2, kind: output, shape index: {0}]
  %s3 = inlined_call_operand.vmem [shape: f32[2,1,8], index: 3, kind: output, shape index: {1}]
  %s4 = inlined_call_operand.vmem [shape: f32[2,1,8], index: 4, kind: output, shape index: {2}]
  %5 = xla_tuple %s2, %s3, %s4
  %s6 = sld [smem:[#allocation0]]
  $region57: #{network_block2_forward.6} parent=0
    _
  %s8 = ssub.s32 1, %s6
  %s9 = scalar_select 0, %s8, %s6
  loop: start=0, step=1, limit=4
  $region2: #{network_block2_forward.6} parent=0 // loop_pre_header
    _
  $region3: #{network_block2_forward.6} parent=0 // loop_header
    %s11 = sphi 0, %s15
    %p12 = scmp.ge.s32.totalorder %s11, 4
    %s21 = sphi 0, %s23
    %s24 = sphi 0, %s21
    %s25 = sphi 0, %s24
    %s41 = sphi 0, %s25
    %s45 = sphi 0, %s45
    %s47 = sphi 0, %s45
    %s48 = sphi 0, %s47
    %s62 = sphi 0, %s48
    %s68 = sphi 0, %s70
    %s71 = sphi 0, %s68
    %s72 = sphi 0, %s71
    %s88 = sphi 0, %s72
    %s94 = sphi 0, %s96
    %s97 = sphi 0, %s94
    %s98 = sphi 0, %s97
    %s114 = sphi 0, %s98
    %s120 = sphi 0, %s122
    %s123 = sphi 0, %s120
    %s124 = sphi 0, %s123
    %s140 = sphi 0, %s124
  $region4: #{network_block2_forward.6} parent=0 // loop_header_branch
    %14 = sbr.rel (%p12) target = $region8
  $region5: #{network_block2_forward.6} parent=0 // loop_body
    %s16 = ssub.s32 %s11, 1
    %s17 = ssub.s32 %s11, 2
    %s18 = sadd.s32 %s11, 1
    %s19 = ssub.s32 %s11, %s18
    %p20 = scmp.eq.s32.totalorder %s19, 0
    %s22 = sadd.s32 %s21, 1
    %s23 = scalar_select %p20, %s21, %s22
    %p26 = pneg %p20
    %p27 = scmp.eq.s32.totalorder %s11, 1
    %p28 = por %p26, %p27
    %p29 = scmp.ne.s32.totalorder %s21, %s24
    %p30 = scmp.eq.s32.totalorder %s11, 0
    %p31 = por %p29, %p30
    %p32 = scmp.ne.s32.totalorder %s21, %s24
    %p33 = scmp.eq.s32.totalorder %s16, 1
    %p34 = por %p32, %p33
    %p35 = scmp.ne.s32.totalorder %s24, %s25
    %p36 = scmp.eq.s32.totalorder %s16, 0
    %p37 = por %p35, %p36
    %p38 = scmp.ne.s32.totalorder %s24, %s25
    %p39 = scmp.eq.s32.totalorder %s17, 1
    %p40 = por %p38, %p39
    %p42 = scmp.ne.s32.totalorder %s25, %s41
    %p43 = scmp.eq.s32.totalorder %s17, 0
    %p44 = por %p42, %p43
    %s46 = sadd.s32 %s45, 1
    %p49 = scmp.eq.s32.totalorder %s11, 1
    %p50 = scmp.ne.s32.totalorder %s45, %s47
    %p51 = scmp.eq.s32.totalorder %s11, 0
    %p52 = por %p50, %p51
    %p53 = scmp.ne.s32.totalorder %s45, %s47
    %p54 = scmp.eq.s32.totalorder %s16, 1
    %p55 = por %p53, %p54
    %p56 = scmp.ne.s32.totalorder %s47, %s48
    %p57 = scmp.eq.s32.totalorder %s16, 0
    %p58 = por %p56, %p57
    %p59 = scmp.ne.s32.totalorder %s47, %s48
    %p60 = scmp.eq.s32.totalorder %s17, 1
    %p61 = por %p59, %p60
    %p63 = scmp.ne.s32.totalorder %s48, %s62
    %p64 = scmp.eq.s32.totalorder %s17, 0
    %p65 = por %p63, %p64
    %s66 = ssub.s32 %s11, %s18
    %p67 = scmp.eq.s32.totalorder %s66, 0
    %s69 = sadd.s32 %s68, 1
    %s70 = scalar_select %p67, %s68, %s69
    %p73 = pneg %p67
    %p74 = scmp.eq.s32.totalorder %s11, 1
    %p75 = por %p73, %p74
    %p76 = scmp.ne.s32.totalorder %s68, %s71
    %p77 = scmp.eq.s32.totalorder %s11, 0
    %p78 = por %p76, %p77
    %p79 = scmp.ne.s32.totalorder %s68, %s71
    %p80 = scmp.eq.s32.totalorder %s16, 1
    %p81 = por %p79, %p80
    %p82 = scmp.ne.s32.totalorder %s71, %s72
    %p83 = scmp.eq.s32.totalorder %s16, 0
    %p84 = por %p82, %p83
    %p85 = scmp.ne.s32.totalorder %s71, %s72
    %p86 = scmp.eq.s32.totalorder %s17, 1
    %p87 = por %p85, %p86
    %p89 = scmp.ne.s32.totalorder %s72, %s88
    %p90 = scmp.eq.s32.totalorder %s17, 0
    %p91 = por %p89, %p90
    %s92 = ssub.s32 %s11, %s18
    %p93 = scmp.eq.s32.totalorder %s92, 0
    %s95 = sadd.s32 %s94, 1
    %s96 = scalar_select %p93, %s94, %s95
    %p99 = pneg %p93
    %p100 = scmp.eq.s32.totalorder %s11, 1
    %p101 = por %p99, %p100
    %p102 = scmp.ne.s32.totalorder %s94, %s97
    %p103 = scmp.eq.s32.totalorder %s11, 0
    %p104 = por %p102, %p103
    %p105 = scmp.ne.s32.totalorder %s94, %s97
    %p106 = scmp.eq.s32.totalorder %s16, 1
    %p107 = por %p105, %p106
    %p108 = scmp.ne.s32.totalorder %s97, %s98
    %p109 = scmp.eq.s32.totalorder %s16, 0
    %p110 = por %p108, %p109
    %p111 = scmp.ne.s32.totalorder %s97, %s98
    %p112 = scmp.eq.s32.totalorder %s17, 1
    %p113 = por %p111, %p112
    %p115 = scmp.ne.s32.totalorder %s98, %s114
    %p116 = scmp.eq.s32.totalorder %s17, 0
    %p117 = por %p115, %p116
    %s118 = ssub.s32 %s11, %s18
    %p119 = scmp.eq.s32.totalorder %s118, 0
    %s121 = sadd.s32 %s120, 1
    %s122 = scalar_select %p119, %s120, %s121
    %p125 = pneg %p119
    %p126 = scmp.eq.s32.totalorder %s11, 1
    %p127 = por %p125, %p126
    %p128 = scmp.ne.s32.totalorder %s120, %s123
    %p129 = scmp.eq.s32.totalorder %s11, 0
    %p130 = por %p128, %p129
    %p131 = scmp.ne.s32.totalorder %s120, %s123
    %p132 = scmp.eq.s32.totalorder %s16, 1
    %p133 = por %p131, %p132
    %p134 = scmp.ne.s32.totalorder %s123, %s124
    %p135 = scmp.eq.s32.totalorder %s16, 0
    %p136 = por %p134, %p135
    %p137 = scmp.ne.s32.totalorder %s123, %s124
    %p138 = scmp.eq.s32.totalorder %s17, 1
    %p139 = por %p137, %p138
    %p141 = scmp.ne.s32.totalorder %s124, %s140
    %p142 = scmp.eq.s32.totalorder %s17, 0
    %p143 = por %p141, %p142
    %p144 = scmp.le.s32.totalorder 1, %s11
    %p145 = scmp.lt.s32.totalorder %s11, 3
    %p146 = pnand %p144, %p145
    %p147 = pneg %p146
    // Predicated region
    $region9: #{network_block2_forward.6} parent=5 // pred_check
      _
    $region10: #{network_block2_forward.6} parent=5 // pred_check_branch
      %149 = sbr.rel (%p146) target = $region12
    $region11: #{network_block2_forward.6} parent=5 // pred_region
      %s150 = ssub.s32 %s11, 1
      // Predicated region
      $region13: #{network_block2_forward.6} parent=11 // pred_check
        %p151 = pneg %p58
      $region14: #{network_block2_forward.6} parent=11 // pred_check_branch
        %153 = sbr.rel (%p151) target = $region16
      $region15: #{network_block2_forward.6} parent=11 // pred_region
        _
      $region16: #{network_block2_forward.6} parent=11 // pred_fallthru
        _
    $region12: #{network_block2_forward.6} parent=5 // pred_fallthru
      _
    %p154 = scmp.lt.s32.totalorder %s11, 2
    // Predicated region
    $region17: #{network_block2_forward.6} parent=5 // pred_check
      %p155 = pneg %p154
    $region18: #{network_block2_forward.6} parent=5 // pred_check_branch
      %157 = sbr.rel (%p155) target = $region20
    $region19: #{network_block2_forward.6} parent=5 // pred_region
      // Predicated region
      $region21: #{network_block2_forward.6} parent=19 // pred_check
        %p158 = pneg %p31
      $region22: #{network_block2_forward.6} parent=19 // pred_check_branch
        %160 = sbr.rel (%p158) target = $region24
      $region23: #{network_block2_forward.6} parent=19 // pred_region
        %p161 = scmp.lt.s32.totalorder %s11, 1
        %s162 = scalar_select %p161, %s11, 1
        %s163 = smul.addr %s162, 8
        %s164 = smul.addr %s163, 4
        %s165 = scalar_lea.vmem %s0, %s164
      $region24: #{network_block2_forward.6} parent=19 // pred_fallthru
        _
    $region20: #{network_block2_forward.6} parent=5 // pred_fallthru
      _
    %p166 = scmp.le.s32.totalorder 1, %s11
    %p167 = scmp.lt.s32.totalorder %s11, 3
    %p168 = pnand %p166, %p167
    %p169 = pneg %p168
    // Predicated region
    $region25: #{network_block2_forward.6} parent=5 // pred_check
      _
    $region26: #{network_block2_forward.6} parent=5 // pred_check_branch
      %171 = sbr.rel (%p168) target = $region28
    $region27: #{network_block2_forward.6} parent=5 // pred_region
      %s172 = ssub.s32 %s11, 1
      %p173 = scmp.lt.s32.totalorder %s16, 1
      %s174 = scalar_select %p173, %s16, 1
      %s175 = smul.addr %s174, 8
      %s176 = smul.addr %s175, 4
      %s177 = scalar_lea.vmem %s0, %s176
      %p178 = pneg %p37
      %p179 = pneg %p34
      %p180 = pneg %p58
      %p181 = pneg %p55
      %p182 = pneg %p84
      %p183 = pneg %p81
      %p184 = scmp.lt.s32.totalorder %s16, 1
      %s185 = scalar_select %p184, %s16, 1
      %s186 = smul.addr %s185, 8
      %s187 = smul.addr %s186, 4
      %s188 = scalar_lea.vmem %s2, %s187
      %p189 = pneg %p110
      %p190 = pneg %p107
      %p191 = scmp.lt.s32.totalorder %s16, 1
      %s192 = scalar_select %p191, %s16, 1
      %s193 = scalar_lea.vmem %s3, %s192
      %p194 = pneg %p136
      %p195 = pneg %p133
      %p196 = scmp.lt.s32.totalorder %s16, 1
      %s197 = scalar_select %p196, %s16, 1
      %s198 = scalar_lea.vmem %s4, %s197
      %p199 = scmp.lt.s32.totalorder %s16, 1
      %s200 = scalar_select %p199, %s16, 1
      %s201 = smul.addr %s200, 8
      %s202 = smul.addr %s201, 4
      %s203 = scalar_lea.vmem %s0, %s202
      %p204 = scmp.lt.s32.totalorder %s16, 1
      %s205 = scalar_select %p204, %s16, 1
      %s206 = smul.addr %s205, 8
      %s207 = smul.addr %s206, 4
      %s208 = scalar_lea.vmem %s2, %s207
      %p209 = scmp.lt.s32.totalorder %s16, 1
      %s210 = scalar_select %p209, %s16, 1
      %s211 = scalar_lea.vmem %s3, %s210
      %p212 = scmp.lt.s32.totalorder %s16, 1
      %s213 = scalar_select %p212, %s16, 1
      %s214 = scalar_lea.vmem %s4, %s213
      %v216 = vld [vmem:[%s203] sm:$0xf]
      %v217 = vld [vmem:[%s203 + $0x4] sm:$0xf]
      %v218 = vld [vmem:[%s203 + $0x8] sm:$0xf]
      %v219 = vld [vmem:[%s203 + $0xc] sm:$0xf]
      %v220 = vld [vmem:[%s203 + $0x10] sm:$0xf]
      %v221 = vld [vmem:[%s203 + $0x14] sm:$0xf]
      %v222 = vld [vmem:[%s203 + $0x18] sm:$0xf]
      %v223 = vld [vmem:[%s203 + $0x1c] sm:$0xf]
      %v224 = vld [vmem:[%s1] sm:$0xf]
      %v225 = vld [vmem:[%s1 + $0x4] sm:$0xf]
      %v226 = vld [vmem:[%s1 + $0x8] sm:$0xf]
      %v227 = vld [vmem:[%s1 + $0xc] sm:$0xf]
      %v228 = vld [vmem:[%s1 + $0x10] sm:$0x3]
      %v237 = vunpack.c.l.b16 %v216
      %v238 = vunpack.c.l.b16 %v217
      %v239 = vunpack.c.l.b16 %v218
      %v240 = vunpack.c.l.b16 %v219
      %v241 = vunpack.c.l.b16 %v220
      %v242 = vunpack.c.l.b16 %v221
      %v243 = vunpack.c.l.b16 %v222
      %v244 = vunpack.c.l.b16 %v223
      %v245 = vpack.c.b16 %v238, %v237
      %v246 = vpack.c.b16 %v240, %v239
      %v247 = vpack.c.b16 %v242, %v241
      %v248 = vpack.c.b16 %v244, %v243
      %v254 = vunpack.c.l.b16 %v224
      %v255 = vunpack.c.l.b16 %v225
      %v256 = vunpack.c.l.b16 %v226
      %v257 = vunpack.c.l.b16 %v227
      %v258 = vunpack.c.l.b16 %v228
      %v259 = vpack.c.b16 %v255, %v254
      %v260 = vpack.c.b16 %v257, %v256
      %v261 = vpack.c.b16 %v258, %v258
      %vm264 = vcmask 293888
      %v266 = vsel %vm264, %v245, 0
      %v269 = vsel %vm264, %v246, 0
      %v272 = vsel %vm264, %v247, 0
      %v275 = vsel %vm264, %v248, 0
      %vm277 = vcmask 1041408
      %v279 = vsel %vm277, %v261, 0
      %281 = vmatprep.subr.bf16.mxu0 0
      %282 = vmatpush1.bf16.msra.mxu0 0
      %283 = vmatprep.subr.bf16.mxu0 0
      %284 = vmatpush1.bf16.msra.mxu0 0
      %285 = vmatprep.subr.bf16.mxu0 0
      %286 = vmatpush1.bf16.msra.mxu0 0
      %287 = vmatprep.subr.bf16.mxu0 0
      %288 = vmatpush1.bf16.msra.mxu0 0
      %289 = vmatprep.subr.bf16.mxu0 0
      %290 = vmatpush1.bf16.msra.mxu0 0
      %291 = vmatprep.subr.bf16.mxu0 0
      %292 = vmatpush1.bf16.msra.mxu0 %v279
      %293 = vmatprep.subr.bf16.mxu0 0
      %294 = vmatpush1.bf16.msra.mxu0 %v260
      %295 = vmatprep.subr.bf16.mxu0 0
      %296 = vmatpush1.bf16.msra.mxu0 %v259
      %297 = vmatprep.subr.bf16.mxu0 0
      %298 = vmatpush2.bf16.msra.mxu0 0
      %299 = vmatprep.subr.bf16.mxu0 0
      %300 = vmatpush2.bf16.msra.mxu0 0
      %301 = vmatprep.subr.bf16.mxu0 0
      %302 = vmatpush2.bf16.msra.mxu0 0
      %303 = vmatprep.subr.bf16.mxu0 0
      %304 = vmatpush2.bf16.msra.mxu0 0
      %305 = vmatprep.subr.bf16.mxu0 0
      %306 = vmatpush2.bf16.msra.mxu0 0
      %307 = vmatprep.subr.bf16.mxu0 0
      %308 = vmatpush2.bf16.msra.mxu0 0
      %309 = vmatprep.subr.bf16.mxu0 0
      %310 = vmatpush2.bf16.msra.mxu0 0
      %311 = vmatprep.subr.bf16.mxu0 0
      %312 = vmatpush2.bf16.msra.mxu0 0
      %313 = vmatprep.mubr.bf16.mxu0 0
      %314 = vmatmul.mubr.bf16.gmra.mxu0 %v266
      %v315 = vpop.f32.mrf.mxu0
      %v316 = vadd.f32 0.0, %v315
      %v317 = vpop.f32.mrf.mxu0
      %v318 = vpop.f32.mrf.mxu0
      %v319 = vadd.f32 0.0, %v318
      %v320 = vpop.f32.mrf.mxu0
      %321 = vmatprep.mubr.bf16.mxu0 0
      %322 = vmatmul.mubr.bf16.gmra.mxu0 %v269
      %v323 = vpop.f32.mrf.mxu0
      %v324 = vadd.f32 0.0, %v323
      %v325 = vpop.f32.mrf.mxu0
      %v326 = vpop.f32.mrf.mxu0
      %v327 = vadd.f32 0.0, %v326
      %v328 = vpop.f32.mrf.mxu0
      %329 = vmatprep.mubr.bf16.mxu0 0
      %330 = vmatmul.mubr.bf16.gmra.mxu0 %v272
      %v331 = vpop.f32.mrf.mxu0
      %v332 = vadd.f32 0.0, %v331
      %v333 = vpop.f32.mrf.mxu0
      %v334 = vpop.f32.mrf.mxu0
      %v335 = vadd.f32 0.0, %v334
      %v336 = vpop.f32.mrf.mxu0
      %337 = vmatprep.mubr.bf16.mxu0 0
      %338 = vmatmul.mubr.bf16.gmra.mxu0 %v275
      %v339 = vpop.f32.mrf.mxu0
      %v340 = vadd.f32 0.0, %v339
      %v341 = vpop.f32.mrf.mxu0
      %v342 = vpop.f32.mrf.mxu0
      %v343 = vadd.f32 0.0, %v342
      %v344 = vpop.f32.mrf.mxu0
      %345 = vdwg.mxu0
      %v346 = vpack.c.bf16 %v316, %v316
      %v347 = vpack.c.bf16 %v319, %v319
      %v348 = vpack.c.bf16 %v324, %v324
      %v349 = vpack.c.bf16 %v327, %v327
      %v350 = vpack.c.bf16 %v332, %v332
      %v351 = vpack.c.bf16 %v335, %v335
      %v352 = vpack.c.bf16 %v340, %v340
      %v353 = vpack.c.bf16 %v343, %v343
      %vm354 = vcmask 60416
      %355 = vst.msk [vmem:[%s208] sm:$0xf] %vm354, %v346
      %356 = vst.msk [vmem:[%s208 + $0x4] sm:$0xf] %vm354, %v347
      %357 = vst.msk [vmem:[%s208 + $0x8] sm:$0xf] %vm354, %v348
      %358 = vst.msk [vmem:[%s208 + $0xc] sm:$0xf] %vm354, %v349
      %359 = vst.msk [vmem:[%s208 + $0x10] sm:$0xf] %vm354, %v350
      %360 = vst.msk [vmem:[%s208 + $0x14] sm:$0xf] %vm354, %v351
      %361 = vst.msk [vmem:[%s208 + $0x18] sm:$0xf] %vm354, %v352
      %362 = vst.msk [vmem:[%s208 + $0x1c] sm:$0xf] %vm354, %v353
      %vm363 = vcmask 64512
      %v364 = vsel %vm363, %v316, 0.0
      %v365 = vsel %vm363, %v319, 0.0
      %v366 = vadd.f32 %v364, %v365
      %v367 = vsel %vm363, %v324, 0.0
      %v368 = vadd.f32 %v366, %v367
      %v369 = vsel %vm363, %v327, 0.0
      %v370 = vadd.f32 %v368, %v369
      %v371 = vsel %vm363, %v332, 0.0
      %v372 = vadd.f32 %v370, %v371
      %v373 = vsel %vm363, %v335, 0.0
      %v374 = vadd.f32 %v372, %v373
      %v375 = vsel %vm363, %v340, 0.0
      %v376 = vadd.f32 %v374, %v375
      %v377 = vsel %vm363, %v343, 0.0
      %v378 = vadd.f32 %v376, %v377
      %v379 = vrot.slane %v378, 4
      %v380 = vadd.f32 %v378, %v379
      %v381 = vrot.slane %v380, 2
      %v382 = vadd.f32 %v380, %v381
      %v383 = vrot.slane %v382, 1
      %v384 = vadd.f32 %v382, %v383
      %vm385 = vcmask 57344
      %386 = vst.msk [vmem:[%s211] sm:$0x1] %vm385, %v384
      %v387 = vmul.f32 %v316, %v316
      %v388 = vmul.f32 %v319, %v319
      %v389 = vmul.f32 %v324, %v324
      %v390 = vmul.f32 %v327, %v327
      %v391 = vmul.f32 %v332, %v332
      %v392 = vmul.f32 %v335, %v335
      %v393 = vmul.f32 %v340, %v340
      %v394 = vmul.f32 %v343, %v343
      %v395 = vsel %vm363, %v387, 0.0
      %v396 = vsel %vm363, %v388, 0.0
      %v397 = vadd.f32 %v395, %v396
      %v398 = vsel %vm363, %v389, 0.0
      %v399 = vadd.f32 %v397, %v398
      %v400 = vsel %vm363, %v390, 0.0
      %v401 = vadd.f32 %v399, %v400
      %v402 = vsel %vm363, %v391, 0.0
      %v403 = vadd.f32 %v401, %v402
      %v404 = vsel %vm363, %v392, 0.0
      %v405 = vadd.f32 %v403, %v404
      %v406 = vsel %vm363, %v393, 0.0
      %v407 = vadd.f32 %v405, %v406
      %v408 = vsel %vm363, %v394, 0.0
      %v409 = vadd.f32 %v407, %v408
      %v410 = vrot.slane %v409, 4
      %v411 = vadd.f32 %v409, %v410
      %v412 = vrot.slane %v411, 2
      %v413 = vadd.f32 %v411, %v412
      %v414 = vrot.slane %v413, 1
      %v415 = vadd.f32 %v413, %v414
      %416 = vst.msk [vmem:[%s214] sm:$0x1] %vm385, %v415
      %p417 = scmp.lt.s32.totalorder %s16, 1
      %s418 = scalar_select %p417, %s16, 1
      %s419 = smul.addr %s418, 8
      %s420 = smul.addr %s419, 4
      %s421 = scalar_lea.vmem %s2, %s420
      %p422 = scmp.lt.s32.totalorder %s16, 1
      %s423 = scalar_select %p422, %s16, 1
      %s424 = scalar_lea.vmem %s3, %s423
      %p425 = scmp.lt.s32.totalorder %s16, 1
      %s426 = scalar_select %p425, %s16, 1
      %s427 = scalar_lea.vmem %s4, %s426
      // Predicated region
      $region29: #{network_block2_forward.6} parent=27 // pred_check
        %p428 = pneg %p81
      $region30: #{network_block2_forward.6} parent=27 // pred_check_branch
        %430 = sbr.rel (%p428) target = $region32
      $region31: #{network_block2_forward.6} parent=27 // pred_region
        _
      $region32: #{network_block2_forward.6} parent=27 // pred_fallthru
        _
      // Predicated region
      $region33: #{network_block2_forward.6} parent=27 // pred_check
        %p431 = pneg %p107
      $region34: #{network_block2_forward.6} parent=27 // pred_check_branch
        %433 = sbr.rel (%p431) target = $region36
      $region35: #{network_block2_forward.6} parent=27 // pred_region
        _
      $region36: #{network_block2_forward.6} parent=27 // pred_fallthru
        _
      // Predicated region
      $region37: #{network_block2_forward.6} parent=27 // pred_check
        %p434 = pneg %p133
      $region38: #{network_block2_forward.6} parent=27 // pred_check_branch
        %436 = sbr.rel (%p434) target = $region40
      $region39: #{network_block2_forward.6} parent=27 // pred_region
        _
      $region40: #{network_block2_forward.6} parent=27 // pred_fallthru
        _
    $region28: #{network_block2_forward.6} parent=5 // pred_fallthru
      _
    %p437 = scmp.le.s32.totalorder 2, %s11
    // Predicated region
    $region41: #{network_block2_forward.6} parent=5 // pred_check
      %p438 = pneg %p437
    $region42: #{network_block2_forward.6} parent=5 // pred_check_branch
      %440 = sbr.rel (%p438) target = $region44
    $region43: #{network_block2_forward.6} parent=5 // pred_region
      %s441 = ssub.s32 %s11, 2
      // Predicated region
      $region45: #{network_block2_forward.6} parent=43 // pred_check
        %p442 = pneg %p87
      $region46: #{network_block2_forward.6} parent=43 // pred_check_branch
        %444 = sbr.rel (%p442) target = $region48
      $region47: #{network_block2_forward.6} parent=43 // pred_region
        %p445 = scmp.lt.s32.totalorder %s17, 1
        %s446 = scalar_select %p445, %s17, 1
        %s447 = smul.addr %s446, 8
        %s448 = smul.addr %s447, 4
        %s449 = scalar_lea.vmem %s2, %s448
      $region48: #{network_block2_forward.6} parent=43 // pred_fallthru
        _
      // Predicated region
      $region49: #{network_block2_forward.6} parent=43 // pred_check
        %p450 = pneg %p113
      $region50: #{network_block2_forward.6} parent=43 // pred_check_branch
        %452 = sbr.rel (%p450) target = $region52
      $region51: #{network_block2_forward.6} parent=43 // pred_region
        %p453 = scmp.lt.s32.totalorder %s17, 1
        %s454 = scalar_select %p453, %s17, 1
        %s455 = scalar_lea.vmem %s3, %s454
      $region52: #{network_block2_forward.6} parent=43 // pred_fallthru
        _
      // Predicated region
      $region53: #{network_block2_forward.6} parent=43 // pred_check
        %p456 = pneg %p139
      $region54: #{network_block2_forward.6} parent=43 // pred_check_branch
        %458 = sbr.rel (%p456) target = $region56
      $region55: #{network_block2_forward.6} parent=43 // pred_region
        %p459 = scmp.lt.s32.totalorder %s17, 1
        %s460 = scalar_select %p459, %s17, 1
        %s461 = scalar_lea.vmem %s4, %s460
      $region56: #{network_block2_forward.6} parent=43 // pred_fallthru
        _
    $region44: #{network_block2_forward.6} parent=5 // pred_fallthru
      _
  $region6: #{network_block2_forward.6} parent=0 // loop_footer
    %s15 = sadd.s32 1, %s11
  $region7: #{network_block2_forward.6} parent=0 // loop_footer_branch
    %10 = sbr.rel target = $region3
  $region8: #{network_block2_forward.6} parent=0 // loop_exit
    _

// kernel: network_block2_forward.7
$region0: #{network_block2_forward.7}
  #allocation0 [shape = 'u32[]', space=smem, size = 0x4, offset = 0x4, fixed_abs, tag = 'smem constant byte address 0x4 - core index']
  #allocation1 [shape = 'u32[144,128]{1,0:T(1,128)}', space=vmem, size = 0x12000, scoped, tag = 'internal scratch']
  %s0 = inlined_call_operand.vmem [shape: bf16[2,10,10,8], index: 0, kind: input, shape index: {}]
  %s1 = inlined_call_operand.vmem [shape: bf16[72,8], index: 1, kind: input, shape index: {}]
  %s2 = inlined_call_operand.vmem [shape: f32[1,1,8], index: 2, kind: input, shape index: {}]
  %s3 = inlined_call_operand.vmem [shape: f32[1,1,8], index: 3, kind: input, shape index: {}]
  %s4 = inlined_call_operand.vmem [shape: bf16[2,8,8,4], index: 4, kind: input, shape index: {}]
  %s5 = inlined_call_operand.vmem [shape: bf16[4,8], index: 5, kind: input, shape index: {}]
  %s6 = inlined_call_operand.vmem [shape: bf16[2,8,8,8], index: 6, kind: output, shape index: {0}]
  %s7 = inlined_call_operand.vmem [shape: f32[2,1,8], index: 7, kind: output, shape index: {1}]
  %s8 = inlined_call_operand.vmem [shape: f32[2,1,8], index: 8, kind: output, shape index: {2}]
  %9 = xla_tuple %s6, %s7, %s8
  %s10 = sld [smem:[#allocation0]]
  $region73: #{network_block2_forward.7} parent=0
    _
  %s12 = ssub.s32 1, %s10
  %s13 = scalar_select 0, %s12, %s10
  loop: start=0, step=1, limit=4
  $region2: #{network_block2_forward.7} parent=0 // loop_pre_header
    _
  $region3: #{network_block2_forward.7} parent=0 // loop_header
    %s15 = sphi 0, %s19
    %p16 = scmp.ge.s32.totalorder %s15, 4
    %s25 = sphi 0, %s27
    %s28 = sphi 0, %s25
    %s29 = sphi 0, %s28
    %s45 = sphi 0, %s29
    %s49 = sphi 0, %s49
    %s51 = sphi 0, %s49
    %s52 = sphi 0, %s51
    %s66 = sphi 0, %s52
    %s70 = sphi 0, %s70
    %s72 = sphi 0, %s70
    %s73 = sphi 0, %s72
    %s87 = sphi 0, %s73
    %s91 = sphi 0, %s91
    %s93 = sphi 0, %s91
    %s94 = sphi 0, %s93
    %s108 = sphi 0, %s94
    %s114 = sphi 0, %s116
    %s117 = sphi 0, %s114
    %s118 = sphi 0, %s117
    %s134 = sphi 0, %s118
    %s138 = sphi 0, %s138
    %s140 = sphi 0, %s138
    %s141 = sphi 0, %s140
    %s155 = sphi 0, %s141
    %s161 = sphi 0, %s163
    %s164 = sphi 0, %s161
    %s165 = sphi 0, %s164
    %s181 = sphi 0, %s165
    %s187 = sphi 0, %s189
    %s190 = sphi 0, %s187
    %s191 = sphi 0, %s190
    %s207 = sphi 0, %s191
    %s213 = sphi 0, %s215
    %s216 = sphi 0, %s213
    %s217 = sphi 0, %s216
    %s233 = sphi 0, %s217
  $region4: #{network_block2_forward.7} parent=0 // loop_header_branch
    %18 = sbr.rel (%p16) target = $region8
  $region5: #{network_block2_forward.7} parent=0 // loop_body
    %s20 = ssub.s32 %s15, 1
    %s21 = ssub.s32 %s15, 2
    %s22 = sadd.s32 %s15, 1
    %s23 = ssub.s32 %s15, %s22
    %p24 = scmp.eq.s32.totalorder %s23, 0
    %s26 = sadd.s32 %s25, 1
    %s27 = scalar_select %p24, %s25, %s26
    %p30 = pneg %p24
    %p31 = scmp.eq.s32.totalorder %s15, 1
    %p32 = por %p30, %p31
    %p33 = scmp.ne.s32.totalorder %s25, %s28
    %p34 = scmp.eq.s32.totalorder %s15, 0
    %p35 = por %p33, %p34
    %p36 = scmp.ne.s32.totalorder %s25, %s28
    %p37 = scmp.eq.s32.totalorder %s20, 1
    %p38 = por %p36, %p37
    %p39 = scmp.ne.s32.totalorder %s28, %s29
    %p40 = scmp.eq.s32.totalorder %s20, 0
    %p41 = por %p39, %p40
    %p42 = scmp.ne.s32.totalorder %s28, %s29
    %p43 = scmp.eq.s32.totalorder %s21, 1
    %p44 = por %p42, %p43
    %p46 = scmp.ne.s32.totalorder %s29, %s45
    %p47 = scmp.eq.s32.totalorder %s21, 0
    %p48 = por %p46, %p47
    %s50 = sadd.s32 %s49, 1
    %p53 = scmp.eq.s32.totalorder %s15, 1
    %p54 = scmp.ne.s32.totalorder %s49, %s51
    %p55 = scmp.eq.s32.totalorder %s15, 0
    %p56 = por %p54, %p55
    %p57 = scmp.ne.s32.totalorder %s49, %s51
    %p58 = scmp.eq.s32.totalorder %s20, 1
    %p59 = por %p57, %p58
    %p60 = scmp.ne.s32.totalorder %s51, %s52
    %p61 = scmp.eq.s32.totalorder %s20, 0
    %p62 = por %p60, %p61
    %p63 = scmp.ne.s32.totalorder %s51, %s52
    %p64 = scmp.eq.s32.totalorder %s21, 1
    %p65 = por %p63, %p64
    %p67 = scmp.ne.s32.totalorder %s52, %s66
    %p68 = scmp.eq.s32.totalorder %s21, 0
    %p69 = por %p67, %p68
    %s71 = sadd.s32 %s70, 1
    %p74 = scmp.eq.s32.totalorder %s15, 1
    %p75 = scmp.ne.s32.totalorder %s70, %s72
    %p76 = scmp.eq.s32.totalorder %s15, 0
    %p77 = por %p75, %p76
    %p78 = scmp.ne.s32.totalorder %s70, %s72
    %p79 = scmp.eq.s32.totalorder %s20, 1
    %p80 = por %p78, %p79
    %p81 = scmp.ne.s32.totalorder %s72, %s73
    %p82 = scmp.eq.s32.totalorder %s20, 0
    %p83 = por %p81, %p82
    %p84 = scmp.ne.s32.totalorder %s72, %s73
    %p85 = scmp.eq.s32.totalorder %s21, 1
    %p86 = por %p84, %p85
    %p88 = scmp.ne.s32.totalorder %s73, %s87
    %p89 = scmp.eq.s32.totalorder %s21, 0
    %p90 = por %p88, %p89
    %s92 = sadd.s32 %s91, 1
    %p95 = scmp.eq.s32.totalorder %s15, 1
    %p96 = scmp.ne.s32.totalorder %s91, %s93
    %p97 = scmp.eq.s32.totalorder %s15, 0
    %p98 = por %p96, %p97
    %p99 = scmp.ne.s32.totalorder %s91, %s93
    %p100 = scmp.eq.s32.totalorder %s20, 1
    %p101 = por %p99, %p100
    %p102 = scmp.ne.s32.totalorder %s93, %s94
    %p103 = scmp.eq.s32.totalorder %s20, 0
    %p104 = por %p102, %p103
    %p105 = scmp.ne.s32.totalorder %s93, %s94
    %p106 = scmp.eq.s32.totalorder %s21, 1
    %p107 = por %p105, %p106
    %p109 = scmp.ne.s32.totalorder %s94, %s108
    %p110 = scmp.eq.s32.totalorder %s21, 0
    %p111 = por %p109, %p110
    %s112 = ssub.s32 %s15, %s22
    %p113 = scmp.eq.s32.totalorder %s112, 0
    %s115 = sadd.s32 %s114, 1
    %s116 = scalar_select %p113, %s114, %s115
    %p119 = pneg %p113
    %p120 = scmp.eq.s32.totalorder %s15, 1
    %p121 = por %p119, %p120
    %p122 = scmp.ne.s32.totalorder %s114, %s117
    %p123 = scmp.eq.s32.totalorder %s15, 0
    %p124 = por %p122, %p123
    %p125 = scmp.ne.s32.totalorder %s114, %s117
    %p126 = scmp.eq.s32.totalorder %s20, 1
    %p127 = por %p125, %p126
    %p128 = scmp.ne.s32.totalorder %s117, %s118
    %p129 = scmp.eq.s32.totalorder %s20, 0
    %p130 = por %p128, %p129
    %p131 = scmp.ne.s32.totalorder %s117, %s118
    %p132 = scmp.eq.s32.totalorder %s21, 1
    %p133 = por %p131, %p132
    %p135 = scmp.ne.s32.totalorder %s118, %s134
    %p136 = scmp.eq.s32.totalorder %s21, 0
    %p137 = por %p135, %p136
    %s139 = sadd.s32 %s138, 1
    %p142 = scmp.eq.s32.totalorder %s15, 1
    %p143 = scmp.ne.s32.totalorder %s138, %s140
    %p144 = scmp.eq.s32.totalorder %s15, 0
    %p145 = por %p143, %p144
    %p146 = scmp.ne.s32.totalorder %s138, %s140
    %p147 = scmp.eq.s32.totalorder %s20, 1
    %p148 = por %p146, %p147
    %p149 = scmp.ne.s32.totalorder %s140, %s141
    %p150 = scmp.eq.s32.totalorder %s20, 0
    %p151 = por %p149, %p150
    %p152 = scmp.ne.s32.totalorder %s140, %s141
    %p153 = scmp.eq.s32.totalorder %s21, 1
    %p154 = por %p152, %p153
    %p156 = scmp.ne.s32.totalorder %s141, %s155
    %p157 = scmp.eq.s32.totalorder %s21, 0
    %p158 = por %p156, %p157
    %s159 = ssub.s32 %s15, %s22
    %p160 = scmp.eq.s32.totalorder %s159, 0
    %s162 = sadd.s32 %s161, 1
    %s163 = scalar_select %p160, %s161, %s162
    %p166 = pneg %p160
    %p167 = scmp.eq.s32.totalorder %s15, 1
    %p168 = por %p166, %p167
    %p169 = scmp.ne.s32.totalorder %s161, %s164
    %p170 = scmp.eq.s32.totalorder %s15, 0
    %p171 = por %p169, %p170
    %p172 = scmp.ne.s32.totalorder %s161, %s164
    %p173 = scmp.eq.s32.totalorder %s20, 1
    %p174 = por %p172, %p173
    %p175 = scmp.ne.s32.totalorder %s164, %s165
    %p176 = scmp.eq.s32.totalorder %s20, 0
    %p177 = por %p175, %p176
    %p178 = scmp.ne.s32.totalorder %s164, %s165
    %p179 = scmp.eq.s32.totalorder %s21, 1
    %p180 = por %p178, %p179
    %p182 = scmp.ne.s32.totalorder %s165, %s181
    %p183 = scmp.eq.s32.totalorder %s21, 0
    %p184 = por %p182, %p183
    %s185 = ssub.s32 %s15, %s22
    %p186 = scmp.eq.s32.totalorder %s185, 0
    %s188 = sadd.s32 %s187, 1
    %s189 = scalar_select %p186, %s187, %s188
    %p192 = pneg %p186
    %p193 = scmp.eq.s32.totalorder %s15, 1
    %p194 = por %p192, %p193
    %p195 = scmp.ne.s32.totalorder %s187, %s190
    %p196 = scmp.eq.s32.totalorder %s15, 0
    %p197 = por %p195, %p196
    %p198 = scmp.ne.s32.totalorder %s187, %s190
    %p199 = scmp.eq.s32.totalorder %s20, 1
    %p200 = por %p198, %p199
    %p201 = scmp.ne.s32.totalorder %s190, %s191
    %p202 = scmp.eq.s32.totalorder %s20, 0
    %p203 = por %p201, %p202
    %p204 = scmp.ne.s32.totalorder %s190, %s191
    %p205 = scmp.eq.s32.totalorder %s21, 1
    %p206 = por %p204, %p205
    %p208 = scmp.ne.s32.totalorder %s191, %s207
    %p209 = scmp.eq.s32.totalorder %s21, 0
    %p210 = por %p208, %p209
    %s211 = ssub.s32 %s15, %s22
    %p212 = scmp.eq.s32.totalorder %s211, 0
    %s214 = sadd.s32 %s213, 1
    %s215 = scalar_select %p212, %s213, %s214
    %p218 = pneg %p212
    %p219 = scmp.eq.s32.totalorder %s15, 1
    %p220 = por %p218, %p219
    %p221 = scmp.ne.s32.totalorder %s213, %s216
    %p222 = scmp.eq.s32.totalorder %s15, 0
    %p223 = por %p221, %p222
    %p224 = scmp.ne.s32.totalorder %s213, %s216
    %p225 = scmp.eq.s32.totalorder %s20, 1
    %p226 = por %p224, %p225
    %p227 = scmp.ne.s32.totalorder %s216, %s217
    %p228 = scmp.eq.s32.totalorder %s20, 0
    %p229 = por %p227, %p228
    %p230 = scmp.ne.s32.totalorder %s216, %s217
    %p231 = scmp.eq.s32.totalorder %s21, 1
    %p232 = por %p230, %p231
    %p234 = scmp.ne.s32.totalorder %s217, %s233
    %p235 = scmp.eq.s32.totalorder %s21, 0
    %p236 = por %p234, %p235
    %p237 = scmp.le.s32.totalorder 1, %s15
    %p238 = scmp.lt.s32.totalorder %s15, 3
    %p239 = pnand %p237, %p238
    %p240 = pneg %p239
    // Predicated region
    $region9: #{network_block2_forward.7} parent=5 // pred_check
      _
    $region10: #{network_block2_forward.7} parent=5 // pred_check_branch
      %242 = sbr.rel (%p239) target = $region12
    $region11: #{network_block2_forward.7} parent=5 // pred_region
      %s243 = ssub.s32 %s15, 1
      // Predicated region
      $region13: #{network_block2_forward.7} parent=11 // pred_check
        %p244 = pneg %p62
      $region14: #{network_block2_forward.7} parent=11 // pred_check_branch
        %246 = sbr.rel (%p244) target = $region16
      $region15: #{network_block2_forward.7} parent=11 // pred_region
        _
      $region16: #{network_block2_forward.7} parent=11 // pred_fallthru
        _
      // Predicated region
      $region17: #{network_block2_forward.7} parent=11 // pred_check
        %p247 = pneg %p83
      $region18: #{network_block2_forward.7} parent=11 // pred_check_branch
        %249 = sbr.rel (%p247) target = $region20
      $region19: #{network_block2_forward.7} parent=11 // pred_region
        _
      $region20: #{network_block2_forward.7} parent=11 // pred_fallthru
        _
      // Predicated region
      $region21: #{network_block2_forward.7} parent=11 // pred_check
        %p250 = pneg %p104
      $region22: #{network_block2_forward.7} parent=11 // pred_check_branch
        %252 = sbr.rel (%p250) target = $region24
      $region23: #{network_block2_forward.7} parent=11 // pred_region
        _
      $region24: #{network_block2_forward.7} parent=11 // pred_fallthru
        _
      // Predicated region
      $region25: #{network_block2_forward.7} parent=11 // pred_check
        %p253 = pneg %p151
      $region26: #{network_block2_forward.7} parent=11 // pred_check_branch
        %255 = sbr.rel (%p253) target = $region28
      $region27: #{network_block2_forward.7} parent=11 // pred_region
        _
      $region28: #{network_block2_forward.7} parent=11 // pred_fallthru
        _
    $region12: #{network_block2_forward.7} parent=5 // pred_fallthru
      _
    %p256 = scmp.lt.s32.totalorder %s15, 2
    // Predicated region
    $region29: #{network_block2_forward.7} parent=5 // pred_check
      %p257 = pneg %p256
    $region30: #{network_block2_forward.7} parent=5 // pred_check_branch
      %259 = sbr.rel (%p257) target = $region32
    $region31: #{network_block2_forward.7} parent=5 // pred_region
      // Predicated region
      $region33: #{network_block2_forward.7} parent=31 // pred_check
        %p260 = pneg %p35
      $region34: #{network_block2_forward.7} parent=31 // pred_check_branch
        %262 = sbr.rel (%p260) target = $region36
      $region35: #{network_block2_forward.7} parent=31 // pred_region
        %p263 = scmp.lt.s32.totalorder %s15, 1
        %s264 = scalar_select %p263, %s15, 1
        %s265 = smul.addr %s264, 20
        %s266 = smul.addr %s265, 4
        %s267 = scalar_lea.vmem %s0, %s266
      $region36: #{network_block2_forward.7} parent=31 // pred_fallthru
        _
      // Predicated region
      $region37: #{network_block2_forward.7} parent=31 // pred_check
        %p268 = pneg %p124
      $region38: #{network_block2_forward.7} parent=31 // pred_check_branch
        %270 = sbr.rel (%p268) target = $region40
      $region39: #{network_block2_forward.7} parent=31 // pred_region
        %p271 = scmp.lt.s32.totalorder %s15, 1
        %s272 = scalar_select %p271, %s15, 1
        %s273 = smul.addr %s272, 8
        %s274 = smul.addr %s273, 4
        %s275 = scalar_lea.vmem %s4, %s274
      $region40: #{network_block2_forward.7} parent=31 // pred_fallthru
        _
    $region32: #{network_block2_forward.7} parent=5 // pred_fallthru
      _
    %p276 = scmp.le.s32.totalorder 1, %s15
    %p277 = scmp.lt.s32.totalorder %s15, 3
    %p278 = pnand %p276, %p277
    %p279 = pneg %p278
    // Predicated region
    $region41: #{network_block2_forward.7} parent=5 // pred_check
      _
    $region42: #{network_block2_forward.7} parent=5 // pred_check_branch
      %281 = sbr.rel (%p278) target = $region44
    $region43: #{network_block2_forward.7} parent=5 // pred_region
      %s282 = ssub.s32 %s15, 1
      %p283 = scmp.lt.s32.totalorder %s20, 1
      %s284 = scalar_select %p283, %s20, 1
      %s285 = smul.addr %s284, 20
      %s286 = smul.addr %s285, 4
      %s287 = scalar_lea.vmem %s0, %s286
      %p288 = pneg %p41
      %p289 = pneg %p38
      %p290 = pneg %p62
      %p291 = pneg %p59
      %p292 = pneg %p83
      %p293 = pneg %p80
      %p294 = pneg %p104
      %p295 = pneg %p101
      %p296 = scmp.lt.s32.totalorder %s20, 1
      %s297 = scalar_select %p296, %s20, 1
      %s298 = smul.addr %s297, 8
      %s299 = smul.addr %s298, 4
      %s300 = scalar_lea.vmem %s4, %s299
      %p301 = pneg %p130
      %p302 = pneg %p127
      %p303 = pneg %p151
      %p304 = pneg %p148
      %p305 = pneg %p177
      %p306 = pneg %p174
      %p307 = scmp.lt.s32.totalorder %s20, 1
      %s308 = scalar_select %p307, %s20, 1
      %s309 = smul.addr %s308, 8
      %s310 = smul.addr %s309, 4
      %s311 = scalar_lea.vmem %s6, %s310
      %p312 = pneg %p203
      %p313 = pneg %p200
      %p314 = scmp.lt.s32.totalorder %s20, 1
      %s315 = scalar_select %p314, %s20, 1
      %s316 = scalar_lea.vmem %s7, %s315
      %p317 = pneg %p229
      %p318 = pneg %p226
      %p319 = scmp.lt.s32.totalorder %s20, 1
      %s320 = scalar_select %p319, %s20, 1
      %s321 = scalar_lea.vmem %s8, %s320
      %p322 = scmp.lt.s32.totalorder %s20, 1
      %s323 = scalar_select %p322, %s20, 1
      %s324 = smul.addr %s323, 20
      %s325 = smul.addr %s324, 4
      %s326 = scalar_lea.vmem %s0, %s325
      %p327 = scmp.lt.s32.totalorder %s20, 1
      %s328 = scalar_select %p327, %s20, 1
      %s329 = smul.addr %s328, 8
      %s330 = smul.addr %s329, 4
      %s331 = scalar_lea.vmem %s4, %s330
      %p332 = scmp.lt.s32.totalorder %s20, 1
      %s333 = scalar_select %p332, %s20, 1
      %s334 = smul.addr %s333, 8
      %s335 = smul.addr %s334, 4
      %s336 = scalar_lea.vmem %s6, %s335
      %p337 = scmp.lt.s32.totalorder %s20, 1
      %s338 = scalar_select %p337, %s20, 1
      %s339 = scalar_lea.vmem %s7, %s338
      %p340 = scmp.lt.s32.totalorder %s20, 1
      %s341 = scalar_select %p340, %s20, 1
      %s342 = scalar_lea.vmem %s8, %s341
      %v344 = vld [vmem:[%s326] sm:$0xf]
      %v345 = vld [vmem:[%s326 + $0x4] sm:$0x1]
      %v346 = vld [vmem:[%s326 + $0x8] sm:$0xf]
      %v347 = vld [vmem:[%s326 + $0xc] sm:$0x1]
      %v348 = vld [vmem:[%s326 + $0x10] sm:$0xf]
      %v349 = vld [vmem:[%s326 + $0x14] sm:$0x1]
      %v350 = vld [vmem:[%s326 + $0x18] sm:$0xf]
      %v351 = vld [vmem:[%s326 + $0x1c] sm:$0x1]
      %v352 = vld [vmem:[%s326 + $0x20] sm:$0xf]
      %v353 = vld [vmem:[%s326 + $0x24] sm:$0x1]
      %v354 = vld [vmem:[%s326 + $0x28] sm:$0xf]
      %v355 = vld [vmem:[%s326 + $0x2c] sm:$0x1]
      %v356 = vld [vmem:[%s326 + $0x30] sm:$0xf]
      %v357 = vld [vmem:[%s326 + $0x34] sm:$0x1]
      %v358 = vld [vmem:[%s326 + $0x38] sm:$0xf]
      %v359 = vld [vmem:[%s326 + $0x3c] sm:$0x1]
      %v360 = vld [vmem:[%s326 + $0x40] sm:$0xf]
      %v361 = vld [vmem:[%s326 + $0x44] sm:$0x1]
      %v362 = vld [vmem:[%s326 + $0x48] sm:$0xf]
      %v363 = vld [vmem:[%s326 + $0x4c] sm:$0x1]
      %v364 = vunpack.c.l.bf16 %v344
      %v365 = vunpack.c.l.bf16 %v345
      %v366 = vunpack.c.l.bf16 %v346
      %v367 = vunpack.c.l.bf16 %v347
      %v368 = vunpack.c.l.bf16 %v348
      %v369 = vunpack.c.l.bf16 %v349
      %v370 = vunpack.c.l.bf16 %v350
      %v371 = vunpack.c.l.bf16 %v351
      %v372 = vunpack.c.l.bf16 %v352
      %v373 = vunpack.c.l.bf16 %v353
      %v374 = vunpack.c.l.bf16 %v354
      %v375 = vunpack.c.l.bf16 %v355
      %v376 = vunpack.c.l.bf16 %v356
      %v377 = vunpack.c.l.bf16 %v357
      %v378 = vunpack.c.l.bf16 %v358
      %v379 = vunpack.c.l.bf16 %v359
      %v380 = vunpack.c.l.bf16 %v360
      %v381 = vunpack.c.l.bf16 %v361
      %v382 = vunpack.c.l.bf16 %v362
      %v383 = vunpack.c.l.bf16 %v363
      %v384 = vld [vmem:[%s2] sm:$0x1]
      %v386 = vlaneseq
      %v387 = vshrl.u32 %v386, 7
      %v388 = vsub.s32 0, %v387
      %v389 = vrot.slane %v384, %v388
      %v391 = vmul.f32 %v364, %v389
      %v392 = vmul.f32 %v365, %v389
      %v393 = vmul.f32 %v366, %v389
      %v394 = vmul.f32 %v367, %v389
      %v395 = vmul.f32 %v368, %v389
      %v396 = vmul.f32 %v369, %v389
      %v397 = vmul.f32 %v370, %v389
      %v398 = vmul.f32 %v371, %v389
      %v399 = vmul.f32 %v372, %v389
      %v400 = vmul.f32 %v373, %v389
      %v401 = vmul.f32 %v374, %v389
      %v402 = vmul.f32 %v375, %v389
      %v403 = vmul.f32 %v376, %v389
      %v404 = vmul.f32 %v377, %v389
      %v405 = vmul.f32 %v378, %v389
      %v406 = vmul.f32 %v379, %v389
      %v407 = vmul.f32 %v380, %v389
      %v408 = vmul.f32 %v381, %v389
      %v409 = vmul.f32 %v382, %v389
      %v410 = vmul.f32 %v383, %v389
      %v411 = vld [vmem:[%s3] sm:$0x1]
      %v413 = vlaneseq
      %v414 = vshrl.u32 %v413, 7
      %v415 = vsub.s32 0, %v414
      %v416 = vrot.slane %v411, %v415
      %v418 = vadd.f32 %v391, %v416
      %v419 = vadd.f32 %v392, %v416
      %v420 = vadd.f32 %v393, %v416
      %v421 = vadd.f32 %v394, %v416
      %v422 = vadd.f32 %v395, %v416
      %v423 = vadd.f32 %v396, %v416
      %v424 = vadd.f32 %v397, %v416
      %v425 = vadd.f32 %v398, %v416
      %v426 = vadd.f32 %v399, %v416
      %v427 = vadd.f32 %v400, %v416
      %v428 = vadd.f32 %v401, %v416
      %v429 = vadd.f32 %v402, %v416
      %v430 = vadd.f32 %v403, %v416
      %v431 = vadd.f32 %v404, %v416
      %v432 = vadd.f32 %v405, %v416
      %v433 = vadd.f32 %v406, %v416
      %v434 = vadd.f32 %v407, %v416
      %v435 = vadd.f32 %v408, %v416
      %v436 = vadd.f32 %v409, %v416
      %v437 = vadd.f32 %v410, %v416
      %v438 = vmax.f32 %v418, 0.0
      %v439 = vmax.f32 %v419, 0.0
      %v440 = vmax.f32 %v420, 0.0
      %v441 = vmax.f32 %v421, 0.0
      %v442 = vmax.f32 %v422, 0.0
      %v443 = vmax.f32 %v423, 0.0
      %v444 = vmax.f32 %v424, 0.0
      %v445 = vmax.f32 %v425, 0.0
      %v446 = vmax.f32 %v426, 0.0
      %v447 = vmax.f32 %v427, 0.0
      %v448 = vmax.f32 %v428, 0.0
      %v449 = vmax.f32 %v429, 0.0
      %v450 = vmax.f32 %v430, 0.0
      %v451 = vmax.f32 %v431, 0.0
      %v452 = vmax.f32 %v432, 0.0
      %v453 = vmax.f32 %v433, 0.0
      %v454 = vmax.f32 %v434, 0.0
      %v455 = vmax.f32 %v435, 0.0
      %v456 = vmax.f32 %v436, 0.0
      %v457 = vmax.f32 %v437, 0.0
      %v458 = vlaneseq
      %v459 = vshrl.u32 %v458, 7
      %v460 = vadd.s32 %v459, 8
      %vm461 = vcmp.ge.s32.totalorder %v459, 1
      %vm462 = vcmp.ge.s32.totalorder %v460, 1
      %vm463 = vmand 0, %vm461
      %vm464 = vmand 0, %vm462
      %vm465 = vmand 1, %vm461
      %vm466 = vmand 1, %vm462
      %vm467 = vcmp.lt.s32.totalorder %v459, 9
      %vm468 = vcmp.lt.s32.totalorder %v460, 9
      %vm469 = vmand %vm463, %vm467
      %vm470 = vmand %vm464, %vm468
      %vm471 = vmand %vm465, %vm467
      %vm472 = vmand %vm466, %vm468
      %v473 = vsel %vm469, %v438, 0.0
      %v474 = vsel %vm470, %v439, 0.0
      %v475 = vsel %vm471, %v440, 0.0
      %v476 = vsel %vm472, %v441, 0.0
      %v477 = vsel %vm471, %v442, 0.0
      %v478 = vsel %vm472, %v443, 0.0
      %v479 = vsel %vm471, %v444, 0.0
      %v480 = vsel %vm472, %v445, 0.0
      %v481 = vsel %vm471, %v446, 0.0
      %v482 = vsel %vm472, %v447, 0.0
      %v483 = vsel %vm471, %v448, 0.0
      %v484 = vsel %vm472, %v449, 0.0
      %v485 = vsel %vm471, %v450, 0.0
      %v486 = vsel %vm472, %v451, 0.0
      %v487 = vsel %vm471, %v452, 0.0
      %v488 = vsel %vm472, %v453, 0.0
      %v489 = vsel %vm471, %v454, 0.0
      %v490 = vsel %vm472, %v455, 0.0
      %v491 = vsel %vm469, %v456, 0.0
      %v492 = vsel %vm470, %v457, 0.0
      %v493 = vpack.c.bf16 %v474, %v473
      %v494 = vpack.c.bf16 %v476, %v475
      %v495 = vpack.c.bf16 %v478, %v477
      %v496 = vpack.c.bf16 %v480, %v479
      %v497 = vpack.c.bf16 %v482, %v481
      %v498 = vpack.c.bf16 %v484, %v483
      %v499 = vpack.c.bf16 %v486, %v485
      %v500 = vpack.c.bf16 %v488, %v487
      %v501 = vpack.c.bf16 %v490, %v489
      %v502 = vpack.c.bf16 %v492, %v491
      %v504 = vshrl.u32 %v493, 16
      %v506 = vshll.u32 %v493, 16
      %v508 = vrot.slane %v506, 1
      %v509 = vor.u32 %v504, %v508
      %v511 = vshrl.u32 %v494, 16
      %v513 = vshll.u32 %v494, 16
      %v515 = vrot.slane %v513, 1
      %v516 = vor.u32 %v511, %v515
      %v518 = vshrl.u32 %v495, 16
      %v520 = vshll.u32 %v495, 16
      %v522 = vrot.slane %v520, 1
      %v523 = vor.u32 %v518, %v522
      %v525 = vshrl.u32 %v496, 16
      %v527 = vshll.u32 %v496, 16
      %v529 = vrot.slane %v527, 1
      %v530 = vor.u32 %v525, %v529
      %v532 = vshrl.u32 %v497, 16
      %v534 = vshll.u32 %v497, 16
      %v536 = vrot.slane %v534, 1
      %v537 = vor.u32 %v532, %v536
      %v539 = vshrl.u32 %v498, 16
      %v541 = vshll.u32 %v498, 16
      %v543 = vrot.slane %v541, 1
      %v544 = vor.u32 %v539, %v543
      %v546 = vshrl.u32 %v499, 16
      %v548 = vshll.u32 %v499, 16
      %v550 = vrot.slane %v548, 1
      %v551 = vor.u32 %v546, %v550
      %v553 = vshrl.u32 %v500, 16
      %v555 = vshll.u32 %v500, 16
      %v557 = vrot.slane %v555, 1
      %v558 = vor.u32 %v553, %v557
      %559 = vrot.lane.b32.xlu0 %v509, 8
      %v560 = vpop.permute.xlu0 %559
      %561 = vrot.lane.b32.xlu0 %v516, 8
      %v562 = vpop.permute.xlu0 %561
      %563 = vrot.lane.b32.xlu0 %v523, 8
      %v564 = vpop.permute.xlu0 %563
      %565 = vrot.lane.b32.xlu0 %v530, 8
      %v566 = vpop.permute.xlu0 %565
      %567 = vrot.lane.b32.xlu0 %v537, 8
      %v568 = vpop.permute.xlu0 %567
      %569 = vrot.lane.b32.xlu0 %v544, 8
      %v570 = vpop.permute.xlu0 %569
      %571 = vrot.lane.b32.xlu0 %v551, 8
      %v572 = vpop.permute.xlu0 %571
      %573 = vrot.lane.b32.xlu0 %v558, 8
      %v574 = vpop.permute.xlu0 %573
      %v583 = vrot.slane %v493, 1
      %v584 = vrot.slane %v494, 1
      %v585 = vrot.slane %v495, 1
      %v586 = vrot.slane %v496, 1
      %v587 = vrot.slane %v497, 1
      %v588 = vrot.slane %v498, 1
      %v589 = vrot.slane %v499, 1
      %v590 = vrot.slane %v500, 1
      %591 = vrot.lane.b32.xlu0 %v583, 16
      %v592 = vpop.permute.xlu0 %591
      %593 = vrot.lane.b32.xlu0 %v584, 16
      %v594 = vpop.permute.xlu0 %593
      %595 = vrot.lane.b32.xlu0 %v585, 16
      %v596 = vpop.permute.xlu0 %595
      %597 = vrot.lane.b32.xlu0 %v586, 16
      %v598 = vpop.permute.xlu0 %597
      %599 = vrot.lane.b32.xlu0 %v587, 16
      %v600 = vpop.permute.xlu0 %599
      %601 = vrot.lane.b32.xlu0 %v588, 16
      %v602 = vpop.permute.xlu0 %601
      %603 = vrot.lane.b32.xlu0 %v589, 16
      %v604 = vpop.permute.xlu0 %603
      %605 = vrot.lane.b32.xlu0 %v590, 16
      %v606 = vpop.permute.xlu0 %605
      %608 = vrot.lane.b32.xlu0 %v494, 24
      %v609 = vpop.permute.xlu0 %608
      %610 = vrot.lane.b32.xlu0 %v495, 24
      %v611 = vpop.permute.xlu0 %610
      %612 = vrot.lane.b32.xlu0 %v496, 24
      %v613 = vpop.permute.xlu0 %612
      %614 = vrot.lane.b32.xlu0 %v497, 24
      %v615 = vpop.permute.xlu0 %614
      %616 = vrot.lane.b32.xlu0 %v498, 24
      %v617 = vpop.permute.xlu0 %616
      %618 = vrot.lane.b32.xlu0 %v499, 24
      %v619 = vpop.permute.xlu0 %618
      %620 = vrot.lane.b32.xlu0 %v500, 24
      %v621 = vpop.permute.xlu0 %620
      %622 = vrot.lane.b32.xlu0 %v501, 24
      %v623 = vpop.permute.xlu0 %622
      %v625 = vshrl.u32 %v501, 16
      %v627 = vshll.u32 %v501, 16
      %v629 = vrot.slane %v627, 1
      %v630 = vor.u32 %v625, %v629
      %631 = vrot.lane.b32.xlu0 %v516, 32
      %v632 = vpop.permute.xlu0 %631
      %633 = vrot.lane.b32.xlu0 %v523, 32
      %v634 = vpop.permute.xlu0 %633
      %635 = vrot.lane.b32.xlu0 %v530, 32
      %v636 = vpop.permute.xlu0 %635
      %637 = vrot.lane.b32.xlu0 %v537, 32
      %v638 = vpop.permute.xlu0 %637
      %639 = vrot.lane.b32.xlu0 %v544, 32
      %v640 = vpop.permute.xlu0 %639
      %641 = vrot.lane.b32.xlu0 %v551, 32
      %v642 = vpop.permute.xlu0 %641
      %643 = vrot.lane.b32.xlu0 %v558, 32
      %v644 = vpop.permute.xlu0 %643
      %645 = vrot.lane.b32.xlu0 %v630, 32
      %v646 = vpop.permute.xlu0 %645
      %v647 = vrot.slane %v501, 1
      %648 = vrot.lane.b32.xlu0 %v584, 40
      %v649 = vpop.permute.xlu0 %648
      %650 = vrot.lane.b32.xlu0 %v585, 40
      %v651 = vpop.permute.xlu0 %650
      %652 = vrot.lane.b32.xlu0 %v586, 40
      %v653 = vpop.permute.xlu0 %652
      %654 = vrot.lane.b32.xlu0 %v587, 40
      %v655 = vpop.permute.xlu0 %654
      %656 = vrot.lane.b32.xlu0 %v588, 40
      %v657 = vpop.permute.xlu0 %656
      %658 = vrot.lane.b32.xlu0 %v589, 40
      %v659 = vpop.permute.xlu0 %658
      %660 = vrot.lane.b32.xlu0 %v590, 40
      %v661 = vpop.permute.xlu0 %660
      %662 = vrot.lane.b32.xlu0 %v647, 40
      %v663 = vpop.permute.xlu0 %662
      %665 = vrot.lane.b32.xlu0 %v495, 48
      %v666 = vpop.permute.xlu0 %665
      %667 = vrot.lane.b32.xlu0 %v496, 48
      %v668 = vpop.permute.xlu0 %667
      %669 = vrot.lane.b32.xlu0 %v497, 48
      %v670 = vpop.permute.xlu0 %669
      %671 = vrot.lane.b32.xlu0 %v498, 48
      %v672 = vpop.permute.xlu0 %671
      %673 = vrot.lane.b32.xlu0 %v499, 48
      %v674 = vpop.permute.xlu0 %673
      %675 = vrot.lane.b32.xlu0 %v500, 48
      %v676 = vpop.permute.xlu0 %675
      %677 = vrot.lane.b32.xlu0 %v501, 48
      %v678 = vpop.permute.xlu0 %677
      %679 = vrot.lane.b32.xlu0 %v502, 48
      %v680 = vpop.permute.xlu0 %679
      %v682 = vshrl.u32 %v502, 16
      %v684 = vshll.u32 %v502, 16
      %v686 = vrot.slane %v684, 1
      %v687 = vor.u32 %v682, %v686
      %688 = vrot.lane.b32.xlu0 %v523, 56
      %v689 = vpop.permute.xlu0 %688
      %690 = vrot.lane.b32.xlu0 %v530, 56
      %v691 = vpop.permute.xlu0 %690
      %692 = vrot.lane.b32.xlu0 %v537, 56
      %v693 = vpop.permute.xlu0 %692
      %694 = vrot.lane.b32.xlu0 %v544, 56
      %v695 = vpop.permute.xlu0 %694
      %696 = vrot.lane.b32.xlu0 %v551, 56
      %v697 = vpop.permute.xlu0 %696
      %698 = vrot.lane.b32.xlu0 %v558, 56
      %v699 = vpop.permute.xlu0 %698
      %700 = vrot.lane.b32.xlu0 %v630, 56
      %v701 = vpop.permute.xlu0 %700
      %702 = vrot.lane.b32.xlu0 %v687, 56
      %v703 = vpop.permute.xlu0 %702
      %v704 = vrot.slane %v502, 1
      %705 = vrot.lane.b32.xlu0 %v585, 64
      %v706 = vpop.permute.xlu0 %705
      %707 = vrot.lane.b32.xlu0 %v586, 64
      %v708 = vpop.permute.xlu0 %707
      %709 = vrot.lane.b32.xlu0 %v587, 64
      %v710 = vpop.permute.xlu0 %709
      %711 = vrot.lane.b32.xlu0 %v588, 64
      %v712 = vpop.permute.xlu0 %711
      %713 = vrot.lane.b32.xlu0 %v589, 64
      %v714 = vpop.permute.xlu0 %713
      %715 = vrot.lane.b32.xlu0 %v590, 64
      %v716 = vpop.permute.xlu0 %715
      %717 = vrot.lane.b32.xlu0 %v647, 64
      %v718 = vpop.permute.xlu0 %717
      %719 = vrot.lane.b32.xlu0 %v704, 64
      %v720 = vpop.permute.xlu0 %719
      %vm721 = vcmask 64512
      %v723 = vsel %vm721, %v493, %v560
      %v725 = vsel %vm721, %v494, %v562
      %v727 = vsel %vm721, %v495, %v564
      %v729 = vsel %vm721, %v496, %v566
      %v731 = vsel %vm721, %v497, %v568
      %v733 = vsel %vm721, %v498, %v570
      %v735 = vsel %vm721, %v499, %v572
      %v737 = vsel %vm721, %v500, %v574
      %vm738 = vcmask 130048
      %v740 = vsel %vm738, %v723, %v592
      %v742 = vsel %vm738, %v725, %v594
      %v744 = vsel %vm738, %v727, %v596
      %v746 = vsel %vm738, %v729, %v598
      %v748 = vsel %vm738, %v731, %v600
      %v750 = vsel %vm738, %v733, %v602
      %v752 = vsel %vm738, %v735, %v604
      %v754 = vsel %vm738, %v737, %v606
      %vm755 = vcmask 195584
      %v757 = vsel %vm755, %v740, %v609
      %v759 = vsel %vm755, %v742, %v611
      %v761 = vsel %vm755, %v744, %v613
      %v763 = vsel %vm755, %v746, %v615
      %v765 = vsel %vm755, %v748, %v617
      %v767 = vsel %vm755, %v750, %v619
      %v769 = vsel %vm755, %v752, %v621
      %v771 = vsel %vm755, %v754, %v623
      %vm772 = vcmask 261120
      %v774 = vsel %vm772, %v757, %v632
      %v776 = vsel %vm772, %v759, %v634
      %v778 = vsel %vm772, %v761, %v636
      %v780 = vsel %vm772, %v763, %v638
      %v782 = vsel %vm772, %v765, %v640
      %v784 = vsel %vm772, %v767, %v642
      %v786 = vsel %vm772, %v769, %v644
      %v788 = vsel %vm772, %v771, %v646
      %vm789 = vcmask 326656
      %v791 = vsel %vm789, %v774, %v649
      %v793 = vsel %vm789, %v776, %v651
      %v795 = vsel %vm789, %v778, %v653
      %v797 = vsel %vm789, %v780, %v655
      %v799 = vsel %vm789, %v782, %v657
      %v801 = vsel %vm789, %v784, %v659
      %v803 = vsel %vm789, %v786, %v661
      %v805 = vsel %vm789, %v788, %v663
      %vm806 = vcmask 392192
      %v808 = vsel %vm806, %v791, %v666
      %v810 = vsel %vm806, %v793, %v668
      %v812 = vsel %vm806, %v795, %v670
      %v814 = vsel %vm806, %v797, %v672
      %v816 = vsel %vm806, %v799, %v674
      %v818 = vsel %vm806, %v801, %v676
      %v820 = vsel %vm806, %v803, %v678
      %v822 = vsel %vm806, %v805, %v680
      %vm823 = vcmask 457728
      %v825 = vsel %vm823, %v808, %v689
      %v827 = vsel %vm823, %v810, %v691
      %v829 = vsel %vm823, %v812, %v693
      %v831 = vsel %vm823, %v814, %v695
      %v833 = vsel %vm823, %v816, %v697
      %v835 = vsel %vm823, %v818, %v699
      %v837 = vsel %vm823, %v820, %v701
      %v839 = vsel %vm823, %v822, %v703
      %vm840 = vcmask 523264
      %v842 = vsel %vm840, %v825, %v706
      %v844 = vsel %vm840, %v827, %v708
      %v846 = vsel %vm840, %v829, %v710
      %v848 = vsel %vm840, %v831, %v712
      %v850 = vsel %vm840, %v833, %v714
      %v852 = vsel %vm840, %v835, %v716
      %v854 = vsel %vm840, %v837, %v718
      %v856 = vsel %vm840, %v839, %v720
      %v857 = vld [vmem:[%s1] sm:$0xf]
      %v858 = vld [vmem:[%s1 + $0x4] sm:$0xf]
      %v859 = vld [vmem:[%s1 + $0x8] sm:$0xf]
      %v860 = vld [vmem:[%s1 + $0xc] sm:$0xf]
      %v861 = vld [vmem:[%s1 + $0x10] sm:$0xf]
      %v862 = vld [vmem:[%s1 + $0x14] sm:$0xf]
      %v863 = vld [vmem:[%s1 + $0x18] sm:$0xf]
      %v864 = vld [vmem:[%s1 + $0x1c] sm:$0xf]
      %v865 = vld [vmem:[%s1 + $0x20] sm:$0xf]
      %v866 = vld [vmem:[%s331] sm:$0xf]
      %v867 = vld [vmem:[%s331 + $0x4] sm:$0xf]
      %v868 = vld [vmem:[%s331 + $0x8] sm:$0xf]
      %v869 = vld [vmem:[%s331 + $0xc] sm:$0xf]
      %v870 = vld [vmem:[%s331 + $0x10] sm:$0xf]
      %v871 = vld [vmem:[%s331 + $0x14] sm:$0xf]
      %v872 = vld [vmem:[%s331 + $0x18] sm:$0xf]
      %v873 = vld [vmem:[%s331 + $0x1c] sm:$0xf]
      %v874 = vld [vmem:[%s5] sm:$0x3]
      %v883 = vunpack.c.l.b16 %v866
      %v884 = vunpack.c.l.b16 %v867
      %v885 = vunpack.c.l.b16 %v868
      %v886 = vunpack.c.l.b16 %v869
      %v887 = vunpack.c.l.b16 %v870
      %v888 = vunpack.c.l.b16 %v871
      %v889 = vunpack.c.l.b16 %v872
      %v890 = vunpack.c.l.b16 %v873
      %v891 = vpack.c.b16 %v884, %v883
      %v892 = vpack.c.b16 %v886, %v885
      %v893 = vpack.c.b16 %v888, %v887
      %v894 = vpack.c.b16 %v890, %v889
      %vm895 = vcmask 31744
      %v897 = vsel %vm895, %v891, 0
      %v900 = vsel %vm895, %v892, 0
      %v903 = vsel %vm895, %v893, 0
      %v906 = vsel %vm895, %v894, 0
      %vm908 = vcmask 1041408
      %v910 = vsel %vm908, %v874, 0
      %912 = vmatprep.subr.bf16.mxu0 0
      %913 = vmatpush1.bf16.msra.mxu0 0
      %914 = vmatprep.subr.bf16.mxu0 0
      %915 = vmatpush1.bf16.msra.mxu0 0
      %916 = vmatprep.subr.bf16.mxu0 0
      %917 = vmatpush1.bf16.msra.mxu0 0
      %918 = vmatprep.subr.bf16.mxu0 0
      %919 = vmatpush1.bf16.msra.mxu0 0
      %920 = vmatprep.subr.bf16.mxu0 0
      %921 = vmatpush1.bf16.msra.mxu0 0
      %922 = vmatprep.subr.bf16.mxu0 0
      %923 = vmatpush1.bf16.msra.mxu0 0
      %924 = vmatprep.subr.bf16.mxu0 0
      %925 = vmatpush1.bf16.msra.mxu0 0
      %926 = vmatprep.subr.bf16.mxu0 0
      %927 = vmatpush1.bf16.msra.mxu0 %v910
      %928 = vmatprep.subr.bf16.mxu0 0
      %929 = vmatpush2.bf16.msra.mxu0 0
      %930 = vmatprep.subr.bf16.mxu0 0
      %931 = vmatpush2.bf16.msra.mxu0 0
      %932 = vmatprep.subr.bf16.mxu0 0
      %933 = vmatpush2.bf16.msra.mxu0 0
      %934 = vmatprep.subr.bf16.mxu0 0
      %935 = vmatpush2.bf16.msra.mxu0 0
      %936 = vmatprep.subr.bf16.mxu0 0
      %937 = vmatpush2.bf16.msra.mxu0 0
      %938 = vmatprep.subr.bf16.mxu0 0
      %939 = vmatpush2.bf16.msra.mxu0 0
      %940 = vmatprep.subr.bf16.mxu0 0
      %941 = vmatpush2.bf16.msra.mxu0 0
      %942 = vmatprep.subr.bf16.mxu0 0
      %943 = vmatpush2.bf16.msra.mxu0 0
      %944 = vmatprep.mubr.bf16.mxu0 0
      %945 = vmatmul.mubr.bf16.gmra.mxu0 %v897
      %v946 = vpop.f32.mrf.mxu0
      %v947 = vadd.f32 0.0, %v946
      %v948 = vpop.f32.mrf.mxu0
      %v949 = vpop.f32.mrf.mxu0
      %v950 = vadd.f32 0.0, %v949
      %v951 = vpop.f32.mrf.mxu0
      %952 = vmatprep.mubr.bf16.mxu0 0
      %953 = vmatmul.mubr.bf16.gmra.mxu0 %v900
      %v954 = vpop.f32.mrf.mxu0
      %v955 = vadd.f32 0.0, %v954
      %v956 = vpop.f32.mrf.mxu0
      %v957 = vpop.f32.mrf.mxu0
      %v958 = vadd.f32 0.0, %v957
      %v959 = vpop.f32.mrf.mxu0
      %960 = vmatprep.mubr.bf16.mxu0 0
      %961 = vmatmul.mubr.bf16.gmra.mxu0 %v903
      %v962 = vpop.f32.mrf.mxu0
      %v963 = vadd.f32 0.0, %v962
      %v964 = vpop.f32.mrf.mxu0
      %v965 = vpop.f32.mrf.mxu0
      %v966 = vadd.f32 0.0, %v965
      %v967 = vpop.f32.mrf.mxu0
      %968 = vmatprep.mubr.bf16.mxu0 0
      %969 = vmatmul.mubr.bf16.gmra.mxu0 %v906
      %v970 = vpop.f32.mrf.mxu0
      %v971 = vadd.f32 0.0, %v970
      %v972 = vpop.f32.mrf.mxu0
      %v973 = vpop.f32.mrf.mxu0
      %v974 = vadd.f32 0.0, %v973
      %v975 = vpop.f32.mrf.mxu0
      %976 = vdwg.mxu0
      %v985 = vunpack.c.l.b16 %v842
      %v986 = vunpack.c.l.b16 %v844
      %v987 = vunpack.c.l.b16 %v846
      %v988 = vunpack.c.l.b16 %v848
      %v989 = vunpack.c.l.b16 %v850
      %v990 = vunpack.c.l.b16 %v852
      %v991 = vunpack.c.l.b16 %v854
      %v992 = vunpack.c.l.b16 %v856
      %v993 = vpack.c.b16 %v986, %v985
      %v994 = vpack.c.b16 %v988, %v987
      %v995 = vpack.c.b16 %v990, %v989
      %v996 = vpack.c.b16 %v992, %v991
      %v1006 = vunpack.c.l.b16 %v857
      %v1007 = vunpack.c.l.b16 %v858
      %v1008 = vunpack.c.l.b16 %v859
      %v1009 = vunpack.c.l.b16 %v860
      %v1010 = vunpack.c.l.b16 %v861
      %v1011 = vunpack.c.l.b16 %v862
      %v1012 = vunpack.c.l.b16 %v863
      %v1013 = vunpack.c.l.b16 %v864
      %v1014 = vunpack.c.l.b16 %v865
      %v1015 = vpack.c.b16 %v1007, %v1006
      %v1016 = vpack.c.b16 %v1009, %v1008
      %v1017 = vpack.c.b16 %v1011, %v1010
      %v1018 = vpack.c.b16 %v1013, %v1012
      %v1019 = vpack.c.b16 %v1014, %v1014
      %vm1024 = vcmask 588800
      %v1026 = vsel %vm1024, %v993, 0
      %v1029 = vsel %vm1024, %v994, 0
      %v1032 = vsel %vm1024, %v995, 0
      %v1035 = vsel %vm1024, %v996, 0
      %vm1037 = vcmask 1043456
      %v1039 = vsel %vm1037, %v1019, 0
      %1041 = vmatprep.subr.bf16.mxu0 0
      %1042 = vmatpush1.bf16.msra.mxu0 0
      %1043 = vmatprep.subr.bf16.mxu0 0
      %1044 = vmatpush1.bf16.msra.mxu0 0
      %1045 = vmatprep.subr.bf16.mxu0 0
      %1046 = vmatpush1.bf16.msra.mxu0 0
      %1047 = vmatprep.subr.bf16.mxu0 0
      %1048 = vmatpush1.bf16.msra.mxu0 %v1039
      %1049 = vmatprep.subr.bf16.mxu0 0
      %1050 = vmatpush1.bf16.msra.mxu0 %v1018
      %1051 = vmatprep.subr.bf16.mxu0 0
      %1052 = vmatpush1.bf16.msra.mxu0 %v1017
      %1053 = vmatprep.subr.bf16.mxu0 0
      %1054 = vmatpush1.bf16.msra.mxu0 %v1016
      %1055 = vmatprep.subr.bf16.mxu0 0
      %1056 = vmatpush1.bf16.msra.mxu0 %v1015
      %1057 = vmatprep.subr.bf16.mxu0 0
      %1058 = vmatpush2.bf16.msra.mxu0 0
      %1059 = vmatprep.subr.bf16.mxu0 0
      %1060 = vmatpush2.bf16.msra.mxu0 0
      %1061 = vmatprep.subr.bf16.mxu0 0
      %1062 = vmatpush2.bf16.msra.mxu0 0
      %1063 = vmatprep.subr.bf16.mxu0 0
      %1064 = vmatpush2.bf16.msra.mxu0 0
      %1065 = vmatprep.subr.bf16.mxu0 0
      %1066 = vmatpush2.bf16.msra.mxu0 0
      %1067 = vmatprep.subr.bf16.mxu0 0
      %1068 = vmatpush2.bf16.msra.mxu0 0
      %1069 = vmatprep.subr.bf16.mxu0 0
      %1070 = vmatpush2.bf16.msra.mxu0 0
      %1071 = vmatprep.subr.bf16.mxu0 0
      %1072 = vmatpush2.bf16.msra.mxu0 0
      %1073 = vmatprep.mubr.bf16.mxu0 0
      %1074 = vmatmul.mubr.bf16.gmra.mxu0 %v1026
      %v1075 = vpop.f32.mrf.mxu0
      %v1076 = vadd.f32 %v947, %v1075
      %v1077 = vpop.f32.mrf.mxu0
      %v1078 = vpop.f32.mrf.mxu0
      %v1079 = vadd.f32 %v950, %v1078
      %v1080 = vpop.f32.mrf.mxu0
      %1081 = vmatprep.mubr.bf16.mxu0 0
      %1082 = vmatmul.mubr.bf16.gmra.mxu0 %v1029
      %v1083 = vpop.f32.mrf.mxu0
      %v1084 = vadd.f32 %v955, %v1083
      %v1085 = vpop.f32.mrf.mxu0
      %v1086 = vpop.f32.mrf.mxu0
      %v1087 = vadd.f32 %v958, %v1086
      %v1088 = vpop.f32.mrf.mxu0
      %1089 = vmatprep.mubr.bf16.mxu0 0
      %1090 = vmatmul.mubr.bf16.gmra.mxu0 %v1032
      %v1091 = vpop.f32.mrf.mxu0
      %v1092 = vadd.f32 %v963, %v1091
      %v1093 = vpop.f32.mrf.mxu0
      %v1094 = vpop.f32.mrf.mxu0
      %v1095 = vadd.f32 %v966, %v1094
      %v1096 = vpop.f32.mrf.mxu0
      %1097 = vmatprep.mubr.bf16.mxu0 0
      %1098 = vmatmul.mubr.bf16.gmra.mxu0 %v1035
      %v1099 = vpop.f32.mrf.mxu0
      %v1100 = vadd.f32 %v971, %v1099
      %v1101 = vpop.f32.mrf.mxu0
      %v1102 = vpop.f32.mrf.mxu0
      %v1103 = vadd.f32 %v974, %v1102
      %v1104 = vpop.f32.mrf.mxu0
      %1105 = vdwg.mxu0
      %v1106 = vpack.c.bf16 %v1076, %v1076
      %v1107 = vpack.c.bf16 %v1079, %v1079
      %v1108 = vpack.c.bf16 %v1084, %v1084
      %v1109 = vpack.c.bf16 %v1087, %v1087
      %v1110 = vpack.c.bf16 %v1092, %v1092
      %v1111 = vpack.c.bf16 %v1095, %v1095
      %v1112 = vpack.c.bf16 %v1100, %v1100
      %v1113 = vpack.c.bf16 %v1103, %v1103
      %vm1114 = vcmask 60416
      %1115 = vst.msk [vmem:[%s336] sm:$0xf] %vm1114, %v1106
      %1116 = vst.msk [vmem:[%s336 + $0x4] sm:$0xf] %vm1114, %v1107
      %1117 = vst.msk [vmem:[%s336 + $0x8] sm:$0xf] %vm1114, %v1108
      %1118 = vst.msk [vmem:[%s336 + $0xc] sm:$0xf] %vm1114, %v1109
      %1119 = vst.msk [vmem:[%s336 + $0x10] sm:$0xf] %vm1114, %v1110
      %1120 = vst.msk [vmem:[%s336 + $0x14] sm:$0xf] %vm1114, %v1111
      %1121 = vst.msk [vmem:[%s336 + $0x18] sm:$0xf] %vm1114, %v1112
      %1122 = vst.msk [vmem:[%s336 + $0x1c] sm:$0xf] %vm1114, %v1113
      %v1123 = vsel %vm721, %v1076, 0.0
      %v1124 = vsel %vm721, %v1079, 0.0
      %v1125 = vadd.f32 %v1123, %v1124
      %v1126 = vsel %vm721, %v1084, 0.0
      %v1127 = vadd.f32 %v1125, %v1126
      %v1128 = vsel %vm721, %v1087, 0.0
      %v1129 = vadd.f32 %v1127, %v1128
      %v1130 = vsel %vm721, %v1092, 0.0
      %v1131 = vadd.f32 %v1129, %v1130
      %v1132 = vsel %vm721, %v1095, 0.0
      %v1133 = vadd.f32 %v1131, %v1132
      %v1134 = vsel %vm721, %v1100, 0.0
      %v1135 = vadd.f32 %v1133, %v1134
      %v1136 = vsel %vm721, %v1103, 0.0
      %v1137 = vadd.f32 %v1135, %v1136
      %v1138 = vrot.slane %v1137, 4
      %v1139 = vadd.f32 %v1137, %v1138
      %v1140 = vrot.slane %v1139, 2
      %v1141 = vadd.f32 %v1139, %v1140
      %v1142 = vrot.slane %v1141, 1
      %v1143 = vadd.f32 %v1141, %v1142
      %vm1144 = vcmask 57344
      %1145 = vst.msk [vmem:[%s339] sm:$0x1] %vm1144, %v1143
      %v1146 = vmul.f32 %v1076, %v1076
      %v1147 = vmul.f32 %v1079, %v1079
      %v1148 = vmul.f32 %v1084, %v1084
      %v1149 = vmul.f32 %v1087, %v1087
      %v1150 = vmul.f32 %v1092, %v1092
      %v1151 = vmul.f32 %v1095, %v1095
      %v1152 = vmul.f32 %v1100, %v1100
      %v1153 = vmul.f32 %v1103, %v1103
      %v1154 = vsel %vm721, %v1146, 0.0
      %v1155 = vsel %vm721, %v1147, 0.0
      %v1156 = vadd.f32 %v1154, %v1155
      %v1157 = vsel %vm721, %v1148, 0.0
      %v1158 = vadd.f32 %v1156, %v1157
      %v1159 = vsel %vm721, %v1149, 0.0
      %v1160 = vadd.f32 %v1158, %v1159
      %v1161 = vsel %vm721, %v1150, 0.0
      %v1162 = vadd.f32 %v1160, %v1161
      %v1163 = vsel %vm721, %v1151, 0.0
      %v1164 = vadd.f32 %v1162, %v1163
      %v1165 = vsel %vm721, %v1152, 0.0
      %v1166 = vadd.f32 %v1164, %v1165
      %v1167 = vsel %vm721, %v1153, 0.0
      %v1168 = vadd.f32 %v1166, %v1167
      %v1169 = vrot.slane %v1168, 4
      %v1170 = vadd.f32 %v1168, %v1169
      %v1171 = vrot.slane %v1170, 2
      %v1172 = vadd.f32 %v1170, %v1171
      %v1173 = vrot.slane %v1172, 1
      %v1174 = vadd.f32 %v1172, %v1173
      %1175 = vst.msk [vmem:[%s342] sm:$0x1] %vm1144, %v1174
      %p1176 = scmp.lt.s32.totalorder %s20, 1
      %s1177 = scalar_select %p1176, %s20, 1
      %s1178 = smul.addr %s1177, 8
      %s1179 = smul.addr %s1178, 4
      %s1180 = scalar_lea.vmem %s6, %s1179
      %p1181 = scmp.lt.s32.totalorder %s20, 1
      %s1182 = scalar_select %p1181, %s20, 1
      %s1183 = scalar_lea.vmem %s7, %s1182
      %p1184 = scmp.lt.s32.totalorder %s20, 1
      %s1185 = scalar_select %p1184, %s20, 1
      %s1186 = scalar_lea.vmem %s8, %s1185
      // Predicated region
      $region45: #{network_block2_forward.7} parent=43 // pred_check
        %p1187 = pneg %p174
      $region46: #{network_block2_forward.7} parent=43 // pred_check_branch
        %1189 = sbr.rel (%p1187) target = $region48
      $region47: #{network_block2_forward.7} parent=43 // pred_region
        _
      $region48: #{network_block2_forward.7} parent=43 // pred_fallthru
        _
      // Predicated region
      $region49: #{network_block2_forward.7} parent=43 // pred_check
        %p1190 = pneg %p200
      $region50: #{network_block2_forward.7} parent=43 // pred_check_branch
        %1192 = sbr.rel (%p1190) target = $region52
      $region51: #{network_block2_forward.7} parent=43 // pred_region
        _
      $region52: #{network_block2_forward.7} parent=43 // pred_fallthru
        _
      // Predicated region
      $region53: #{network_block2_forward.7} parent=43 // pred_check
        %p1193 = pneg %p226
      $region54: #{network_block2_forward.7} parent=43 // pred_check_branch
        %1195 = sbr.rel (%p1193) target = $region56
      $region55: #{network_block2_forward.7} parent=43 // pred_region
        _
      $region56: #{network_block2_forward.7} parent=43 // pred_fallthru
        _
    $region44: #{network_block2_forward.7} parent=5 // pred_fallthru
      _
    %p1196 = scmp.le.s32.totalorder 2, %s15
    // Predicated region
    $region57: #{network_block2_forward.7} parent=5 // pred_check
      %p1197 = pneg %p1196
    $region58: #{network_block2_forward.7} parent=5 // pred_check_branch
      %1199 = sbr.rel (%p1197) target = $region60
    $region59: #{network_block2_forward.7} parent=5 // pred_region
      %s1200 = ssub.s32 %s15, 2
      // Predicated region
      $region61: #{network_block2_forward.7} parent=59 // pred_check
        %p1201 = pneg %p180
      $region62: #{network_block2_forward.7} parent=59 // pred_check_branch
        %1203 = sbr.rel (%p1201) target = $region64
      $region63: #{network_block2_forward.7} parent=59 // pred_region
        %p1204 = scmp.lt.s32.totalorder %s21, 1
        %s1205 = scalar_select %p1204, %s21, 1
        %s1206 = smul.addr %s1205, 8
        %s1207 = smul.addr %s1206, 4
        %s1208 = scalar_lea.vmem %s6, %s1207
      $region64: #{network_block2_forward.7} parent=59 // pred_fallthru
        _
      // Predicated region
      $region65: #{network_block2_forward.7} parent=59 // pred_check
        %p1209 = pneg %p206
      $region66: #{network_block2_forward.7} parent=59 // pred_check_branch
        %1211 = sbr.rel (%p1209) target = $region68
      $region67: #{network_block2_forward.7} parent=59 // pred_region
        %p1212 = scmp.lt.s32.totalorder %s21, 1
        %s1213 = scalar_select %p1212, %s21, 1
        %s1214 = scalar_lea.vmem %s7, %s1213
      $region68: #{network_block2_forward.7} parent=59 // pred_fallthru
        _
      // Predicated region
      $region69: #{network_block2_forward.7} parent=59 // pred_check
        %p1215 = pneg %p232
      $region70: #{network_block2_forward.7} parent=59 // pred_check_branch
        %1217 = sbr.rel (%p1215) target = $region72
      $region71: #{network_block2_forward.7} parent=59 // pred_region
        %p1218 = scmp.lt.s32.totalorder %s21, 1
        %s1219 = scalar_select %p1218, %s21, 1
        %s1220 = scalar_lea.vmem %s8, %s1219
      $region72: #{network_block2_forward.7} parent=59 // pred_fallthru
        _
    $region60: #{network_block2_forward.7} parent=5 // pred_fallthru
      _
  $region6: #{network_block2_forward.7} parent=0 // loop_footer
    %s19 = sadd.s32 1, %s15
  $region7: #{network_block2_forward.7} parent=0 // loop_footer_branch
    %14 = sbr.rel target = $region3
  $region8: #{network_block2_forward.7} parent=0 // loop_exit
    _

// kernel: network_block2_forward.8
$region0: #{network_block2_forward.8}
  #allocation0 [shape = 'u32[]', space=smem, size = 0x4, offset = 0x4, fixed_abs, tag = 'smem constant byte address 0x4 - core index']
  #allocation1 [shape = 'u32[144,128]{1,0:T(1,128)}', space=vmem, size = 0x12000, scoped, tag = 'internal scratch']
  %s0 = inlined_call_operand.vmem [shape: bf16[2,10,10,8], index: 0, kind: input, shape index: {}]
  %s1 = inlined_call_operand.vmem [shape: bf16[72,8], index: 1, kind: input, shape index: {}]
  %s2 = inlined_call_operand.vmem [shape: f32[1,1,8], index: 2, kind: input, shape index: {}]
  %s3 = inlined_call_operand.vmem [shape: f32[1,1,8], index: 3, kind: input, shape index: {}]
  %s4 = inlined_call_operand.vmem [shape: bf16[2,8,8,8], index: 4, kind: output, shape index: {0}]
  %s5 = inlined_call_operand.vmem [shape: f32[2,1,8], index: 5, kind: output, shape index: {1}]
  %s6 = inlined_call_operand.vmem [shape: f32[2,1,8], index: 6, kind: output, shape index: {2}]
  %7 = xla_tuple %s4, %s5, %s6
  %s8 = sld [smem:[#allocation0]]
  $region65: #{network_block2_forward.8} parent=0
    _
  %s10 = ssub.s32 1, %s8
  %s11 = scalar_select 0, %s10, %s8
  loop: start=0, step=1, limit=4
  $region2: #{network_block2_forward.8} parent=0 // loop_pre_header
    _
  $region3: #{network_block2_forward.8} parent=0 // loop_header
    %s13 = sphi 0, %s17
    %p14 = scmp.ge.s32.totalorder %s13, 4
    %s23 = sphi 0, %s25
    %s26 = sphi 0, %s23
    %s27 = sphi 0, %s26
    %s43 = sphi 0, %s27
    %s47 = sphi 0, %s47
    %s49 = sphi 0, %s47
    %s50 = sphi 0, %s49
    %s64 = sphi 0, %s50
    %s68 = sphi 0, %s68
    %s70 = sphi 0, %s68
    %s71 = sphi 0, %s70
    %s85 = sphi 0, %s71
    %s89 = sphi 0, %s89
    %s91 = sphi 0, %s89
    %s92 = sphi 0, %s91
    %s106 = sphi 0, %s92
    %s112 = sphi 0, %s114
    %s115 = sphi 0, %s112
    %s116 = sphi 0, %s115
    %s132 = sphi 0, %s116
    %s138 = sphi 0, %s140
    %s141 = sphi 0, %s138
    %s142 = sphi 0, %s141
    %s158 = sphi 0, %s142
    %s164 = sphi 0, %s166
    %s167 = sphi 0, %s164
    %s168 = sphi 0, %s167
    %s184 = sphi 0, %s168
  $region4: #{network_block2_forward.8} parent=0 // loop_header_branch
    %16 = sbr.rel (%p14) target = $region8
  $region5: #{network_block2_forward.8} parent=0 // loop_body
    %s18 = ssub.s32 %s13, 1
    %s19 = ssub.s32 %s13, 2
    %s20 = sadd.s32 %s13, 1
    %s21 = ssub.s32 %s13, %s20
    %p22 = scmp.eq.s32.totalorder %s21, 0
    %s24 = sadd.s32 %s23, 1
    %s25 = scalar_select %p22, %s23, %s24
    %p28 = pneg %p22
    %p29 = scmp.eq.s32.totalorder %s13, 1
    %p30 = por %p28, %p29
    %p31 = scmp.ne.s32.totalorder %s23, %s26
    %p32 = scmp.eq.s32.totalorder %s13, 0
    %p33 = por %p31, %p32
    %p34 = scmp.ne.s32.totalorder %s23, %s26
    %p35 = scmp.eq.s32.totalorder %s18, 1
    %p36 = por %p34, %p35
    %p37 = scmp.ne.s32.totalorder %s26, %s27
    %p38 = scmp.eq.s32.totalorder %s18, 0
    %p39 = por %p37, %p38
    %p40 = scmp.ne.s32.totalorder %s26, %s27
    %p41 = scmp.eq.s32.totalorder %s19, 1
    %p42 = por %p40, %p41
    %p44 = scmp.ne.s32.totalorder %s27, %s43
    %p45 = scmp.eq.s32.totalorder %s19, 0
    %p46 = por %p44, %p45
    %s48 = sadd.s32 %s47, 1
    %p51 = scmp.eq.s32.totalorder %s13, 1
    %p52 = scmp.ne.s32.totalorder %s47, %s49
    %p53 = scmp.eq.s32.totalorder %s13, 0
    %p54 = por %p52, %p53
    %p55 = scmp.ne.s32.totalorder %s47, %s49
    %p56 = scmp.eq.s32.totalorder %s18, 1
    %p57 = por %p55, %p56
    %p58 = scmp.ne.s32.totalorder %s49, %s50
    %p59 = scmp.eq.s32.totalorder %s18, 0
    %p60 = por %p58, %p59
    %p61 = scmp.ne.s32.totalorder %s49, %s50
    %p62 = scmp.eq.s32.totalorder %s19, 1
    %p63 = por %p61, %p62
    %p65 = scmp.ne.s32.totalorder %s50, %s64
    %p66 = scmp.eq.s32.totalorder %s19, 0
    %p67 = por %p65, %p66
    %s69 = sadd.s32 %s68, 1
    %p72 = scmp.eq.s32.totalorder %s13, 1
    %p73 = scmp.ne.s32.totalorder %s68, %s70
    %p74 = scmp.eq.s32.totalorder %s13, 0
    %p75 = por %p73, %p74
    %p76 = scmp.ne.s32.totalorder %s68, %s70
    %p77 = scmp.eq.s32.totalorder %s18, 1
    %p78 = por %p76, %p77
    %p79 = scmp.ne.s32.totalorder %s70, %s71
    %p80 = scmp.eq.s32.totalorder %s18, 0
    %p81 = por %p79, %p80
    %p82 = scmp.ne.s32.totalorder %s70, %s71
    %p83 = scmp.eq.s32.totalorder %s19, 1
    %p84 = por %p82, %p83
    %p86 = scmp.ne.s32.totalorder %s71, %s85
    %p87 = scmp.eq.s32.totalorder %s19, 0
    %p88 = por %p86, %p87
    %s90 = sadd.s32 %s89, 1
    %p93 = scmp.eq.s32.totalorder %s13, 1
    %p94 = scmp.ne.s32.totalorder %s89, %s91
    %p95 = scmp.eq.s32.totalorder %s13, 0
    %p96 = por %p94, %p95
    %p97 = scmp.ne.s32.totalorder %s89, %s91
    %p98 = scmp.eq.s32.totalorder %s18, 1
    %p99 = por %p97, %p98
    %p100 = scmp.ne.s32.totalorder %s91, %s92
    %p101 = scmp.eq.s32.totalorder %s18, 0
    %p102 = por %p100, %p101
    %p103 = scmp.ne.s32.totalorder %s91, %s92
    %p104 = scmp.eq.s32.totalorder %s19, 1
    %p105 = por %p103, %p104
    %p107 = scmp.ne.s32.totalorder %s92, %s106
    %p108 = scmp.eq.s32.totalorder %s19, 0
    %p109 = por %p107, %p108
    %s110 = ssub.s32 %s13, %s20
    %p111 = scmp.eq.s32.totalorder %s110, 0
    %s113 = sadd.s32 %s112, 1
    %s114 = scalar_select %p111, %s112, %s113
    %p117 = pneg %p111
    %p118 = scmp.eq.s32.totalorder %s13, 1
    %p119 = por %p117, %p118
    %p120 = scmp.ne.s32.totalorder %s112, %s115
    %p121 = scmp.eq.s32.totalorder %s13, 0
    %p122 = por %p120, %p121
    %p123 = scmp.ne.s32.totalorder %s112, %s115
    %p124 = scmp.eq.s32.totalorder %s18, 1
    %p125 = por %p123, %p124
    %p126 = scmp.ne.s32.totalorder %s115, %s116
    %p127 = scmp.eq.s32.totalorder %s18, 0
    %p128 = por %p126, %p127
    %p129 = scmp.ne.s32.totalorder %s115, %s116
    %p130 = scmp.eq.s32.totalorder %s19, 1
    %p131 = por %p129, %p130
    %p133 = scmp.ne.s32.totalorder %s116, %s132
    %p134 = scmp.eq.s32.totalorder %s19, 0
    %p135 = por %p133, %p134
    %s136 = ssub.s32 %s13, %s20
    %p137 = scmp.eq.s32.totalorder %s136, 0
    %s139 = sadd.s32 %s138, 1
    %s140 = scalar_select %p137, %s138, %s139
    %p143 = pneg %p137
    %p144 = scmp.eq.s32.totalorder %s13, 1
    %p145 = por %p143, %p144
    %p146 = scmp.ne.s32.totalorder %s138, %s141
    %p147 = scmp.eq.s32.totalorder %s13, 0
    %p148 = por %p146, %p147
    %p149 = scmp.ne.s32.totalorder %s138, %s141
    %p150 = scmp.eq.s32.totalorder %s18, 1
    %p151 = por %p149, %p150
    %p152 = scmp.ne.s32.totalorder %s141, %s142
    %p153 = scmp.eq.s32.totalorder %s18, 0
    %p154 = por %p152, %p153
    %p155 = scmp.ne.s32.totalorder %s141, %s142
    %p156 = scmp.eq.s32.totalorder %s19, 1
    %p157 = por %p155, %p156
    %p159 = scmp.ne.s32.totalorder %s142, %s158
    %p160 = scmp.eq.s32.totalorder %s19, 0
    %p161 = por %p159, %p160
    %s162 = ssub.s32 %s13, %s20
    %p163 = scmp.eq.s32.totalorder %s162, 0
    %s165 = sadd.s32 %s164, 1
    %s166 = scalar_select %p163, %s164, %s165
    %p169 = pneg %p163
    %p170 = scmp.eq.s32.totalorder %s13, 1
    %p171 = por %p169, %p170
    %p172 = scmp.ne.s32.totalorder %s164, %s167
    %p173 = scmp.eq.s32.totalorder %s13, 0
    %p174 = por %p172, %p173
    %p175 = scmp.ne.s32.totalorder %s164, %s167
    %p176 = scmp.eq.s32.totalorder %s18, 1
    %p177 = por %p175, %p176
    %p178 = scmp.ne.s32.totalorder %s167, %s168
    %p179 = scmp.eq.s32.totalorder %s18, 0
    %p180 = por %p178, %p179
    %p181 = scmp.ne.s32.totalorder %s167, %s168
    %p182 = scmp.eq.s32.totalorder %s19, 1
    %p183 = por %p181, %p182
    %p185 = scmp.ne.s32.totalorder %s168, %s184
    %p186 = scmp.eq.s32.totalorder %s19, 0
    %p187 = por %p185, %p186
    %p188 = scmp.le.s32.totalorder 1, %s13
    %p189 = scmp.lt.s32.totalorder %s13, 3
    %p190 = pnand %p188, %p189
    %p191 = pneg %p190
    // Predicated region
    $region9: #{network_block2_forward.8} parent=5 // pred_check
      _
    $region10: #{network_block2_forward.8} parent=5 // pred_check_branch
      %193 = sbr.rel (%p190) target = $region12
    $region11: #{network_block2_forward.8} parent=5 // pred_region
      %s194 = ssub.s32 %s13, 1
      // Predicated region
      $region13: #{network_block2_forward.8} parent=11 // pred_check
        %p195 = pneg %p60
      $region14: #{network_block2_forward.8} parent=11 // pred_check_branch
        %197 = sbr.rel (%p195) target = $region16
      $region15: #{network_block2_forward.8} parent=11 // pred_region
        _
      $region16: #{network_block2_forward.8} parent=11 // pred_fallthru
        _
      // Predicated region
      $region17: #{network_block2_forward.8} parent=11 // pred_check
        %p198 = pneg %p81
      $region18: #{network_block2_forward.8} parent=11 // pred_check_branch
        %200 = sbr.rel (%p198) target = $region20
      $region19: #{network_block2_forward.8} parent=11 // pred_region
        _
      $region20: #{network_block2_forward.8} parent=11 // pred_fallthru
        _
      // Predicated region
      $region21: #{network_block2_forward.8} parent=11 // pred_check
        %p201 = pneg %p102
      $region22: #{network_block2_forward.8} parent=11 // pred_check_branch
        %203 = sbr.rel (%p201) target = $region24
      $region23: #{network_block2_forward.8} parent=11 // pred_region
        _
      $region24: #{network_block2_forward.8} parent=11 // pred_fallthru
        _
    $region12: #{network_block2_forward.8} parent=5 // pred_fallthru
      _
    %p204 = scmp.lt.s32.totalorder %s13, 2
    // Predicated region
    $region25: #{network_block2_forward.8} parent=5 // pred_check
      %p205 = pneg %p204
    $region26: #{network_block2_forward.8} parent=5 // pred_check_branch
      %207 = sbr.rel (%p205) target = $region28
    $region27: #{network_block2_forward.8} parent=5 // pred_region
      // Predicated region
      $region29: #{network_block2_forward.8} parent=27 // pred_check
        %p208 = pneg %p33
      $region30: #{network_block2_forward.8} parent=27 // pred_check_branch
        %210 = sbr.rel (%p208) target = $region32
      $region31: #{network_block2_forward.8} parent=27 // pred_region
        %p211 = scmp.lt.s32.totalorder %s13, 1
        %s212 = scalar_select %p211, %s13, 1
        %s213 = smul.addr %s212, 20
        %s214 = smul.addr %s213, 4
        %s215 = scalar_lea.vmem %s0, %s214
      $region32: #{network_block2_forward.8} parent=27 // pred_fallthru
        _
    $region28: #{network_block2_forward.8} parent=5 // pred_fallthru
      _
    %p216 = scmp.le.s32.totalorder 1, %s13
    %p217 = scmp.lt.s32.totalorder %s13, 3
    %p218 = pnand %p216, %p217
    %p219 = pneg %p218
    // Predicated region
    $region33: #{network_block2_forward.8} parent=5 // pred_check
      _
    $region34: #{network_block2_forward.8} parent=5 // pred_check_branch
      %221 = sbr.rel (%p218) target = $region36
    $region35: #{network_block2_forward.8} parent=5 // pred_region
      %s222 = ssub.s32 %s13, 1
      %p223 = scmp.lt.s32.totalorder %s18, 1
      %s224 = scalar_select %p223, %s18, 1
      %s225 = smul.addr %s224, 20
      %s226 = smul.addr %s225, 4
      %s227 = scalar_lea.vmem %s0, %s226
      %p228 = pneg %p39
      %p229 = pneg %p36
      %p230 = pneg %p60
      %p231 = pneg %p57
      %p232 = pneg %p81
      %p233 = pneg %p78
      %p234 = pneg %p102
      %p235 = pneg %p99
      %p236 = pneg %p128
      %p237 = pneg %p125
      %p238 = scmp.lt.s32.totalorder %s18, 1
      %s239 = scalar_select %p238, %s18, 1
      %s240 = smul.addr %s239, 8
      %s241 = smul.addr %s240, 4
      %s242 = scalar_lea.vmem %s4, %s241
      %p243 = pneg %p154
      %p244 = pneg %p151
      %p245 = scmp.lt.s32.totalorder %s18, 1
      %s246 = scalar_select %p245, %s18, 1
      %s247 = scalar_lea.vmem %s5, %s246
      %p248 = pneg %p180
      %p249 = pneg %p177
      %p250 = scmp.lt.s32.totalorder %s18, 1
      %s251 = scalar_select %p250, %s18, 1
      %s252 = scalar_lea.vmem %s6, %s251
      %p253 = scmp.lt.s32.totalorder %s18, 1
      %s254 = scalar_select %p253, %s18, 1
      %s255 = smul.addr %s254, 20
      %s256 = smul.addr %s255, 4
      %s257 = scalar_lea.vmem %s0, %s256
      %p258 = scmp.lt.s32.totalorder %s18, 1
      %s259 = scalar_select %p258, %s18, 1
      %s260 = smul.addr %s259, 8
      %s261 = smul.addr %s260, 4
      %s262 = scalar_lea.vmem %s4, %s261
      %p263 = scmp.lt.s32.totalorder %s18, 1
      %s264 = scalar_select %p263, %s18, 1
      %s265 = scalar_lea.vmem %s5, %s264
      %p266 = scmp.lt.s32.totalorder %s18, 1
      %s267 = scalar_select %p266, %s18, 1
      %s268 = scalar_lea.vmem %s6, %s267
      %v270 = vld [vmem:[%s257] sm:$0xf]
      %v271 = vld [vmem:[%s257 + $0x4] sm:$0x1]
      %v272 = vld [vmem:[%s257 + $0x8] sm:$0xf]
      %v273 = vld [vmem:[%s257 + $0xc] sm:$0x1]
      %v274 = vld [vmem:[%s257 + $0x10] sm:$0xf]
      %v275 = vld [vmem:[%s257 + $0x14] sm:$0x1]
      %v276 = vld [vmem:[%s257 + $0x18] sm:$0xf]
      %v277 = vld [vmem:[%s257 + $0x1c] sm:$0x1]
      %v278 = vld [vmem:[%s257 + $0x20] sm:$0xf]
      %v279 = vld [vmem:[%s257 + $0x24] sm:$0x1]
      %v280 = vld [vmem:[%s257 + $0x28] sm:$0xf]
      %v281 = vld [vmem:[%s257 + $0x2c] sm:$0x1]
      %v282 = vld [vmem:[%s257 + $0x30] sm:$0xf]
      %v283 = vld [vmem:[%s257 + $0x34] sm:$0x1]
      %v284 = vld [vmem:[%s257 + $0x38] sm:$0xf]
      %v285 = vld [vmem:[%s257 + $0x3c] sm:$0x1]
      %v286 = vld [vmem:[%s257 + $0x40] sm:$0xf]
      %v287 = vld [vmem:[%s257 + $0x44] sm:$0x1]
      %v288 = vld [vmem:[%s257 + $0x48] sm:$0xf]
      %v289 = vld [vmem:[%s257 + $0x4c] sm:$0x1]
      %v290 = vunpack.c.l.bf16 %v270
      %v291 = vunpack.c.l.bf16 %v271
      %v292 = vunpack.c.l.bf16 %v272
      %v293 = vunpack.c.l.bf16 %v273
      %v294 = vunpack.c.l.bf16 %v274
      %v295 = vunpack.c.l.bf16 %v275
      %v296 = vunpack.c.l.bf16 %v276
      %v297 = vunpack.c.l.bf16 %v277
      %v298 = vunpack.c.l.bf16 %v278
      %v299 = vunpack.c.l.bf16 %v279
      %v300 = vunpack.c.l.bf16 %v280
      %v301 = vunpack.c.l.bf16 %v281
      %v302 = vunpack.c.l.bf16 %v282
      %v303 = vunpack.c.l.bf16 %v283
      %v304 = vunpack.c.l.bf16 %v284
      %v305 = vunpack.c.l.bf16 %v285
      %v306 = vunpack.c.l.bf16 %v286
      %v307 = vunpack.c.l.bf16 %v287
      %v308 = vunpack.c.l.bf16 %v288
      %v309 = vunpack.c.l.bf16 %v289
      %v310 = vld [vmem:[%s2] sm:$0x1]
      %v312 = vlaneseq
      %v313 = vshrl.u32 %v312, 7
      %v314 = vsub.s32 0, %v313
      %v315 = vrot.slane %v310, %v314
      %v317 = vmul.f32 %v290, %v315
      %v318 = vmul.f32 %v291, %v315
      %v319 = vmul.f32 %v292, %v315
      %v320 = vmul.f32 %v293, %v315
      %v321 = vmul.f32 %v294, %v315
      %v322 = vmul.f32 %v295, %v315
      %v323 = vmul.f32 %v296, %v315
      %v324 = vmul.f32 %v297, %v315
      %v325 = vmul.f32 %v298, %v315
      %v326 = vmul.f32 %v299, %v315
      %v327 = vmul.f32 %v300, %v315
      %v328 = vmul.f32 %v301, %v315
      %v329 = vmul.f32 %v302, %v315
      %v330 = vmul.f32 %v303, %v315
      %v331 = vmul.f32 %v304, %v315
      %v332 = vmul.f32 %v305, %v315
      %v333 = vmul.f32 %v306, %v315
      %v334 = vmul.f32 %v307, %v315
      %v335 = vmul.f32 %v308, %v315
      %v336 = vmul.f32 %v309, %v315
      %v337 = vld [vmem:[%s3] sm:$0x1]
      %v339 = vlaneseq
      %v340 = vshrl.u32 %v339, 7
      %v341 = vsub.s32 0, %v340
      %v342 = vrot.slane %v337, %v341
      %v344 = vadd.f32 %v317, %v342
      %v345 = vadd.f32 %v318, %v342
      %v346 = vadd.f32 %v319, %v342
      %v347 = vadd.f32 %v320, %v342
      %v348 = vadd.f32 %v321, %v342
      %v349 = vadd.f32 %v322, %v342
      %v350 = vadd.f32 %v323, %v342
      %v351 = vadd.f32 %v324, %v342
      %v352 = vadd.f32 %v325, %v342
      %v353 = vadd.f32 %v326, %v342
      %v354 = vadd.f32 %v327, %v342
      %v355 = vadd.f32 %v328, %v342
      %v356 = vadd.f32 %v329, %v342
      %v357 = vadd.f32 %v330, %v342
      %v358 = vadd.f32 %v331, %v342
      %v359 = vadd.f32 %v332, %v342
      %v360 = vadd.f32 %v333, %v342
      %v361 = vadd.f32 %v334, %v342
      %v362 = vadd.f32 %v335, %v342
      %v363 = vadd.f32 %v336, %v342
      %v364 = vmax.f32 %v344, 0.0
      %v365 = vmax.f32 %v345, 0.0
      %v366 = vmax.f32 %v346, 0.0
      %v367 = vmax.f32 %v347, 0.0
      %v368 = vmax.f32 %v348, 0.0
      %v369 = vmax.f32 %v349, 0.0
      %v370 = vmax.f32 %v350, 0.0
      %v371 = vmax.f32 %v351, 0.0
      %v372 = vmax.f32 %v352, 0.0
      %v373 = vmax.f32 %v353, 0.0
      %v374 = vmax.f32 %v354, 0.0
      %v375 = vmax.f32 %v355, 0.0
      %v376 = vmax.f32 %v356, 0.0
      %v377 = vmax.f32 %v357, 0.0
      %v378 = vmax.f32 %v358, 0.0
      %v379 = vmax.f32 %v359, 0.0
      %v380 = vmax.f32 %v360, 0.0
      %v381 = vmax.f32 %v361, 0.0
      %v382 = vmax.f32 %v362, 0.0
      %v383 = vmax.f32 %v363, 0.0
      %v384 = vlaneseq
      %v385 = vshrl.u32 %v384, 7
      %v386 = vadd.s32 %v385, 8
      %vm387 = vcmp.ge.s32.totalorder %v385, 1
      %vm388 = vcmp.ge.s32.totalorder %v386, 1
      %vm389 = vmand 0, %vm387
      %vm390 = vmand 0, %vm388
      %vm391 = vmand 1, %vm387
      %vm392 = vmand 1, %vm388
      %vm393 = vcmp.lt.s32.totalorder %v385, 9
      %vm394 = vcmp.lt.s32.totalorder %v386, 9
      %vm395 = vmand %vm389, %vm393
      %vm396 = vmand %vm390, %vm394
      %vm397 = vmand %vm391, %vm393
      %vm398 = vmand %vm392, %vm394
      %v399 = vsel %vm395, %v364, 0.0
      %v400 = vsel %vm396, %v365, 0.0
      %v401 = vsel %vm397, %v366, 0.0
      %v402 = vsel %vm398, %v367, 0.0
      %v403 = vsel %vm397, %v368, 0.0
      %v404 = vsel %vm398, %v369, 0.0
      %v405 = vsel %vm397, %v370, 0.0
      %v406 = vsel %vm398, %v371, 0.0
      %v407 = vsel %vm397, %v372, 0.0
      %v408 = vsel %vm398, %v373, 0.0
      %v409 = vsel %vm397, %v374, 0.0
      %v410 = vsel %vm398, %v375, 0.0
      %v411 = vsel %vm397, %v376, 0.0
      %v412 = vsel %vm398, %v377, 0.0
      %v413 = vsel %vm397, %v378, 0.0
      %v414 = vsel %vm398, %v379, 0.0
      %v415 = vsel %vm397, %v380, 0.0
      %v416 = vsel %vm398, %v381, 0.0
      %v417 = vsel %vm395, %v382, 0.0
      %v418 = vsel %vm396, %v383, 0.0
      %v419 = vpack.c.bf16 %v400, %v399
      %v420 = vpack.c.bf16 %v402, %v401
      %v421 = vpack.c.bf16 %v404, %v403
      %v422 = vpack.c.bf16 %v406, %v405
      %v423 = vpack.c.bf16 %v408, %v407
      %v424 = vpack.c.bf16 %v410, %v409
      %v425 = vpack.c.bf16 %v412, %v411
      %v426 = vpack.c.bf16 %v414, %v413
      %v427 = vpack.c.bf16 %v416, %v415
      %v428 = vpack.c.bf16 %v418, %v417
      %v430 = vshrl.u32 %v419, 16
      %v432 = vshll.u32 %v419, 16
      %v434 = vrot.slane %v432, 1
      %v435 = vor.u32 %v430, %v434
      %v437 = vshrl.u32 %v420, 16
      %v439 = vshll.u32 %v420, 16
      %v441 = vrot.slane %v439, 1
      %v442 = vor.u32 %v437, %v441
      %v444 = vshrl.u32 %v421, 16
      %v446 = vshll.u32 %v421, 16
      %v448 = vrot.slane %v446, 1
      %v449 = vor.u32 %v444, %v448
      %v451 = vshrl.u32 %v422, 16
      %v453 = vshll.u32 %v422, 16
      %v455 = vrot.slane %v453, 1
      %v456 = vor.u32 %v451, %v455
      %v458 = vshrl.u32 %v423, 16
      %v460 = vshll.u32 %v423, 16
      %v462 = vrot.slane %v460, 1
      %v463 = vor.u32 %v458, %v462
      %v465 = vshrl.u32 %v424, 16
      %v467 = vshll.u32 %v424, 16
      %v469 = vrot.slane %v467, 1
      %v470 = vor.u32 %v465, %v469
      %v472 = vshrl.u32 %v425, 16
      %v474 = vshll.u32 %v425, 16
      %v476 = vrot.slane %v474, 1
      %v477 = vor.u32 %v472, %v476
      %v479 = vshrl.u32 %v426, 16
      %v481 = vshll.u32 %v426, 16
      %v483 = vrot.slane %v481, 1
      %v484 = vor.u32 %v479, %v483
      %485 = vrot.lane.b32.xlu0 %v435, 8
      %v486 = vpop.permute.xlu0 %485
      %487 = vrot.lane.b32.xlu0 %v442, 8
      %v488 = vpop.permute.xlu0 %487
      %489 = vrot.lane.b32.xlu0 %v449, 8
      %v490 = vpop.permute.xlu0 %489
      %491 = vrot.lane.b32.xlu0 %v456, 8
      %v492 = vpop.permute.xlu0 %491
      %493 = vrot.lane.b32.xlu0 %v463, 8
      %v494 = vpop.permute.xlu0 %493
      %495 = vrot.lane.b32.xlu0 %v470, 8
      %v496 = vpop.permute.xlu0 %495
      %497 = vrot.lane.b32.xlu0 %v477, 8
      %v498 = vpop.permute.xlu0 %497
      %499 = vrot.lane.b32.xlu0 %v484, 8
      %v500 = vpop.permute.xlu0 %499
      %v509 = vrot.slane %v419, 1
      %v510 = vrot.slane %v420, 1
      %v511 = vrot.slane %v421, 1
      %v512 = vrot.slane %v422, 1
      %v513 = vrot.slane %v423, 1
      %v514 = vrot.slane %v424, 1
      %v515 = vrot.slane %v425, 1
      %v516 = vrot.slane %v426, 1
      %517 = vrot.lane.b32.xlu0 %v509, 16
      %v518 = vpop.permute.xlu0 %517
      %519 = vrot.lane.b32.xlu0 %v510, 16
      %v520 = vpop.permute.xlu0 %519
      %521 = vrot.lane.b32.xlu0 %v511, 16
      %v522 = vpop.permute.xlu0 %521
      %523 = vrot.lane.b32.xlu0 %v512, 16
      %v524 = vpop.permute.xlu0 %523
      %525 = vrot.lane.b32.xlu0 %v513, 16
      %v526 = vpop.permute.xlu0 %525
      %527 = vrot.lane.b32.xlu0 %v514, 16
      %v528 = vpop.permute.xlu0 %527
      %529 = vrot.lane.b32.xlu0 %v515, 16
      %v530 = vpop.permute.xlu0 %529
      %531 = vrot.lane.b32.xlu0 %v516, 16
      %v532 = vpop.permute.xlu0 %531
      %534 = vrot.lane.b32.xlu0 %v420, 24
      %v535 = vpop.permute.xlu0 %534
      %536 = vrot.lane.b32.xlu0 %v421, 24
      %v537 = vpop.permute.xlu0 %536
      %538 = vrot.lane.b32.xlu0 %v422, 24
      %v539 = vpop.permute.xlu0 %538
      %540 = vrot.lane.b32.xlu0 %v423, 24
      %v541 = vpop.permute.xlu0 %540
      %542 = vrot.lane.b32.xlu0 %v424, 24
      %v543 = vpop.permute.xlu0 %542
      %544 = vrot.lane.b32.xlu0 %v425, 24
      %v545 = vpop.permute.xlu0 %544
      %546 = vrot.lane.b32.xlu0 %v426, 24
      %v547 = vpop.permute.xlu0 %546
      %548 = vrot.lane.b32.xlu0 %v427, 24
      %v549 = vpop.permute.xlu0 %548
      %v551 = vshrl.u32 %v427, 16
      %v553 = vshll.u32 %v427, 16
      %v555 = vrot.slane %v553, 1
      %v556 = vor.u32 %v551, %v555
      %557 = vrot.lane.b32.xlu0 %v442, 32
      %v558 = vpop.permute.xlu0 %557
      %559 = vrot.lane.b32.xlu0 %v449, 32
      %v560 = vpop.permute.xlu0 %559
      %561 = vrot.lane.b32.xlu0 %v456, 32
      %v562 = vpop.permute.xlu0 %561
      %563 = vrot.lane.b32.xlu0 %v463, 32
      %v564 = vpop.permute.xlu0 %563
      %565 = vrot.lane.b32.xlu0 %v470, 32
      %v566 = vpop.permute.xlu0 %565
      %567 = vrot.lane.b32.xlu0 %v477, 32
      %v568 = vpop.permute.xlu0 %567
      %569 = vrot.lane.b32.xlu0 %v484, 32
      %v570 = vpop.permute.xlu0 %569
      %571 = vrot.lane.b32.xlu0 %v556, 32
      %v572 = vpop.permute.xlu0 %571
      %v573 = vrot.slane %v427, 1
      %574 = vrot.lane.b32.xlu0 %v510, 40
      %v575 = vpop.permute.xlu0 %574
      %576 = vrot.lane.b32.xlu0 %v511, 40
      %v577 = vpop.permute.xlu0 %576
      %578 = vrot.lane.b32.xlu0 %v512, 40
      %v579 = vpop.permute.xlu0 %578
      %580 = vrot.lane.b32.xlu0 %v513, 40
      %v581 = vpop.permute.xlu0 %580
      %582 = vrot.lane.b32.xlu0 %v514, 40
      %v583 = vpop.permute.xlu0 %582
      %584 = vrot.lane.b32.xlu0 %v515, 40
      %v585 = vpop.permute.xlu0 %584
      %586 = vrot.lane.b32.xlu0 %v516, 40
      %v587 = vpop.permute.xlu0 %586
      %588 = vrot.lane.b32.xlu0 %v573, 40
      %v589 = vpop.permute.xlu0 %588
      %591 = vrot.lane.b32.xlu0 %v421, 48
      %v592 = vpop.permute.xlu0 %591
      %593 = vrot.lane.b32.xlu0 %v422, 48
      %v594 = vpop.permute.xlu0 %593
      %595 = vrot.lane.b32.xlu0 %v423, 48
      %v596 = vpop.permute.xlu0 %595
      %597 = vrot.lane.b32.xlu0 %v424, 48
      %v598 = vpop.permute.xlu0 %597
      %599 = vrot.lane.b32.xlu0 %v425, 48
      %v600 = vpop.permute.xlu0 %599
      %601 = vrot.lane.b32.xlu0 %v426, 48
      %v602 = vpop.permute.xlu0 %601
      %603 = vrot.lane.b32.xlu0 %v427, 48
      %v604 = vpop.permute.xlu0 %603
      %605 = vrot.lane.b32.xlu0 %v428, 48
      %v606 = vpop.permute.xlu0 %605
      %v608 = vshrl.u32 %v428, 16
      %v610 = vshll.u32 %v428, 16
      %v612 = vrot.slane %v610, 1
      %v613 = vor.u32 %v608, %v612
      %614 = vrot.lane.b32.xlu0 %v449, 56
      %v615 = vpop.permute.xlu0 %614
      %616 = vrot.lane.b32.xlu0 %v456, 56
      %v617 = vpop.permute.xlu0 %616
      %618 = vrot.lane.b32.xlu0 %v463, 56
      %v619 = vpop.permute.xlu0 %618
      %620 = vrot.lane.b32.xlu0 %v470, 56
      %v621 = vpop.permute.xlu0 %620
      %622 = vrot.lane.b32.xlu0 %v477, 56
      %v623 = vpop.permute.xlu0 %622
      %624 = vrot.lane.b32.xlu0 %v484, 56
      %v625 = vpop.permute.xlu0 %624
      %626 = vrot.lane.b32.xlu0 %v556, 56
      %v627 = vpop.permute.xlu0 %626
      %628 = vrot.lane.b32.xlu0 %v613, 56
      %v629 = vpop.permute.xlu0 %628
      %v630 = vrot.slane %v428, 1
      %631 = vrot.lane.b32.xlu0 %v511, 64
      %v632 = vpop.permute.xlu0 %631
      %633 = vrot.lane.b32.xlu0 %v512, 64
      %v634 = vpop.permute.xlu0 %633
      %635 = vrot.lane.b32.xlu0 %v513, 64
      %v636 = vpop.permute.xlu0 %635
      %637 = vrot.lane.b32.xlu0 %v514, 64
      %v638 = vpop.permute.xlu0 %637
      %639 = vrot.lane.b32.xlu0 %v515, 64
      %v640 = vpop.permute.xlu0 %639
      %641 = vrot.lane.b32.xlu0 %v516, 64
      %v642 = vpop.permute.xlu0 %641
      %643 = vrot.lane.b32.xlu0 %v573, 64
      %v644 = vpop.permute.xlu0 %643
      %645 = vrot.lane.b32.xlu0 %v630, 64
      %v646 = vpop.permute.xlu0 %645
      %vm647 = vcmask 64512
      %v649 = vsel %vm647, %v419, %v486
      %v651 = vsel %vm647, %v420, %v488
      %v653 = vsel %vm647, %v421, %v490
      %v655 = vsel %vm647, %v422, %v492
      %v657 = vsel %vm647, %v423, %v494
      %v659 = vsel %vm647, %v424, %v496
      %v661 = vsel %vm647, %v425, %v498
      %v663 = vsel %vm647, %v426, %v500
      %vm664 = vcmask 130048
      %v666 = vsel %vm664, %v649, %v518
      %v668 = vsel %vm664, %v651, %v520
      %v670 = vsel %vm664, %v653, %v522
      %v672 = vsel %vm664, %v655, %v524
      %v674 = vsel %vm664, %v657, %v526
      %v676 = vsel %vm664, %v659, %v528
      %v678 = vsel %vm664, %v661, %v530
      %v680 = vsel %vm664, %v663, %v532
      %vm681 = vcmask 195584
      %v683 = vsel %vm681, %v666, %v535
      %v685 = vsel %vm681, %v668, %v537
      %v687 = vsel %vm681, %v670, %v539
      %v689 = vsel %vm681, %v672, %v541
      %v691 = vsel %vm681, %v674, %v543
      %v693 = vsel %vm681, %v676, %v545
      %v695 = vsel %vm681, %v678, %v547
      %v697 = vsel %vm681, %v680, %v549
      %vm698 = vcmask 261120
      %v700 = vsel %vm698, %v683, %v558
      %v702 = vsel %vm698, %v685, %v560
      %v704 = vsel %vm698, %v687, %v562
      %v706 = vsel %vm698, %v689, %v564
      %v708 = vsel %vm698, %v691, %v566
      %v710 = vsel %vm698, %v693, %v568
      %v712 = vsel %vm698, %v695, %v570
      %v714 = vsel %vm698, %v697, %v572
      %vm715 = vcmask 326656
      %v717 = vsel %vm715, %v700, %v575
      %v719 = vsel %vm715, %v702, %v577
      %v721 = vsel %vm715, %v704, %v579
      %v723 = vsel %vm715, %v706, %v581
      %v725 = vsel %vm715, %v708, %v583
      %v727 = vsel %vm715, %v710, %v585
      %v729 = vsel %vm715, %v712, %v587
      %v731 = vsel %vm715, %v714, %v589
      %vm732 = vcmask 392192
      %v734 = vsel %vm732, %v717, %v592
      %v736 = vsel %vm732, %v719, %v594
      %v738 = vsel %vm732, %v721, %v596
      %v740 = vsel %vm732, %v723, %v598
      %v742 = vsel %vm732, %v725, %v600
      %v744 = vsel %vm732, %v727, %v602
      %v746 = vsel %vm732, %v729, %v604
      %v748 = vsel %vm732, %v731, %v606
      %vm749 = vcmask 457728
      %v751 = vsel %vm749, %v734, %v615
      %v753 = vsel %vm749, %v736, %v617
      %v755 = vsel %vm749, %v738, %v619
      %v757 = vsel %vm749, %v740, %v621
      %v759 = vsel %vm749, %v742, %v623
      %v761 = vsel %vm749, %v744, %v625
      %v763 = vsel %vm749, %v746, %v627
      %v765 = vsel %vm749, %v748, %v629
      %vm766 = vcmask 523264
      %v768 = vsel %vm766, %v751, %v632
      %v770 = vsel %vm766, %v753, %v634
      %v772 = vsel %vm766, %v755, %v636
      %v774 = vsel %vm766, %v757, %v638
      %v776 = vsel %vm766, %v759, %v640
      %v778 = vsel %vm766, %v761, %v642
      %v780 = vsel %vm766, %v763, %v644
      %v782 = vsel %vm766, %v765, %v646
      %v783 = vld [vmem:[%s1] sm:$0xf]
      %v784 = vld [vmem:[%s1 + $0x4] sm:$0xf]
      %v785 = vld [vmem:[%s1 + $0x8] sm:$0xf]
      %v786 = vld [vmem:[%s1 + $0xc] sm:$0xf]
      %v787 = vld [vmem:[%s1 + $0x10] sm:$0xf]
      %v788 = vld [vmem:[%s1 + $0x14] sm:$0xf]
      %v789 = vld [vmem:[%s1 + $0x18] sm:$0xf]
      %v790 = vld [vmem:[%s1 + $0x1c] sm:$0xf]
      %v791 = vld [vmem:[%s1 + $0x20] sm:$0xf]
      %v800 = vunpack.c.l.b16 %v768
      %v801 = vunpack.c.l.b16 %v770
      %v802 = vunpack.c.l.b16 %v772
      %v803 = vunpack.c.l.b16 %v774
      %v804 = vunpack.c.l.b16 %v776
      %v805 = vunpack.c.l.b16 %v778
      %v806 = vunpack.c.l.b16 %v780
      %v807 = vunpack.c.l.b16 %v782
      %v808 = vpack.c.b16 %v801, %v800
      %v809 = vpack.c.b16 %v803, %v802
      %v810 = vpack.c.b16 %v805, %v804
      %v811 = vpack.c.b16 %v807, %v806
      %v821 = vunpack.c.l.b16 %v783
      %v822 = vunpack.c.l.b16 %v784
      %v823 = vunpack.c.l.b16 %v785
      %v824 = vunpack.c.l.b16 %v786
      %v825 = vunpack.c.l.b16 %v787
      %v826 = vunpack.c.l.b16 %v788
      %v827 = vunpack.c.l.b16 %v789
      %v828 = vunpack.c.l.b16 %v790
      %v829 = vunpack.c.l.b16 %v791
      %v830 = vpack.c.b16 %v822, %v821
      %v831 = vpack.c.b16 %v824, %v823
      %v832 = vpack.c.b16 %v826, %v825
      %v833 = vpack.c.b16 %v828, %v827
      %v834 = vpack.c.b16 %v829, %v829
      %vm839 = vcmask 588800
      %v841 = vsel %vm839, %v808, 0
      %v844 = vsel %vm839, %v809, 0
      %v847 = vsel %vm839, %v810, 0
      %v850 = vsel %vm839, %v811, 0
      %vm852 = vcmask 1043456
      %v854 = vsel %vm852, %v834, 0
      %856 = vmatprep.subr.bf16.mxu0 0
      %857 = vmatpush1.bf16.msra.mxu0 0
      %858 = vmatprep.subr.bf16.mxu0 0
      %859 = vmatpush1.bf16.msra.mxu0 0
      %860 = vmatprep.subr.bf16.mxu0 0
      %861 = vmatpush1.bf16.msra.mxu0 0
      %862 = vmatprep.subr.bf16.mxu0 0
      %863 = vmatpush1.bf16.msra.mxu0 %v854
      %864 = vmatprep.subr.bf16.mxu0 0
      %865 = vmatpush1.bf16.msra.mxu0 %v833
      %866 = vmatprep.subr.bf16.mxu0 0
      %867 = vmatpush1.bf16.msra.mxu0 %v832
      %868 = vmatprep.subr.bf16.mxu0 0
      %869 = vmatpush1.bf16.msra.mxu0 %v831
      %870 = vmatprep.subr.bf16.mxu0 0
      %871 = vmatpush1.bf16.msra.mxu0 %v830
      %872 = vmatprep.subr.bf16.mxu0 0
      %873 = vmatpush2.bf16.msra.mxu0 0
      %874 = vmatprep.subr.bf16.mxu0 0
      %875 = vmatpush2.bf16.msra.mxu0 0
      %876 = vmatprep.subr.bf16.mxu0 0
      %877 = vmatpush2.bf16.msra.mxu0 0
      %878 = vmatprep.subr.bf16.mxu0 0
      %879 = vmatpush2.bf16.msra.mxu0 0
      %880 = vmatprep.subr.bf16.mxu0 0
      %881 = vmatpush2.bf16.msra.mxu0 0
      %882 = vmatprep.subr.bf16.mxu0 0
      %883 = vmatpush2.bf16.msra.mxu0 0
      %884 = vmatprep.subr.bf16.mxu0 0
      %885 = vmatpush2.bf16.msra.mxu0 0
      %886 = vmatprep.subr.bf16.mxu0 0
      %887 = vmatpush2.bf16.msra.mxu0 0
      %888 = vmatprep.mubr.bf16.mxu0 0
      %889 = vmatmul.mubr.bf16.gmra.mxu0 %v841
      %v890 = vpop.f32.mrf.mxu0
      %v891 = vadd.f32 0.0, %v890
      %v892 = vpop.f32.mrf.mxu0
      %v893 = vpop.f32.mrf.mxu0
      %v894 = vadd.f32 0.0, %v893
      %v895 = vpop.f32.mrf.mxu0
      %896 = vmatprep.mubr.bf16.mxu0 0
      %897 = vmatmul.mubr.bf16.gmra.mxu0 %v844
      %v898 = vpop.f32.mrf.mxu0
      %v899 = vadd.f32 0.0, %v898
      %v900 = vpop.f32.mrf.mxu0
      %v901 = vpop.f32.mrf.mxu0
      %v902 = vadd.f32 0.0, %v901
      %v903 = vpop.f32.mrf.mxu0
      %904 = vmatprep.mubr.bf16.mxu0 0
      %905 = vmatmul.mubr.bf16.gmra.mxu0 %v847
      %v906 = vpop.f32.mrf.mxu0
      %v907 = vadd.f32 0.0, %v906
      %v908 = vpop.f32.mrf.mxu0
      %v909 = vpop.f32.mrf.mxu0
      %v910 = vadd.f32 0.0, %v909
      %v911 = vpop.f32.mrf.mxu0
      %912 = vmatprep.mubr.bf16.mxu0 0
      %913 = vmatmul.mubr.bf16.gmra.mxu0 %v850
      %v914 = vpop.f32.mrf.mxu0
      %v915 = vadd.f32 0.0, %v914
      %v916 = vpop.f32.mrf.mxu0
      %v917 = vpop.f32.mrf.mxu0
      %v918 = vadd.f32 0.0, %v917
      %v919 = vpop.f32.mrf.mxu0
      %920 = vdwg.mxu0
      %v921 = vpack.c.bf16 %v891, %v891
      %v922 = vpack.c.bf16 %v894, %v894
      %v923 = vpack.c.bf16 %v899, %v899
      %v924 = vpack.c.bf16 %v902, %v902
      %v925 = vpack.c.bf16 %v907, %v907
      %v926 = vpack.c.bf16 %v910, %v910
      %v927 = vpack.c.bf16 %v915, %v915
      %v928 = vpack.c.bf16 %v918, %v918
      %vm929 = vcmask 60416
      %930 = vst.msk [vmem:[%s262] sm:$0xf] %vm929, %v921
      %931 = vst.msk [vmem:[%s262 + $0x4] sm:$0xf] %vm929, %v922
      %932 = vst.msk [vmem:[%s262 + $0x8] sm:$0xf] %vm929, %v923
      %933 = vst.msk [vmem:[%s262 + $0xc] sm:$0xf] %vm929, %v924
      %934 = vst.msk [vmem:[%s262 + $0x10] sm:$0xf] %vm929, %v925
      %935 = vst.msk [vmem:[%s262 + $0x14] sm:$0xf] %vm929, %v926
      %936 = vst.msk [vmem:[%s262 + $0x18] sm:$0xf] %vm929, %v927
      %937 = vst.msk [vmem:[%s262 + $0x1c] sm:$0xf] %vm929, %v928
      %v938 = vsel %vm647, %v891, 0.0
      %v939 = vsel %vm647, %v894, 0.0
      %v940 = vadd.f32 %v938, %v939
      %v941 = vsel %vm647, %v899, 0.0
      %v942 = vadd.f32 %v940, %v941
      %v943 = vsel %vm647, %v902, 0.0
      %v944 = vadd.f32 %v942, %v943
      %v945 = vsel %vm647, %v907, 0.0
      %v946 = vadd.f32 %v944, %v945
      %v947 = vsel %vm647, %v910, 0.0
      %v948 = vadd.f32 %v946, %v947
      %v949 = vsel %vm647, %v915, 0.0
      %v950 = vadd.f32 %v948, %v949
      %v951 = vsel %vm647, %v918, 0.0
      %v952 = vadd.f32 %v950, %v951
      %v953 = vrot.slane %v952, 4
      %v954 = vadd.f32 %v952, %v953
      %v955 = vrot.slane %v954, 2
      %v956 = vadd.f32 %v954, %v955
      %v957 = vrot.slane %v956, 1
      %v958 = vadd.f32 %v956, %v957
      %vm959 = vcmask 57344
      %960 = vst.msk [vmem:[%s265] sm:$0x1] %vm959, %v958
      %v961 = vmul.f32 %v891, %v891
      %v962 = vmul.f32 %v894, %v894
      %v963 = vmul.f32 %v899, %v899
      %v964 = vmul.f32 %v902, %v902
      %v965 = vmul.f32 %v907, %v907
      %v966 = vmul.f32 %v910, %v910
      %v967 = vmul.f32 %v915, %v915
      %v968 = vmul.f32 %v918, %v918
      %v969 = vsel %vm647, %v961, 0.0
      %v970 = vsel %vm647, %v962, 0.0
      %v971 = vadd.f32 %v969, %v970
      %v972 = vsel %vm647, %v963, 0.0
      %v973 = vadd.f32 %v971, %v972
      %v974 = vsel %vm647, %v964, 0.0
      %v975 = vadd.f32 %v973, %v974
      %v976 = vsel %vm647, %v965, 0.0
      %v977 = vadd.f32 %v975, %v976
      %v978 = vsel %vm647, %v966, 0.0
      %v979 = vadd.f32 %v977, %v978
      %v980 = vsel %vm647, %v967, 0.0
      %v981 = vadd.f32 %v979, %v980
      %v982 = vsel %vm647, %v968, 0.0
      %v983 = vadd.f32 %v981, %v982
      %v984 = vrot.slane %v983, 4
      %v985 = vadd.f32 %v983, %v984
      %v986 = vrot.slane %v985, 2
      %v987 = vadd.f32 %v985, %v986
      %v988 = vrot.slane %v987, 1
      %v989 = vadd.f32 %v987, %v988
      %990 = vst.msk [vmem:[%s268] sm:$0x1] %vm959, %v989
      %p991 = scmp.lt.s32.totalorder %s18, 1
      %s992 = scalar_select %p991, %s18, 1
      %s993 = smul.addr %s992, 8
      %s994 = smul.addr %s993, 4
      %s995 = scalar_lea.vmem %s4, %s994
      %p996 = scmp.lt.s32.totalorder %s18, 1
      %s997 = scalar_select %p996, %s18, 1
      %s998 = scalar_lea.vmem %s5, %s997
      %p999 = scmp.lt.s32.totalorder %s18, 1
      %s1000 = scalar_select %p999, %s18, 1
      %s1001 = scalar_lea.vmem %s6, %s1000
      // Predicated region
      $region37: #{network_block2_forward.8} parent=35 // pred_check
        %p1002 = pneg %p125
      $region38: #{network_block2_forward.8} parent=35 // pred_check_branch
        %1004 = sbr.rel (%p1002) target = $region40
      $region39: #{network_block2_forward.8} parent=35 // pred_region
        _
      $region40: #{network_block2_forward.8} parent=35 // pred_fallthru
        _
      // Predicated region
      $region41: #{network_block2_forward.8} parent=35 // pred_check
        %p1005 = pneg %p151
      $region42: #{network_block2_forward.8} parent=35 // pred_check_branch
        %1007 = sbr.rel (%p1005) target = $region44
      $region43: #{network_block2_forward.8} parent=35 // pred_region
        _
      $region44: #{network_block2_forward.8} parent=35 // pred_fallthru
        _
      // Predicated region
      $region45: #{network_block2_forward.8} parent=35 // pred_check
        %p1008 = pneg %p177
      $region46: #{network_block2_forward.8} parent=35 // pred_check_branch
        %1010 = sbr.rel (%p1008) target = $region48
      $region47: #{network_block2_forward.8} parent=35 // pred_region
        _
      $region48: #{network_block2_forward.8} parent=35 // pred_fallthru
        _
    $region36: #{network_block2_forward.8} parent=5 // pred_fallthru
      _
    %p1011 = scmp.le.s32.totalorder 2, %s13
    // Predicated region
    $region49: #{network_block2_forward.8} parent=5 // pred_check
      %p1012 = pneg %p1011
    $region50: #{network_block2_forward.8} parent=5 // pred_check_branch
      %1014 = sbr.rel (%p1012) target = $region52
    $region51: #{network_block2_forward.8} parent=5 // pred_region
      %s1015 = ssub.s32 %s13, 2
      // Predicated region
      $region53: #{network_block2_forward.8} parent=51 // pred_check
        %p1016 = pneg %p131
      $region54: #{network_block2_forward.8} parent=51 // pred_check_branch
        %1018 = sbr.rel (%p1016) target = $region56
      $region55: #{network_block2_forward.8} parent=51 // pred_region
        %p1019 = scmp.lt.s32.totalorder %s19, 1
        %s1020 = scalar_select %p1019, %s19, 1
        %s1021 = smul.addr %s1020, 8
        %s1022 = smul.addr %s1021, 4
        %s1023 = scalar_lea.vmem %s4, %s1022
      $region56: #{network_block2_forward.8} parent=51 // pred_fallthru
        _
      // Predicated region
      $region57: #{network_block2_forward.8} parent=51 // pred_check
        %p1024 = pneg %p157
      $region58: #{network_block2_forward.8} parent=51 // pred_check_branch
        %1026 = sbr.rel (%p1024) target = $region60
      $region59: #{network_block2_forward.8} parent=51 // pred_region
        %p1027 = scmp.lt.s32.totalorder %s19, 1
        %s1028 = scalar_select %p1027, %s19, 1
        %s1029 = scalar_lea.vmem %s5, %s1028
      $region60: #{network_block2_forward.8} parent=51 // pred_fallthru
        _
      // Predicated region
      $region61: #{network_block2_forward.8} parent=51 // pred_check
        %p1030 = pneg %p183
      $region62: #{network_block2_forward.8} parent=51 // pred_check_branch
        %1032 = sbr.rel (%p1030) target = $region64
      $region63: #{network_block2_forward.8} parent=51 // pred_region
        %p1033 = scmp.lt.s32.totalorder %s19, 1
        %s1034 = scalar_select %p1033, %s19, 1
        %s1035 = scalar_lea.vmem %s6, %s1034
      $region64: #{network_block2_forward.8} parent=51 // pred_fallthru
        _
    $region52: #{network_block2_forward.8} parent=5 // pred_fallthru
      _
  $region6: #{network_block2_forward.8} parent=0 // loop_footer
    %s17 = sadd.s32 1, %s13
  $region7: #{network_block2_forward.8} parent=0 // loop_footer_branch
    %12 = sbr.rel target = $region3
  $region8: #{network_block2_forward.8} parent=0 // loop_exit
    _

// kernel: network_block2_forward.9
$region0: #{network_block2_forward.9}
  #allocation0 [shape = 'u32[]', space=smem, size = 0x4, offset = 0x4, fixed_abs, tag = 'smem constant byte address 0x4 - core index']
  #allocation1 [shape = 'u32[144,128]{1,0:T(1,128)}', space=vmem, size = 0x12000, scoped, tag = 'internal scratch']
  %s0 = inlined_call_operand.vmem [shape: bf16[2,10,10,8], index: 0, kind: input, shape index: {}]
  %s1 = inlined_call_operand.vmem [shape: bf16[72,8], index: 1, kind: input, shape index: {}]
  %s2 = inlined_call_operand.vmem [shape: f32[1,1,8], index: 2, kind: input, shape index: {}]
  %s3 = inlined_call_operand.vmem [shape: f32[1,1,8], index: 3, kind: input, shape index: {}]
  %s4 = inlined_call_operand.vmem [shape: bf16[2,8,8,8], index: 4, kind: input, shape index: {}]
  %s5 = inlined_call_operand.vmem [shape: f32[2,8,8,8], index: 5, kind: output, shape index: {0}]
  %s6 = inlined_call_operand.hbm [shape: f32[2,1,8], index: 6, kind: output, shape index: {1}]
  %s7 = inlined_call_operand.hbm [shape: f32[2,1,8], index: 7, kind: output, shape index: {2}]
  %8 = xla_tuple %s5, %s6, %s7
  %s9 = sld [smem:[#allocation0]]
  $region69: #{network_block2_forward.9} parent=0
    _
  %s11 = ssub.s32 1, %s9
  %s12 = scalar_select 0, %s11, %s9
  $region1: #{network_block2_forward.9} parent=0
    #allocation2 [shape = 'u8[1024]{0}', space=vmem, size = 0x400, scoped, tag = 'output window, operand 1']
    #allocation3 [shape = 's32[2]{0}', space=sflag, size = 0x8, scoped, tag = 'scoped memory for network_block2_forward.9']
    #allocation4 [shape = 'u8[1024]{0}', space=vmem, size = 0x400, scoped, tag = 'output window, operand 2']
    #allocation5 [shape = 's32[2]{0}', space=sflag, size = 0x8, scoped, tag = 'scoped memory for network_block2_forward.9']
    %13 = vsyncpa [#allocation3], 0
    %s14 = scalar_lea.sflag [#allocation3], 1
    %15 = vsyncpa %s14, 0
    %16 = vsyncpa [#allocation5], 0
    %s17 = scalar_lea.sflag [#allocation5], 1
    %18 = vsyncpa %s17, 0
    loop: start=0, step=1, limit=4
    $region2: #{network_block2_forward.9} parent=1 // loop_pre_header
      _
    $region3: #{network_block2_forward.9} parent=1 // loop_header
      %s20 = sphi 0, %s24
      %p21 = scmp.ge.s32.totalorder %s20, 4
      %s30 = sphi 0, %s32
      %s33 = sphi 0, %s30
      %s34 = sphi 0, %s33
      %s50 = sphi 0, %s34
      %s54 = sphi 0, %s54
      %s56 = sphi 0, %s54
      %s57 = sphi 0, %s56
      %s71 = sphi 0, %s57
      %s75 = sphi 0, %s75
      %s77 = sphi 0, %s75
      %s78 = sphi 0, %s77
      %s92 = sphi 0, %s78
      %s96 = sphi 0, %s96
      %s98 = sphi 0, %s96
      %s99 = sphi 0, %s98
      %s113 = sphi 0, %s99
      %s119 = sphi 0, %s121
      %s122 = sphi 0, %s119
      %s123 = sphi 0, %s122
      %s139 = sphi 0, %s123
      %s145 = sphi 0, %s147
      %s148 = sphi 0, %s145
      %s149 = sphi 0, %s148
      %s165 = sphi 0, %s149
      %s171 = sphi 0, %s173
      %s174 = sphi 0, %s171
      %s175 = sphi 0, %s174
      %s191 = sphi 0, %s175
      %s197 = sphi 0, %s199
      %s200 = sphi 0, %s197
      %s201 = sphi 0, %s200
      %s217 = sphi 0, %s201
    $region4: #{network_block2_forward.9} parent=1 // loop_header_branch
      %23 = sbr.rel (%p21) target = $region8
    $region5: #{network_block2_forward.9} parent=1 // loop_body
      %s25 = ssub.s32 %s20, 1
      %s26 = ssub.s32 %s20, 2
      %s27 = sadd.s32 %s20, 1
      %s28 = ssub.s32 %s20, %s27
      %p29 = scmp.eq.s32.totalorder %s28, 0
      %s31 = sadd.s32 %s30, 1
      %s32 = scalar_select %p29, %s30, %s31
      %p35 = pneg %p29
      %p36 = scmp.eq.s32.totalorder %s20, 1
      %p37 = por %p35, %p36
      %p38 = scmp.ne.s32.totalorder %s30, %s33
      %p39 = scmp.eq.s32.totalorder %s20, 0
      %p40 = por %p38, %p39
      %p41 = scmp.ne.s32.totalorder %s30, %s33
      %p42 = scmp.eq.s32.totalorder %s25, 1
      %p43 = por %p41, %p42
      %p44 = scmp.ne.s32.totalorder %s33, %s34
      %p45 = scmp.eq.s32.totalorder %s25, 0
      %p46 = por %p44, %p45
      %p47 = scmp.ne.s32.totalorder %s33, %s34
      %p48 = scmp.eq.s32.totalorder %s26, 1
      %p49 = por %p47, %p48
      %p51 = scmp.ne.s32.totalorder %s34, %s50
      %p52 = scmp.eq.s32.totalorder %s26, 0
      %p53 = por %p51, %p52
      %s55 = sadd.s32 %s54, 1
      %p58 = scmp.eq.s32.totalorder %s20, 1
      %p59 = scmp.ne.s32.totalorder %s54, %s56
      %p60 = scmp.eq.s32.totalorder %s20, 0
      %p61 = por %p59, %p60
      %p62 = scmp.ne.s32.totalorder %s54, %s56
      %p63 = scmp.eq.s32.totalorder %s25, 1
      %p64 = por %p62, %p63
      %p65 = scmp.ne.s32.totalorder %s56, %s57
      %p66 = scmp.eq.s32.totalorder %s25, 0
      %p67 = por %p65, %p66
      %p68 = scmp.ne.s32.totalorder %s56, %s57
      %p69 = scmp.eq.s32.totalorder %s26, 1
      %p70 = por %p68, %p69
      %p72 = scmp.ne.s32.totalorder %s57, %s71
      %p73 = scmp.eq.s32.totalorder %s26, 0
      %p74 = por %p72, %p73
      %s76 = sadd.s32 %s75, 1
      %p79 = scmp.eq.s32.totalorder %s20, 1
      %p80 = scmp.ne.s32.totalorder %s75, %s77
      %p81 = scmp.eq.s32.totalorder %s20, 0
      %p82 = por %p80, %p81
      %p83 = scmp.ne.s32.totalorder %s75, %s77
      %p84 = scmp.eq.s32.totalorder %s25, 1
      %p85 = por %p83, %p84
      %p86 = scmp.ne.s32.totalorder %s77, %s78
      %p87 = scmp.eq.s32.totalorder %s25, 0
      %p88 = por %p86, %p87
      %p89 = scmp.ne.s32.totalorder %s77, %s78
      %p90 = scmp.eq.s32.totalorder %s26, 1
      %p91 = por %p89, %p90
      %p93 = scmp.ne.s32.totalorder %s78, %s92
      %p94 = scmp.eq.s32.totalorder %s26, 0
      %p95 = por %p93, %p94
      %s97 = sadd.s32 %s96, 1
      %p100 = scmp.eq.s32.totalorder %s20, 1
      %p101 = scmp.ne.s32.totalorder %s96, %s98
      %p102 = scmp.eq.s32.totalorder %s20, 0
      %p103 = por %p101, %p102
      %p104 = scmp.ne.s32.totalorder %s96, %s98
      %p105 = scmp.eq.s32.totalorder %s25, 1
      %p106 = por %p104, %p105
      %p107 = scmp.ne.s32.totalorder %s98, %s99
      %p108 = scmp.eq.s32.totalorder %s25, 0
      %p109 = por %p107, %p108
      %p110 = scmp.ne.s32.totalorder %s98, %s99
      %p111 = scmp.eq.s32.totalorder %s26, 1
      %p112 = por %p110, %p111
      %p114 = scmp.ne.s32.totalorder %s99, %s113
      %p115 = scmp.eq.s32.totalorder %s26, 0
      %p116 = por %p114, %p115
      %s117 = ssub.s32 %s20, %s27
      %p118 = scmp.eq.s32.totalorder %s117, 0
      %s120 = sadd.s32 %s119, 1
      %s121 = scalar_select %p118, %s119, %s120
      %p124 = pneg %p118
      %p125 = scmp.eq.s32.totalorder %s20, 1
      %p126 = por %p124, %p125
      %p127 = scmp.ne.s32.totalorder %s119, %s122
      %p128 = scmp.eq.s32.totalorder %s20, 0
      %p129 = por %p127, %p128
      %p130 = scmp.ne.s32.totalorder %s119, %s122
      %p131 = scmp.eq.s32.totalorder %s25, 1
      %p132 = por %p130, %p131
      %p133 = scmp.ne.s32.totalorder %s122, %s123
      %p134 = scmp.eq.s32.totalorder %s25, 0
      %p135 = por %p133, %p134
      %p136 = scmp.ne.s32.totalorder %s122, %s123
      %p137 = scmp.eq.s32.totalorder %s26, 1
      %p138 = por %p136, %p137
      %p140 = scmp.ne.s32.totalorder %s123, %s139
      %p141 = scmp.eq.s32.totalorder %s26, 0
      %p142 = por %p140, %p141
      %s143 = ssub.s32 %s20, %s27
      %p144 = scmp.eq.s32.totalorder %s143, 0
      %s146 = sadd.s32 %s145, 1
      %s147 = scalar_select %p144, %s145, %s146
      %p150 = pneg %p144
      %p151 = scmp.eq.s32.totalorder %s20, 1
      %p152 = por %p150, %p151
      %p153 = scmp.ne.s32.totalorder %s145, %s148
      %p154 = scmp.eq.s32.totalorder %s20, 0
      %p155 = por %p153, %p154
      %p156 = scmp.ne.s32.totalorder %s145, %s148
      %p157 = scmp.eq.s32.totalorder %s25, 1
      %p158 = por %p156, %p157
      %p159 = scmp.ne.s32.totalorder %s148, %s149
      %p160 = scmp.eq.s32.totalorder %s25, 0
      %p161 = por %p159, %p160
      %p162 = scmp.ne.s32.totalorder %s148, %s149
      %p163 = scmp.eq.s32.totalorder %s26, 1
      %p164 = por %p162, %p163
      %p166 = scmp.ne.s32.totalorder %s149, %s165
      %p167 = scmp.eq.s32.totalorder %s26, 0
      %p168 = por %p166, %p167
      %s169 = ssub.s32 %s20, %s27
      %p170 = scmp.eq.s32.totalorder %s169, 0
      %s172 = sadd.s32 %s171, 1
      %s173 = scalar_select %p170, %s171, %s172
      %p176 = pneg %p170
      %p177 = scmp.eq.s32.totalorder %s20, 1
      %p178 = por %p176, %p177
      %p179 = scmp.ne.s32.totalorder %s171, %s174
      %p180 = scmp.eq.s32.totalorder %s20, 0
      %p181 = por %p179, %p180
      %p182 = scmp.ne.s32.totalorder %s171, %s174
      %p183 = scmp.eq.s32.totalorder %s25, 1
      %p184 = por %p182, %p183
      %p185 = scmp.ne.s32.totalorder %s174, %s175
      %p186 = scmp.eq.s32.totalorder %s25, 0
      %p187 = por %p185, %p186
      %p188 = scmp.ne.s32.totalorder %s174, %s175
      %p189 = scmp.eq.s32.totalorder %s26, 1
      %p190 = por %p188, %p189
      %p192 = scmp.ne.s32.totalorder %s175, %s191
      %p193 = scmp.eq.s32.totalorder %s26, 0
      %p194 = por %p192, %p193
      %s195 = ssub.s32 %s20, %s27
      %p196 = scmp.eq.s32.totalorder %s195, 0
      %s198 = sadd.s32 %s197, 1
      %s199 = scalar_select %p196, %s197, %s198
      %p202 = pneg %p196
      %p203 = scmp.eq.s32.totalorder %s20, 1
      %p204 = por %p202, %p203
      %p205 = scmp.ne.s32.totalorder %s197, %s200
      %p206 = scmp.eq.s32.totalorder %s20, 0
      %p207 = por %p205, %p206
      %p208 = scmp.ne.s32.totalorder %s197, %s200
      %p209 = scmp.eq.s32.totalorder %s25, 1
      %p210 = por %p208, %p209
      %p211 = scmp.ne.s32.totalorder %s200, %s201
      %p212 = scmp.eq.s32.totalorder %s25, 0
      %p213 = por %p211, %p212
      %p214 = scmp.ne.s32.totalorder %s200, %s201
      %p215 = scmp.eq.s32.totalorder %s26, 1
      %p216 = por %p214, %p215
      %p218 = scmp.ne.s32.totalorder %s201, %s217
      %p219 = scmp.eq.s32.totalorder %s26, 0
      %p220 = por %p218, %p219
      %p221 = scmp.le.s32.totalorder 1, %s20
      %p222 = scmp.lt.s32.totalorder %s20, 3
      %p223 = pnand %p221, %p222
      %p224 = pneg %p223
      // Predicated region
      $region9: #{network_block2_forward.9} parent=5 // pred_check
        _
      $region10: #{network_block2_forward.9} parent=5 // pred_check_branch
        %226 = sbr.rel (%p223) target = $region12
      $region11: #{network_block2_forward.9} parent=5 // pred_region
        %s227 = ssub.s32 %s20, 1
        // Predicated region
        $region13: #{network_block2_forward.9} parent=11 // pred_check
          %p228 = pneg %p67
        $region14: #{network_block2_forward.9} parent=11 // pred_check_branch
          %230 = sbr.rel (%p228) target = $region16
        $region15: #{network_block2_forward.9} parent=11 // pred_region
          _
        $region16: #{network_block2_forward.9} parent=11 // pred_fallthru
          _
        // Predicated region
        $region17: #{network_block2_forward.9} parent=11 // pred_check
          %p231 = pneg %p88
        $region18: #{network_block2_forward.9} parent=11 // pred_check_branch
          %233 = sbr.rel (%p231) target = $region20
        $region19: #{network_block2_forward.9} parent=11 // pred_region
          _
        $region20: #{network_block2_forward.9} parent=11 // pred_fallthru
          _
        // Predicated region
        $region21: #{network_block2_forward.9} parent=11 // pred_check
          %p234 = pneg %p109
        $region22: #{network_block2_forward.9} parent=11 // pred_check_branch
          %236 = sbr.rel (%p234) target = $region24
        $region23: #{network_block2_forward.9} parent=11 // pred_region
          _
        $region24: #{network_block2_forward.9} parent=11 // pred_fallthru
          _
      $region12: #{network_block2_forward.9} parent=5 // pred_fallthru
        _
      %p237 = scmp.lt.s32.totalorder %s20, 2
      // Predicated region
      $region25: #{network_block2_forward.9} parent=5 // pred_check
        %p238 = pneg %p237
      $region26: #{network_block2_forward.9} parent=5 // pred_check_branch
        %240 = sbr.rel (%p238) target = $region28
      $region27: #{network_block2_forward.9} parent=5 // pred_region
        // Predicated region
        $region29: #{network_block2_forward.9} parent=27 // pred_check
          %p241 = pneg %p40
        $region30: #{network_block2_forward.9} parent=27 // pred_check_branch
          %243 = sbr.rel (%p241) target = $region32
        $region31: #{network_block2_forward.9} parent=27 // pred_region
          %p244 = scmp.lt.s32.totalorder %s20, 1
          %s245 = scalar_select %p244, %s20, 1
          %s246 = smul.addr %s245, 20
          %s247 = smul.addr %s246, 4
          %s248 = scalar_lea.vmem %s0, %s247
        $region32: #{network_block2_forward.9} parent=27 // pred_fallthru
          _
        // Predicated region
        $region33: #{network_block2_forward.9} parent=27 // pred_check
          %p249 = pneg %p129
        $region34: #{network_block2_forward.9} parent=27 // pred_check_branch
          %251 = sbr.rel (%p249) target = $region36
        $region35: #{network_block2_forward.9} parent=27 // pred_region
          %p252 = scmp.lt.s32.totalorder %s20, 1
          %s253 = scalar_select %p252, %s20, 1
          %s254 = smul.addr %s253, 8
          %s255 = smul.addr %s254, 4
          %s256 = scalar_lea.vmem %s4, %s255
        $region36: #{network_block2_forward.9} parent=27 // pred_fallthru
          _
      $region28: #{network_block2_forward.9} parent=5 // pred_fallthru
        _
      %p257 = scmp.le.s32.totalorder 1, %s20
      %p258 = scmp.lt.s32.totalorder %s20, 3
      %p259 = pnand %p257, %p258
      %p260 = pneg %p259
      // Predicated region
      $region37: #{network_block2_forward.9} parent=5 // pred_check
        _
      $region38: #{network_block2_forward.9} parent=5 // pred_check_branch
        %262 = sbr.rel (%p259) target = $region40
      $region39: #{network_block2_forward.9} parent=5 // pred_region
        %s263 = ssub.s32 %s20, 1
        %p264 = scmp.lt.s32.totalorder %s25, 1
        %s265 = scalar_select %p264, %s25, 1
        %s266 = smul.addr %s265, 20
        %s267 = smul.addr %s266, 4
        %s268 = scalar_lea.vmem %s0, %s267
        %p269 = pneg %p46
        %p270 = pneg %p43
        %p271 = pneg %p67
        %p272 = pneg %p64
        %p273 = pneg %p88
        %p274 = pneg %p85
        %p275 = pneg %p109
        %p276 = pneg %p106
        %p277 = scmp.lt.s32.totalorder %s25, 1
        %s278 = scalar_select %p277, %s25, 1
        %s279 = smul.addr %s278, 8
        %s280 = smul.addr %s279, 4
        %s281 = scalar_lea.vmem %s4, %s280
        %p282 = pneg %p135
        %p283 = pneg %p132
        %p284 = pneg %p161
        %p285 = pneg %p158
        %p286 = scmp.lt.s32.totalorder %s25, 1
        %s287 = scalar_select %p286, %s25, 1
        %s288 = smul.addr %s287, 8
        %s289 = smul.addr %s288, 8
        %s290 = scalar_lea.vmem %s5, %s289
        %p291 = pneg %p187
        %p292 = pneg %p184
        %s293 = sand.u32 %s174, 1
        %s294 = scalar_lea.sflag [#allocation3], %s293
        %s295 = sand.u32 %s174, 1
        %s296 = scalar_lea.vmem [#allocation2], %s295
        %p297 = pneg %p213
        %p298 = pneg %p210
        %s299 = sand.u32 %s200, 1
        %s300 = scalar_lea.sflag [#allocation5], %s299
        %s301 = sand.u32 %s200, 1
        %s302 = scalar_lea.vmem [#allocation4], %s301
        %p303 = scmp.lt.s32.totalorder %s25, 1
        %s304 = scalar_select %p303, %s25, 1
        %s305 = smul.addr %s304, 20
        %s306 = smul.addr %s305, 4
        %s307 = scalar_lea.vmem %s0, %s306
        %p308 = scmp.lt.s32.totalorder %s25, 1
        %s309 = scalar_select %p308, %s25, 1
        %s310 = smul.addr %s309, 8
        %s311 = smul.addr %s310, 4
        %s312 = scalar_lea.vmem %s4, %s311
        %p313 = scmp.lt.s32.totalorder %s25, 1
        %s314 = scalar_select %p313, %s25, 1
        %s315 = smul.addr %s314, 8
        %s316 = smul.addr %s315, 8
        %s317 = scalar_lea.vmem %s5, %s316
        %v319 = vld [vmem:[%s307] sm:$0xf]
        %v320 = vld [vmem:[%s307 + $0x4] sm:$0x1]
        %v321 = vld [vmem:[%s307 + $0x8] sm:$0xf]
        %v322 = vld [vmem:[%s307 + $0xc] sm:$0x1]
        %v323 = vld [vmem:[%s307 + $0x10] sm:$0xf]
        %v324 = vld [vmem:[%s307 + $0x14] sm:$0x1]
        %v325 = vld [vmem:[%s307 + $0x18] sm:$0xf]
        %v326 = vld [vmem:[%s307 + $0x1c] sm:$0x1]
        %v327 = vld [vmem:[%s307 + $0x20] sm:$0xf]
        %v328 = vld [vmem:[%s307 + $0x24] sm:$0x1]
        %v329 = vld [vmem:[%s307 + $0x28] sm:$0xf]
        %v330 = vld [vmem:[%s307 + $0x2c] sm:$0x1]
        %v331 = vld [vmem:[%s307 + $0x30] sm:$0xf]
        %v332 = vld [vmem:[%s307 + $0x34] sm:$0x1]
        %v333 = vld [vmem:[%s307 + $0x38] sm:$0xf]
        %v334 = vld [vmem:[%s307 + $0x3c] sm:$0x1]
        %v335 = vld [vmem:[%s307 + $0x40] sm:$0xf]
        %v336 = vld [vmem:[%s307 + $0x44] sm:$0x1]
        %v337 = vld [vmem:[%s307 + $0x48] sm:$0xf]
        %v338 = vld [vmem:[%s307 + $0x4c] sm:$0x1]
        %v339 = vunpack.c.l.bf16 %v319
        %v340 = vunpack.c.l.bf16 %v320
        %v341 = vunpack.c.l.bf16 %v321
        %v342 = vunpack.c.l.bf16 %v322
        %v343 = vunpack.c.l.bf16 %v323
        %v344 = vunpack.c.l.bf16 %v324
        %v345 = vunpack.c.l.bf16 %v325
        %v346 = vunpack.c.l.bf16 %v326
        %v347 = vunpack.c.l.bf16 %v327
        %v348 = vunpack.c.l.bf16 %v328
        %v349 = vunpack.c.l.bf16 %v329
        %v350 = vunpack.c.l.bf16 %v330
        %v351 = vunpack.c.l.bf16 %v331
        %v352 = vunpack.c.l.bf16 %v332
        %v353 = vunpack.c.l.bf16 %v333
        %v354 = vunpack.c.l.bf16 %v334
        %v355 = vunpack.c.l.bf16 %v335
        %v356 = vunpack.c.l.bf16 %v336
        %v357 = vunpack.c.l.bf16 %v337
        %v358 = vunpack.c.l.bf16 %v338
        %v359 = vld [vmem:[%s2] sm:$0x1]
        %v361 = vlaneseq
        %v362 = vshrl.u32 %v361, 7
        %v363 = vsub.s32 0, %v362
        %v364 = vrot.slane %v359, %v363
        %v366 = vmul.f32 %v339, %v364
        %v367 = vmul.f32 %v340, %v364
        %v368 = vmul.f32 %v341, %v364
        %v369 = vmul.f32 %v342, %v364
        %v370 = vmul.f32 %v343, %v364
        %v371 = vmul.f32 %v344, %v364
        %v372 = vmul.f32 %v345, %v364
        %v373 = vmul.f32 %v346, %v364
        %v374 = vmul.f32 %v347, %v364
        %v375 = vmul.f32 %v348, %v364
        %v376 = vmul.f32 %v349, %v364
        %v377 = vmul.f32 %v350, %v364
        %v378 = vmul.f32 %v351, %v364
        %v379 = vmul.f32 %v352, %v364
        %v380 = vmul.f32 %v353, %v364
        %v381 = vmul.f32 %v354, %v364
        %v382 = vmul.f32 %v355, %v364
        %v383 = vmul.f32 %v356, %v364
        %v384 = vmul.f32 %v357, %v364
        %v385 = vmul.f32 %v358, %v364
        %v386 = vld [vmem:[%s3] sm:$0x1]
        %v388 = vlaneseq
        %v389 = vshrl.u32 %v388, 7
        %v390 = vsub.s32 0, %v389
        %v391 = vrot.slane %v386, %v390
        %v393 = vadd.f32 %v366, %v391
        %v394 = vadd.f32 %v367, %v391
        %v395 = vadd.f32 %v368, %v391
        %v396 = vadd.f32 %v369, %v391
        %v397 = vadd.f32 %v370, %v391
        %v398 = vadd.f32 %v371, %v391
        %v399 = vadd.f32 %v372, %v391
        %v400 = vadd.f32 %v373, %v391
        %v401 = vadd.f32 %v374, %v391
        %v402 = vadd.f32 %v375, %v391
        %v403 = vadd.f32 %v376, %v391
        %v404 = vadd.f32 %v377, %v391
        %v405 = vadd.f32 %v378, %v391
        %v406 = vadd.f32 %v379, %v391
        %v407 = vadd.f32 %v380, %v391
        %v408 = vadd.f32 %v381, %v391
        %v409 = vadd.f32 %v382, %v391
        %v410 = vadd.f32 %v383, %v391
        %v411 = vadd.f32 %v384, %v391
        %v412 = vadd.f32 %v385, %v391
        %v413 = vmax.f32 %v393, 0.0
        %v414 = vmax.f32 %v394, 0.0
        %v415 = vmax.f32 %v395, 0.0
        %v416 = vmax.f32 %v396, 0.0
        %v417 = vmax.f32 %v397, 0.0
        %v418 = vmax.f32 %v398, 0.0
        %v419 = vmax.f32 %v399, 0.0
        %v420 = vmax.f32 %v400, 0.0
        %v421 = vmax.f32 %v401, 0.0
        %v422 = vmax.f32 %v402, 0.0
        %v423 = vmax.f32 %v403, 0.0
        %v424 = vmax.f32 %v404, 0.0
        %v425 = vmax.f32 %v405, 0.0
        %v426 = vmax.f32 %v406, 0.0
        %v427 = vmax.f32 %v407, 0.0
        %v428 = vmax.f32 %v408, 0.0
        %v429 = vmax.f32 %v409, 0.0
        %v430 = vmax.f32 %v410, 0.0
        %v431 = vmax.f32 %v411, 0.0
        %v432 = vmax.f32 %v412, 0.0
        %v433 = vlaneseq
        %v434 = vshrl.u32 %v433, 7
        %v435 = vadd.s32 %v434, 8
        %vm436 = vcmp.ge.s32.totalorder %v434, 1
        %vm437 = vcmp.ge.s32.totalorder %v435, 1
        %vm438 = vmand 0, %vm436
        %vm439 = vmand 0, %vm437
        %vm440 = vmand 1, %vm436
        %vm441 = vmand 1, %vm437
        %vm442 = vcmp.lt.s32.totalorder %v434, 9
        %vm443 = vcmp.lt.s32.totalorder %v435, 9
        %vm444 = vmand %vm438, %vm442
        %vm445 = vmand %vm439, %vm443
        %vm446 = vmand %vm440, %vm442
        %vm447 = vmand %vm441, %vm443
        %v448 = vsel %vm444, %v413, 0.0
        %v449 = vsel %vm445, %v414, 0.0
        %v450 = vsel %vm446, %v415, 0.0
        %v451 = vsel %vm447, %v416, 0.0
        %v452 = vsel %vm446, %v417, 0.0
        %v453 = vsel %vm447, %v418, 0.0
        %v454 = vsel %vm446, %v419, 0.0
        %v455 = vsel %vm447, %v420, 0.0
        %v456 = vsel %vm446, %v421, 0.0
        %v457 = vsel %vm447, %v422, 0.0
        %v458 = vsel %vm446, %v423, 0.0
        %v459 = vsel %vm447, %v424, 0.0
        %v460 = vsel %vm446, %v425, 0.0
        %v461 = vsel %vm447, %v426, 0.0
        %v462 = vsel %vm446, %v427, 0.0
        %v463 = vsel %vm447, %v428, 0.0
        %v464 = vsel %vm446, %v429, 0.0
        %v465 = vsel %vm447, %v430, 0.0
        %v466 = vsel %vm444, %v431, 0.0
        %v467 = vsel %vm445, %v432, 0.0
        %v468 = vpack.c.bf16 %v449, %v448
        %v469 = vpack.c.bf16 %v451, %v450
        %v470 = vpack.c.bf16 %v453, %v452
        %v471 = vpack.c.bf16 %v455, %v454
        %v472 = vpack.c.bf16 %v457, %v456
        %v473 = vpack.c.bf16 %v459, %v458
        %v474 = vpack.c.bf16 %v461, %v460
        %v475 = vpack.c.bf16 %v463, %v462
        %v476 = vpack.c.bf16 %v465, %v464
        %v477 = vpack.c.bf16 %v467, %v466
        %v479 = vshrl.u32 %v468, 16
        %v481 = vshll.u32 %v468, 16
        %v483 = vrot.slane %v481, 1
        %v484 = vor.u32 %v479, %v483
        %v486 = vshrl.u32 %v469, 16
        %v488 = vshll.u32 %v469, 16
        %v490 = vrot.slane %v488, 1
        %v491 = vor.u32 %v486, %v490
        %v493 = vshrl.u32 %v470, 16
        %v495 = vshll.u32 %v470, 16
        %v497 = vrot.slane %v495, 1
        %v498 = vor.u32 %v493, %v497
        %v500 = vshrl.u32 %v471, 16
        %v502 = vshll.u32 %v471, 16
        %v504 = vrot.slane %v502, 1
        %v505 = vor.u32 %v500, %v504
        %v507 = vshrl.u32 %v472, 16
        %v509 = vshll.u32 %v472, 16
        %v511 = vrot.slane %v509, 1
        %v512 = vor.u32 %v507, %v511
        %v514 = vshrl.u32 %v473, 16
        %v516 = vshll.u32 %v473, 16
        %v518 = vrot.slane %v516, 1
        %v519 = vor.u32 %v514, %v518
        %v521 = vshrl.u32 %v474, 16
        %v523 = vshll.u32 %v474, 16
        %v525 = vrot.slane %v523, 1
        %v526 = vor.u32 %v521, %v525
        %v528 = vshrl.u32 %v475, 16
        %v530 = vshll.u32 %v475, 16
        %v532 = vrot.slane %v530, 1
        %v533 = vor.u32 %v528, %v532
        %534 = vrot.lane.b32.xlu0 %v484, 8
        %v535 = vpop.permute.xlu0 %534
        %536 = vrot.lane.b32.xlu0 %v491, 8
        %v537 = vpop.permute.xlu0 %536
        %538 = vrot.lane.b32.xlu0 %v498, 8
        %v539 = vpop.permute.xlu0 %538
        %540 = vrot.lane.b32.xlu0 %v505, 8
        %v541 = vpop.permute.xlu0 %540
        %542 = vrot.lane.b32.xlu0 %v512, 8
        %v543 = vpop.permute.xlu0 %542
        %544 = vrot.lane.b32.xlu0 %v519, 8
        %v545 = vpop.permute.xlu0 %544
        %546 = vrot.lane.b32.xlu0 %v526, 8
        %v547 = vpop.permute.xlu0 %546
        %548 = vrot.lane.b32.xlu0 %v533, 8
        %v549 = vpop.permute.xlu0 %548
        %v558 = vrot.slane %v468, 1
        %v559 = vrot.slane %v469, 1
        %v560 = vrot.slane %v470, 1
        %v561 = vrot.slane %v471, 1
        %v562 = vrot.slane %v472, 1
        %v563 = vrot.slane %v473, 1
        %v564 = vrot.slane %v474, 1
        %v565 = vrot.slane %v475, 1
        %566 = vrot.lane.b32.xlu0 %v558, 16
        %v567 = vpop.permute.xlu0 %566
        %568 = vrot.lane.b32.xlu0 %v559, 16
        %v569 = vpop.permute.xlu0 %568
        %570 = vrot.lane.b32.xlu0 %v560, 16
        %v571 = vpop.permute.xlu0 %570
        %572 = vrot.lane.b32.xlu0 %v561, 16
        %v573 = vpop.permute.xlu0 %572
        %574 = vrot.lane.b32.xlu0 %v562, 16
        %v575 = vpop.permute.xlu0 %574
        %576 = vrot.lane.b32.xlu0 %v563, 16
        %v577 = vpop.permute.xlu0 %576
        %578 = vrot.lane.b32.xlu0 %v564, 16
        %v579 = vpop.permute.xlu0 %578
        %580 = vrot.lane.b32.xlu0 %v565, 16
        %v581 = vpop.permute.xlu0 %580
        %583 = vrot.lane.b32.xlu0 %v469, 24
        %v584 = vpop.permute.xlu0 %583
        %585 = vrot.lane.b32.xlu0 %v470, 24
        %v586 = vpop.permute.xlu0 %585
        %587 = vrot.lane.b32.xlu0 %v471, 24
        %v588 = vpop.permute.xlu0 %587
        %589 = vrot.lane.b32.xlu0 %v472, 24
        %v590 = vpop.permute.xlu0 %589
        %591 = vrot.lane.b32.xlu0 %v473, 24
        %v592 = vpop.permute.xlu0 %591
        %593 = vrot.lane.b32.xlu0 %v474, 24
        %v594 = vpop.permute.xlu0 %593
        %595 = vrot.lane.b32.xlu0 %v475, 24
        %v596 = vpop.permute.xlu0 %595
        %597 = vrot.lane.b32.xlu0 %v476, 24
        %v598 = vpop.permute.xlu0 %597
        %v600 = vshrl.u32 %v476, 16
        %v602 = vshll.u32 %v476, 16
        %v604 = vrot.slane %v602, 1
        %v605 = vor.u32 %v600, %v604
        %606 = vrot.lane.b32.xlu0 %v491, 32
        %v607 = vpop.permute.xlu0 %606
        %608 = vrot.lane.b32.xlu0 %v498, 32
        %v609 = vpop.permute.xlu0 %608
        %610 = vrot.lane.b32.xlu0 %v505, 32
        %v611 = vpop.permute.xlu0 %610
        %612 = vrot.lane.b32.xlu0 %v512, 32
        %v613 = vpop.permute.xlu0 %612
        %614 = vrot.lane.b32.xlu0 %v519, 32
        %v615 = vpop.permute.xlu0 %614
        %616 = vrot.lane.b32.xlu0 %v526, 32
        %v617 = vpop.permute.xlu0 %616
        %618 = vrot.lane.b32.xlu0 %v533, 32
        %v619 = vpop.permute.xlu0 %618
        %620 = vrot.lane.b32.xlu0 %v605, 32
        %v621 = vpop.permute.xlu0 %620
        %v622 = vrot.slane %v476, 1
        %623 = vrot.lane.b32.xlu0 %v559, 40
        %v624 = vpop.permute.xlu0 %623
        %625 = vrot.lane.b32.xlu0 %v560, 40
        %v626 = vpop.permute.xlu0 %625
        %627 = vrot.lane.b32.xlu0 %v561, 40
        %v628 = vpop.permute.xlu0 %627
        %629 = vrot.lane.b32.xlu0 %v562, 40
        %v630 = vpop.permute.xlu0 %629
        %631 = vrot.lane.b32.xlu0 %v563, 40
        %v632 = vpop.permute.xlu0 %631
        %633 = vrot.lane.b32.xlu0 %v564, 40
        %v634 = vpop.permute.xlu0 %633
        %635 = vrot.lane.b32.xlu0 %v565, 40
        %v636 = vpop.permute.xlu0 %635
        %637 = vrot.lane.b32.xlu0 %v622, 40
        %v638 = vpop.permute.xlu0 %637
        %640 = vrot.lane.b32.xlu0 %v470, 48
        %v641 = vpop.permute.xlu0 %640
        %642 = vrot.lane.b32.xlu0 %v471, 48
        %v643 = vpop.permute.xlu0 %642
        %644 = vrot.lane.b32.xlu0 %v472, 48
        %v645 = vpop.permute.xlu0 %644
        %646 = vrot.lane.b32.xlu0 %v473, 48
        %v647 = vpop.permute.xlu0 %646
        %648 = vrot.lane.b32.xlu0 %v474, 48
        %v649 = vpop.permute.xlu0 %648
        %650 = vrot.lane.b32.xlu0 %v475, 48
        %v651 = vpop.permute.xlu0 %650
        %652 = vrot.lane.b32.xlu0 %v476, 48
        %v653 = vpop.permute.xlu0 %652
        %654 = vrot.lane.b32.xlu0 %v477, 48
        %v655 = vpop.permute.xlu0 %654
        %v657 = vshrl.u32 %v477, 16
        %v659 = vshll.u32 %v477, 16
        %v661 = vrot.slane %v659, 1
        %v662 = vor.u32 %v657, %v661
        %663 = vrot.lane.b32.xlu0 %v498, 56
        %v664 = vpop.permute.xlu0 %663
        %665 = vrot.lane.b32.xlu0 %v505, 56
        %v666 = vpop.permute.xlu0 %665
        %667 = vrot.lane.b32.xlu0 %v512, 56
        %v668 = vpop.permute.xlu0 %667
        %669 = vrot.lane.b32.xlu0 %v519, 56
        %v670 = vpop.permute.xlu0 %669
        %671 = vrot.lane.b32.xlu0 %v526, 56
        %v672 = vpop.permute.xlu0 %671
        %673 = vrot.lane.b32.xlu0 %v533, 56
        %v674 = vpop.permute.xlu0 %673
        %675 = vrot.lane.b32.xlu0 %v605, 56
        %v676 = vpop.permute.xlu0 %675
        %677 = vrot.lane.b32.xlu0 %v662, 56
        %v678 = vpop.permute.xlu0 %677
        %v679 = vrot.slane %v477, 1
        %680 = vrot.lane.b32.xlu0 %v560, 64
        %v681 = vpop.permute.xlu0 %680
        %682 = vrot.lane.b32.xlu0 %v561, 64
        %v683 = vpop.permute.xlu0 %682
        %684 = vrot.lane.b32.xlu0 %v562, 64
        %v685 = vpop.permute.xlu0 %684
        %686 = vrot.lane.b32.xlu0 %v563, 64
        %v687 = vpop.permute.xlu0 %686
        %688 = vrot.lane.b32.xlu0 %v564, 64
        %v689 = vpop.permute.xlu0 %688
        %690 = vrot.lane.b32.xlu0 %v565, 64
        %v691 = vpop.permute.xlu0 %690
        %692 = vrot.lane.b32.xlu0 %v622, 64
        %v693 = vpop.permute.xlu0 %692
        %694 = vrot.lane.b32.xlu0 %v679, 64
        %v695 = vpop.permute.xlu0 %694
        %vm696 = vcmask 64512
        %v698 = vsel %vm696, %v468, %v535
        %v700 = vsel %vm696, %v469, %v537
        %v702 = vsel %vm696, %v470, %v539
        %v704 = vsel %vm696, %v471, %v541
        %v706 = vsel %vm696, %v472, %v543
        %v708 = vsel %vm696, %v473, %v545
        %v710 = vsel %vm696, %v474, %v547
        %v712 = vsel %vm696, %v475, %v549
        %vm713 = vcmask 130048
        %v715 = vsel %vm713, %v698, %v567
        %v717 = vsel %vm713, %v700, %v569
        %v719 = vsel %vm713, %v702, %v571
        %v721 = vsel %vm713, %v704, %v573
        %v723 = vsel %vm713, %v706, %v575
        %v725 = vsel %vm713, %v708, %v577
        %v727 = vsel %vm713, %v710, %v579
        %v729 = vsel %vm713, %v712, %v581
        %vm730 = vcmask 195584
        %v732 = vsel %vm730, %v715, %v584
        %v734 = vsel %vm730, %v717, %v586
        %v736 = vsel %vm730, %v719, %v588
        %v738 = vsel %vm730, %v721, %v590
        %v740 = vsel %vm730, %v723, %v592
        %v742 = vsel %vm730, %v725, %v594
        %v744 = vsel %vm730, %v727, %v596
        %v746 = vsel %vm730, %v729, %v598
        %vm747 = vcmask 261120
        %v749 = vsel %vm747, %v732, %v607
        %v751 = vsel %vm747, %v734, %v609
        %v753 = vsel %vm747, %v736, %v611
        %v755 = vsel %vm747, %v738, %v613
        %v757 = vsel %vm747, %v740, %v615
        %v759 = vsel %vm747, %v742, %v617
        %v761 = vsel %vm747, %v744, %v619
        %v763 = vsel %vm747, %v746, %v621
        %vm764 = vcmask 326656
        %v766 = vsel %vm764, %v749, %v624
        %v768 = vsel %vm764, %v751, %v626
        %v770 = vsel %vm764, %v753, %v628
        %v772 = vsel %vm764, %v755, %v630
        %v774 = vsel %vm764, %v757, %v632
        %v776 = vsel %vm764, %v759, %v634
        %v778 = vsel %vm764, %v761, %v636
        %v780 = vsel %vm764, %v763, %v638
        %vm781 = vcmask 392192
        %v783 = vsel %vm781, %v766, %v641
        %v785 = vsel %vm781, %v768, %v643
        %v787 = vsel %vm781, %v770, %v645
        %v789 = vsel %vm781, %v772, %v647
        %v791 = vsel %vm781, %v774, %v649
        %v793 = vsel %vm781, %v776, %v651
        %v795 = vsel %vm781, %v778, %v653
        %v797 = vsel %vm781, %v780, %v655
        %vm798 = vcmask 457728
        %v800 = vsel %vm798, %v783, %v664
        %v802 = vsel %vm798, %v785, %v666
        %v804 = vsel %vm798, %v787, %v668
        %v806 = vsel %vm798, %v789, %v670
        %v808 = vsel %vm798, %v791, %v672
        %v810 = vsel %vm798, %v793, %v674
        %v812 = vsel %vm798, %v795, %v676
        %v814 = vsel %vm798, %v797, %v678
        %vm815 = vcmask 523264
        %v817 = vsel %vm815, %v800, %v681
        %v819 = vsel %vm815, %v802, %v683
        %v821 = vsel %vm815, %v804, %v685
        %v823 = vsel %vm815, %v806, %v687
        %v825 = vsel %vm815, %v808, %v689
        %v827 = vsel %vm815, %v810, %v691
        %v829 = vsel %vm815, %v812, %v693
        %v831 = vsel %vm815, %v814, %v695
        %v832 = vld [vmem:[%s1] sm:$0xf]
        %v833 = vld [vmem:[%s1 + $0x4] sm:$0xf]
        %v834 = vld [vmem:[%s1 + $0x8] sm:$0xf]
        %v835 = vld [vmem:[%s1 + $0xc] sm:$0xf]
        %v836 = vld [vmem:[%s1 + $0x10] sm:$0xf]
        %v837 = vld [vmem:[%s1 + $0x14] sm:$0xf]
        %v838 = vld [vmem:[%s1 + $0x18] sm:$0xf]
        %v839 = vld [vmem:[%s1 + $0x1c] sm:$0xf]
        %v840 = vld [vmem:[%s1 + $0x20] sm:$0xf]
        %v841 = vld [vmem:[%s312] sm:$0xf]
        %v842 = vld [vmem:[%s312 + $0x4] sm:$0xf]
        %v843 = vld [vmem:[%s312 + $0x8] sm:$0xf]
        %v844 = vld [vmem:[%s312 + $0xc] sm:$0xf]
        %v845 = vld [vmem:[%s312 + $0x10] sm:$0xf]
        %v846 = vld [vmem:[%s312 + $0x14] sm:$0xf]
        %v847 = vld [vmem:[%s312 + $0x18] sm:$0xf]
        %v848 = vld [vmem:[%s312 + $0x1c] sm:$0xf]
        %v849 = vunpack.c.l.bf16 %v841
        %v850 = vunpack.c.l.bf16 %v842
        %v851 = vunpack.c.l.bf16 %v843
        %v852 = vunpack.c.l.bf16 %v844
        %v853 = vunpack.c.l.bf16 %v845
        %v854 = vunpack.c.l.bf16 %v846
        %v855 = vunpack.c.l.bf16 %v847
        %v856 = vunpack.c.l.bf16 %v848
        %v865 = vunpack.c.l.b16 %v817
        %v866 = vunpack.c.l.b16 %v819
        %v867 = vunpack.c.l.b16 %v821
        %v868 = vunpack.c.l.b16 %v823
        %v869 = vunpack.c.l.b16 %v825
        %v870 = vunpack.c.l.b16 %v827
        %v871 = vunpack.c.l.b16 %v829
        %v872 = vunpack.c.l.b16 %v831
        %v873 = vpack.c.b16 %v866, %v865
        %v874 = vpack.c.b16 %v868, %v867
        %v875 = vpack.c.b16 %v870, %v869
        %v876 = vpack.c.b16 %v872, %v871
        %v886 = vunpack.c.l.b16 %v832
        %v887 = vunpack.c.l.b16 %v833
        %v888 = vunpack.c.l.b16 %v834
        %v889 = vunpack.c.l.b16 %v835
        %v890 = vunpack.c.l.b16 %v836
        %v891 = vunpack.c.l.b16 %v837
        %v892 = vunpack.c.l.b16 %v838
        %v893 = vunpack.c.l.b16 %v839
        %v894 = vunpack.c.l.b16 %v840
        %v895 = vpack.c.b16 %v887, %v886
        %v896 = vpack.c.b16 %v889, %v888
        %v897 = vpack.c.b16 %v891, %v890
        %v898 = vpack.c.b16 %v893, %v892
        %v899 = vpack.c.b16 %v894, %v894
        %vm904 = vcmask 588800
        %v906 = vsel %vm904, %v873, 0
        %v909 = vsel %vm904, %v874, 0
        %v912 = vsel %vm904, %v875, 0
        %v915 = vsel %vm904, %v876, 0
        %vm917 = vcmask 1043456
        %v919 = vsel %vm917, %v899, 0
        %921 = vmatprep.subr.bf16.mxu0 0
        %922 = vmatpush1.bf16.msra.mxu0 0
        %923 = vmatprep.subr.bf16.mxu0 0
        %924 = vmatpush1.bf16.msra.mxu0 0
        %925 = vmatprep.subr.bf16.mxu0 0
        %926 = vmatpush1.bf16.msra.mxu0 0
        %927 = vmatprep.subr.bf16.mxu0 0
        %928 = vmatpush1.bf16.msra.mxu0 %v919
        %929 = vmatprep.subr.bf16.mxu0 0
        %930 = vmatpush1.bf16.msra.mxu0 %v898
        %931 = vmatprep.subr.bf16.mxu0 0
        %932 = vmatpush1.bf16.msra.mxu0 %v897
        %933 = vmatprep.subr.bf16.mxu0 0
        %934 = vmatpush1.bf16.msra.mxu0 %v896
        %935 = vmatprep.subr.bf16.mxu0 0
        %936 = vmatpush1.bf16.msra.mxu0 %v895
        %937 = vmatprep.subr.bf16.mxu0 0
        %938 = vmatpush2.bf16.msra.mxu0 0
        %939 = vmatprep.subr.bf16.mxu0 0
        %940 = vmatpush2.bf16.msra.mxu0 0
        %941 = vmatprep.subr.bf16.mxu0 0
        %942 = vmatpush2.bf16.msra.mxu0 0
        %943 = vmatprep.subr.bf16.mxu0 0
        %944 = vmatpush2.bf16.msra.mxu0 0
        %945 = vmatprep.subr.bf16.mxu0 0
        %946 = vmatpush2.bf16.msra.mxu0 0
        %947 = vmatprep.subr.bf16.mxu0 0
        %948 = vmatpush2.bf16.msra.mxu0 0
        %949 = vmatprep.subr.bf16.mxu0 0
        %950 = vmatpush2.bf16.msra.mxu0 0
        %951 = vmatprep.subr.bf16.mxu0 0
        %952 = vmatpush2.bf16.msra.mxu0 0
        %953 = vmatprep.mubr.bf16.mxu0 0
        %954 = vmatmul.mubr.bf16.gmra.mxu0 %v906
        %v955 = vpop.f32.mrf.mxu0
        %v956 = vadd.f32 %v849, %v955
        %v957 = vpop.f32.mrf.mxu0
        %v958 = vpop.f32.mrf.mxu0
        %v959 = vadd.f32 %v850, %v958
        %v960 = vpop.f32.mrf.mxu0
        %961 = vmatprep.mubr.bf16.mxu0 0
        %962 = vmatmul.mubr.bf16.gmra.mxu0 %v909
        %v963 = vpop.f32.mrf.mxu0
        %v964 = vadd.f32 %v851, %v963
        %v965 = vpop.f32.mrf.mxu0
        %v966 = vpop.f32.mrf.mxu0
        %v967 = vadd.f32 %v852, %v966
        %v968 = vpop.f32.mrf.mxu0
        %969 = vmatprep.mubr.bf16.mxu0 0
        %970 = vmatmul.mubr.bf16.gmra.mxu0 %v912
        %v971 = vpop.f32.mrf.mxu0
        %v972 = vadd.f32 %v853, %v971
        %v973 = vpop.f32.mrf.mxu0
        %v974 = vpop.f32.mrf.mxu0
        %v975 = vadd.f32 %v854, %v974
        %v976 = vpop.f32.mrf.mxu0
        %977 = vmatprep.mubr.bf16.mxu0 0
        %978 = vmatmul.mubr.bf16.gmra.mxu0 %v915
        %v979 = vpop.f32.mrf.mxu0
        %v980 = vadd.f32 %v855, %v979
        %v981 = vpop.f32.mrf.mxu0
        %v982 = vpop.f32.mrf.mxu0
        %v983 = vadd.f32 %v856, %v982
        %v984 = vpop.f32.mrf.mxu0
        %985 = vdwg.mxu0
        %986 = vst.msk [vmem:[%s317] sm:$0xff] %vm696, %v956
        %987 = vst.msk [vmem:[%s317 + $0x8] sm:$0xff] %vm696, %v959
        %988 = vst.msk [vmem:[%s317 + $0x10] sm:$0xff] %vm696, %v964
        %989 = vst.msk [vmem:[%s317 + $0x18] sm:$0xff] %vm696, %v967
        %990 = vst.msk [vmem:[%s317 + $0x20] sm:$0xff] %vm696, %v972
        %991 = vst.msk [vmem:[%s317 + $0x28] sm:$0xff] %vm696, %v975
        %992 = vst.msk [vmem:[%s317 + $0x30] sm:$0xff] %vm696, %v980
        %993 = vst.msk [vmem:[%s317 + $0x38] sm:$0xff] %vm696, %v983
        %v994 = vsel %vm696, %v956, 0.0
        %v995 = vsel %vm696, %v959, 0.0
        %v996 = vadd.f32 %v994, %v995
        %v997 = vsel %vm696, %v964, 0.0
        %v998 = vadd.f32 %v996, %v997
        %v999 = vsel %vm696, %v967, 0.0
        %v1000 = vadd.f32 %v998, %v999
        %v1001 = vsel %vm696, %v972, 0.0
        %v1002 = vadd.f32 %v1000, %v1001
        %v1003 = vsel %vm696, %v975, 0.0
        %v1004 = vadd.f32 %v1002, %v1003
        %v1005 = vsel %vm696, %v980, 0.0
        %v1006 = vadd.f32 %v1004, %v1005
        %v1007 = vsel %vm696, %v983, 0.0
        %v1008 = vadd.f32 %v1006, %v1007
        %v1009 = vrot.slane %v1008, 4
        %v1010 = vadd.f32 %v1008, %v1009
        %v1011 = vrot.slane %v1010, 2
        %v1012 = vadd.f32 %v1010, %v1011
        %v1013 = vrot.slane %v1012, 1
        %v1014 = vadd.f32 %v1012, %v1013
        %vm1015 = vcmask 57344
        %1016 = vst.msk [vmem:[%s296] sm:$0x1] %vm1015, %v1014
        %v1017 = vmul.f32 %v956, %v956
        %v1018 = vmul.f32 %v959, %v959
        %v1019 = vmul.f32 %v964, %v964
        %v1020 = vmul.f32 %v967, %v967
        %v1021 = vmul.f32 %v972, %v972
        %v1022 = vmul.f32 %v975, %v975
        %v1023 = vmul.f32 %v980, %v980
        %v1024 = vmul.f32 %v983, %v983
        %v1025 = vsel %vm696, %v1017, 0.0
        %v1026 = vsel %vm696, %v1018, 0.0
        %v1027 = vadd.f32 %v1025, %v1026
        %v1028 = vsel %vm696, %v1019, 0.0
        %v1029 = vadd.f32 %v1027, %v1028
        %v1030 = vsel %vm696, %v1020, 0.0
        %v1031 = vadd.f32 %v1029, %v1030
        %v1032 = vsel %vm696, %v1021, 0.0
        %v1033 = vadd.f32 %v1031, %v1032
        %v1034 = vsel %vm696, %v1022, 0.0
        %v1035 = vadd.f32 %v1033, %v1034
        %v1036 = vsel %vm696, %v1023, 0.0
        %v1037 = vadd.f32 %v1035, %v1036
        %v1038 = vsel %vm696, %v1024, 0.0
        %v1039 = vadd.f32 %v1037, %v1038
        %v1040 = vrot.slane %v1039, 4
        %v1041 = vadd.f32 %v1039, %v1040
        %v1042 = vrot.slane %v1041, 2
        %v1043 = vadd.f32 %v1041, %v1042
        %v1044 = vrot.slane %v1043, 1
        %v1045 = vadd.f32 %v1043, %v1044
        %1046 = vst.msk [vmem:[%s302] sm:$0x1] %vm1015, %v1045
        %p1047 = scmp.lt.s32.totalorder %s25, 1
        %s1048 = scalar_select %p1047, %s25, 1
        %s1049 = smul.addr %s1048, 8
        %s1050 = smul.addr %s1049, 8
        %s1051 = scalar_lea.vmem %s5, %s1050
        %s1052 = sand.u32 %s174, 1
        %s1053 = scalar_lea.sflag [#allocation3], %s1052
        %s1054 = sand.u32 %s174, 1
        %s1055 = scalar_lea.vmem [#allocation2], %s1054
        %s1056 = sand.u32 %s200, 1
        %s1057 = scalar_lea.sflag [#allocation5], %s1056
        %s1058 = sand.u32 %s200, 1
        %s1059 = scalar_lea.vmem [#allocation4], %s1058
        // Predicated region
        $region41: #{network_block2_forward.9} parent=39 // pred_check
          %p1060 = pneg %p158
        $region42: #{network_block2_forward.9} parent=39 // pred_check_branch
          %1062 = sbr.rel (%p1060) target = $region44
        $region43: #{network_block2_forward.9} parent=39 // pred_region
          _
        $region44: #{network_block2_forward.9} parent=39 // pred_fallthru
          _
        // Predicated region
        $region45: #{network_block2_forward.9} parent=39 // pred_check
          %p1063 = pneg %p184
        $region46: #{network_block2_forward.9} parent=39 // pred_check_branch
          %1065 = sbr.rel (%p1063) target = $region48
        $region47: #{network_block2_forward.9} parent=39 // pred_region
          %s1067 = ssub.s32 16, 16
          %1068 = vsyncadd %s1053, %s1067
          %s1069 = smul.addr %s25, 16
          %s1070 = scalar_lea.hbm %s6, %s1069
          %s1072 = sshll.u32 %s1055, 4
          %s1073 = int_to_ptr.vmem [resolvable:$true] %s1072
          %1075 = dma.vmem_to_hbm [thread:$0]  %s1073, 16, %s1070, %s1053
        $region48: #{network_block2_forward.9} parent=39 // pred_fallthru
          _
        // Predicated region
        $region49: #{network_block2_forward.9} parent=39 // pred_check
          %p1076 = pneg %p210
        $region50: #{network_block2_forward.9} parent=39 // pred_check_branch
          %1078 = sbr.rel (%p1076) target = $region52
        $region51: #{network_block2_forward.9} parent=39 // pred_region
          %s1080 = ssub.s32 16, 16
          %1081 = vsyncadd %s1057, %s1080
          %s1082 = smul.addr %s25, 16
          %s1083 = scalar_lea.hbm %s7, %s1082
          %s1085 = sshll.u32 %s1059, 4
          %s1086 = int_to_ptr.vmem [resolvable:$true] %s1085
          %1088 = dma.vmem_to_hbm [thread:$0]  %s1086, 16, %s1083, %s1057
        $region52: #{network_block2_forward.9} parent=39 // pred_fallthru
          _
      $region40: #{network_block2_forward.9} parent=5 // pred_fallthru
        _
      %p1089 = scmp.le.s32.totalorder 2, %s20
      // Predicated region
      $region53: #{network_block2_forward.9} parent=5 // pred_check
        %p1090 = pneg %p1089
      $region54: #{network_block2_forward.9} parent=5 // pred_check_branch
        %1092 = sbr.rel (%p1090) target = $region56
      $region55: #{network_block2_forward.9} parent=5 // pred_region
        %s1093 = ssub.s32 %s20, 2
        // Predicated region
        $region57: #{network_block2_forward.9} parent=55 // pred_check
          %p1094 = pneg %p164
        $region58: #{network_block2_forward.9} parent=55 // pred_check_branch
          %1096 = sbr.rel (%p1094) target = $region60
        $region59: #{network_block2_forward.9} parent=55 // pred_region
          %p1097 = scmp.lt.s32.totalorder %s26, 1
          %s1098 = scalar_select %p1097, %s26, 1
          %s1099 = smul.addr %s1098, 8
          %s1100 = smul.addr %s1099, 8
          %s1101 = scalar_lea.vmem %s5, %s1100
        $region60: #{network_block2_forward.9} parent=55 // pred_fallthru
          _
        // Predicated region
        $region61: #{network_block2_forward.9} parent=55 // pred_check
          %p1102 = pneg %p190
        $region62: #{network_block2_forward.9} parent=55 // pred_check_branch
          %1104 = sbr.rel (%p1102) target = $region64
        $region63: #{network_block2_forward.9} parent=55 // pred_region
          %s1105 = sand.u32 %s175, 1
          %s1106 = scalar_lea.sflag [#allocation3], %s1105
          %s1107 = sand.u32 %s175, 1
          %s1108 = scalar_lea.vmem [#allocation2], %s1107
          %1109 = dma.done %s1106, 16
        $region64: #{network_block2_forward.9} parent=55 // pred_fallthru
          _
        // Predicated region
        $region65: #{network_block2_forward.9} parent=55 // pred_check
          %p1110 = pneg %p216
        $region66: #{network_block2_forward.9} parent=55 // pred_check_branch
          %1112 = sbr.rel (%p1110) target = $region68
        $region67: #{network_block2_forward.9} parent=55 // pred_region
          %s1113 = sand.u32 %s201, 1
          %s1114 = scalar_lea.sflag [#allocation5], %s1113
          %s1115 = sand.u32 %s201, 1
          %s1116 = scalar_lea.vmem [#allocation4], %s1115
          %1117 = dma.done %s1114, 16
        $region68: #{network_block2_forward.9} parent=55 // pred_fallthru
          _
      $region56: #{network_block2_forward.9} parent=5 // pred_fallthru
        _
    $region6: #{network_block2_forward.9} parent=1 // loop_footer
      %s24 = sadd.s32 1, %s20
    $region7: #{network_block2_forward.9} parent=1 // loop_footer_branch
      %19 = sbr.rel target = $region3
    $region8: #{network_block2_forward.9} parent=1 // loop_exit
      _
    %1118 = vsyncpa [#allocation3], 1
    %s1119 = scalar_lea.sflag [#allocation3], 1
    %1120 = vsyncpa %s1119, 1
    %1121 = vsyncpa [#allocation5], 1
    %s1122 = scalar_lea.sflag [#allocation5], 1
    %1123 = vsyncpa %s1122, 1

</llo_original>
